<compile_context>
chip_gen: v6e
topology: v6e:2x2x1
jax: 0.10.0
libtpu: 0.0.40
codegen_flags: <defaults>
</compile_context>

<pallas_src>
import math
import functools

import jax
import jax.numpy as jnp
from jax import lax
from jax.experimental import pallas as pl
from jax.experimental.pallas import tpu as pltpu


# ----------------------------- small helpers --------------------------------
def _layernorm(x, w, b, eps=1e-6):
    mu = jnp.mean(x, axis=-1, keepdims=True)
    var = jnp.mean((x - mu) ** 2, axis=-1, keepdims=True)
    return (x - mu) * lax.rsqrt(var + eps) * w + b


def _silu(x):
    return x * jax.nn.sigmoid(x)


# --------------------- fused refiner-blocks kernel ---------------------------
def refiner_kernel(B, S, num_heads, head_dim, ff_tiles,
                   x_in_ref, gates_ref,
                   ln1w_ref, ln1b_ref, wqkv_ref, bqkv_ref, wo_ref, bo_ref,
                   ln2w_ref, ln2b_ref, wf1_ref, bf1_ref, wf2_ref, bf2_ref,
                   out_ref, x_scr, xn_scr, acc_scr):
    H = num_heads * head_dim
    d = head_dim
    M = B * S
    NH = num_heads
    NF = ff_tiles
    l = pl.program_id(0)
    t = pl.program_id(1)

    # ---- very first grid step: load proj_in activations into the VMEM carry.
    # The hidden state then lives in VMEM for the whole (layer, tile) grid.
    @pl.when(jnp.logical_and(l == 0, t == 0))
    def _():
        x_scr[...] = x_in_ref[...].astype(jnp.float32)

    # ---- layer prologue: LayerNorm1 (f32 stats) + zero attention accumulator.
    @pl.when(t == 0)
    def _():
        xn_scr[...] = _layernorm(x_scr[...], ln1w_ref[...],
                                 ln1b_ref[...]).astype(jnp.bfloat16)
        acc_scr[...] = jnp.zeros_like(acc_scr)

    # ---- phase 1: one attention head per grid step (wqkv N-tile, wo K-tile).
    @pl.when(t < NH)
    def _():
        xn = xn_scr[...]                                         # (M, H) bf16
        qkv = (jnp.dot(xn, wqkv_ref[...],
                       preferred_element_type=jnp.float32)
               + bqkv_ref[...])                                  # (M, 3d) f32
        qkv = qkv.astype(jnp.bfloat16).reshape(B, S, 3 * d)      # early bf16
        q = qkv[:, :, :d]           # 1/sqrt(d) pre-folded into wq/bq at init
        k = qkv[:, :, d:2 * d]
        v = qkv[:, :, 2 * d:]
        s = jnp.einsum('bqd,bkd->bqk', q, k,
                       preferred_element_type=jnp.float32)       # (B, S, S)
        s = s - jnp.max(s, axis=-1, keepdims=True)
        p = jnp.exp(s)
        p = p * pl.reciprocal(jnp.sum(p, axis=-1, keepdims=True), approx=True)
        o = jnp.einsum('bqk,bkd->bqd', p.astype(jnp.bfloat16), v,
                       preferred_element_type=jnp.float32)
        o = o.reshape(M, d).astype(jnp.bfloat16)
        # fold this head's slice of the output projection (K-tiled accumulate)
        acc_scr[...] += jnp.dot(o, wo_ref[...],
                                preferred_element_type=jnp.float32)

    # ---- phase 1 epilogue: gated residual, LayerNorm2, reset accumulator.
    @pl.when(t == NH - 1)
    def _():
        gate_msa = gates_ref[...][:, :H].reshape(B, 1, H)        # (B,1,H) f32
        x = x_scr[...].reshape(B, S, H)
        attn = (acc_scr[...] + bo_ref[...]).reshape(B, S, H)
        x = (x + attn * gate_msa).reshape(M, H)
        x_scr[...] = x
        xn_scr[...] = _layernorm(x, ln2w_ref[...],
                                 ln2b_ref[...]).astype(jnp.bfloat16)
        acc_scr[...] = jnp.zeros_like(acc_scr)

    # ---- phase 2: one FF-intermediate chunk per grid step (wf1 N / wf2 K).
    @pl.when(t >= NH)
    def _():
        h1 = (jnp.dot(xn_scr[...], wf1_ref[...],
                      preferred_element_type=jnp.float32) + bf1_ref[...])
        h1 = _silu(h1).astype(jnp.bfloat16)
        acc_scr[...] += jnp.dot(h1, wf2_ref[...],
                                preferred_element_type=jnp.float32)

    # ---- phase 2 epilogue: gated residual -> carry for the next layer.
    @pl.when(t == NH + NF - 1)
    def _():
        gate_mlp = gates_ref[...][:, H:].reshape(B, 1, H)
        x = x_scr[...].reshape(B, S, H)
        ff = (acc_scr[...] + bf2_ref[...]).reshape(B, S, H)
        x_scr[...] = (x + ff * gate_mlp).reshape(M, H)

    @pl.when(jnp.logical_and(t == NH + NF - 1, l == pl.num_programs(0) - 1))
    def _():
        out_ref[...] = x_scr[...].astype(out_ref.dtype)


# ----------------------------- pallas_call wrapper ---------------------------
def build_refiner_call(B, S, H, L, num_heads, head_dim, mlp_dim, ff_tile):
    # NOTE: S should be a multiple of 8 so the in-kernel (M,H)<->(B,S,H)
    # reshapes are layout no-ops (true for toy S=16 and real S=256).
    M = B * S
    d = head_dim
    NH = num_heads
    NF = mlp_dim // ff_tile

    def head_idx(t):                       # clamp: held constant in FF phase
        return jnp.minimum(t, NH - 1)

    def ff_idx(t):                         # clamp: held constant in attn phase
        return jnp.clip(t - NH, 0, NF - 1)

    per_layer_vec = pl.BlockSpec((None, 1, H), lambda l, t: (l, 0, 0))

    in_specs = [
        pl.BlockSpec((M, H), lambda l, t: (0, 0)),                  # proj_in activations
        pl.BlockSpec((None, B, 2 * H), lambda l, t: (l, 0, 0)),     # AdaNorm gates
        per_layer_vec, per_layer_vec,                               # norm1 w, b
        pl.BlockSpec((None, None, H, 3 * d),                        # qkv w (per-head tile)
                     lambda l, t: (l, head_idx(t), 0, 0)),
        pl.BlockSpec((None, None, 1, 3 * d),                        # qkv b (per-head tile)
                     lambda l, t: (l, head_idx(t), 0, 0)),
        pl.BlockSpec((None, None, d, H),                            # out-proj w (per-head K tile)
                     lambda l, t: (l, head_idx(t), 0, 0)),
        per_layer_vec,                                              # out-proj b
        per_layer_vec, per_layer_vec,                               # norm2 w, b
        pl.BlockSpec((None, H, ff_tile),                            # ff1 w (N tile)
                     lambda l, t: (l, 0, ff_idx(t))),
        pl.BlockSpec((None, 1, ff_tile),                            # ff1 b (N tile)
                     lambda l, t: (l, 0, ff_idx(t))),
        pl.BlockSpec((None, ff_tile, H),                            # ff2 w (K tile)
                     lambda l, t: (l, ff_idx(t), 0)),
        per_layer_vec,                                              # ff2 b
    ]
    out_specs = pl.BlockSpec((M, H), lambda l, t: (0, 0))
    out_shape = jax.ShapeDtypeStruct((M, H), jnp.float32)

    return pl.pallas_call(
        functools.partial(refiner_kernel, B, S, num_heads, head_dim, NF),
        out_shape=out_shape,
        grid_spec=pltpu.PrefetchScalarGridSpec(
            num_scalar_prefetch=0,
            grid=(L, NH + NF),
            in_specs=in_specs,
            out_specs=out_specs,
            scratch_shapes=[pltpu.VMEM((M, H), jnp.float32),    # hidden-state carry
                            pltpu.VMEM((M, H), jnp.bfloat16),   # normed activations
                            pltpu.VMEM((M, H), jnp.float32)]),  # attn/ff accumulator
        compiler_params=pltpu.CompilerParams(
            # Both axes carry state (layer carry / in-layer accumulation).
            dimension_semantics=("arbitrary", "arbitrary"),
            # Explicit VMEM budget; safe on v5e/v6e/v7x. At real shapes, size
            # ff_tile / per-head tiles against ~100 MiB (v5e/v6e), ~48 MiB (v7x).
            vmem_limit_bytes=48 * 1024 * 1024),
    )


# ------------------------------ parameters -----------------------------------
def _dense(key, fan_in, fan_out, scale=0.05, dtype=jnp.float32):
    kw, kb = jax.random.split(key)
    w = (jax.random.normal(kw, (fan_in, fan_out), jnp.float32) * scale).astype(dtype)
    b = jax.random.normal(kb, (1, fan_out), jnp.float32) * scale
    return w, b


def _dense_stack(key, L, fan_in, fan_out, scale=0.05, w_dtype=jnp.bfloat16):
    kw, kb = jax.random.split(key)
    w = (jax.random.normal(kw, (L, fan_in, fan_out), jnp.float32) * scale).astype(w_dtype)
    b = jax.random.normal(kb, (L, 1, fan_out), jnp.float32) * scale
    return w, b


def init_params(key, in_channels, num_heads, head_dim, num_layers, mlp_ratio):
    H = num_heads * head_dim
    d = head_dim
    L = num_layers
    mlp_dim = int(H * mlp_ratio)
    k = jax.random.split(key, 12)

    p = {"hidden_size": H, "mlp_dim": mlp_dim, "num_heads": num_heads,
         "head_dim": head_dim, "num_layers": L}

    # time/text embedding MLPs + proj_in -- plain-JAX glue (tiny/one-shot matmuls)
    p["wt1"], p["bt1"] = _dense(k[0], 256, H)
    p["wt2"], p["bt2"] = _dense(k[1], H, H)
    p["wp1"], p["bp1"] = _dense(k[2], in_channels, H)
    p["wp2"], p["bp2"] = _dense(k[3], H, H)
    p["win"], p["bin"] = _dense(k[4], in_channels, H)

    # layer norms
    p["ln1w"] = jnp.ones((L, 1, H), jnp.float32)
    p["ln1b"] = jnp.zeros((L, 1, H), jnp.float32)
    p["ln2w"] = jnp.ones((L, 1, H), jnp.float32)
    p["ln2b"] = jnp.zeros((L, 1, H), jnp.float32)

    # attention: fused qkv packed per head, q pre-scaled by 1/sqrt(d)
    wq, bq = _dense_stack(k[5], L, H, H, w_dtype=jnp.float32)
    wk, bk = _dense_stack(k[6], L, H, H, w_dtype=jnp.float32)
    wv, bv = _dense_stack(k[7], L, H, H, w_dtype=jnp.float32)
    scale = 1.0 / math.sqrt(d)
    wq = wq * scale
    bq = bq * scale

    def per_head_cols(w):   # (L, H, H) -> (L, NH, H, d)
        return w.reshape(L, H, num_heads, d).transpose(0, 2, 1, 3)

    def per_head_bias(b):   # (L, 1, H) -> (L, NH, 1, d)
        return b.reshape(L, 1, num_heads, d).transpose(0, 2, 1, 3)

    p["wqkv"] = jnp.concatenate(
        [per_head_cols(wq), per_head_cols(wk), per_head_cols(wv)],
        axis=-1).astype(jnp.bfloat16)                     # (L, NH, H, 3d) bf16
    p["bqkv"] = jnp.concatenate(
        [per_head_bias(bq), per_head_bias(bk), per_head_bias(bv)],
        axis=-1)                                          # (L, NH, 1, 3d) f32

    wo, bo = _dense_stack(k[8], L, H, H, w_dtype=jnp.float32)
    p["wo"] = wo.reshape(L, num_heads, d, H).astype(jnp.bfloat16)  # K-sliced per head
    p["bo"] = bo

    p["wf1"], p["bf1"] = _dense_stack(k[9], L, H, mlp_dim)
    p["wf2"], p["bf2"] = _dense_stack(k[10], L, mlp_dim, H)
    p["wada"], p["bada"] = _dense_stack(k[11], L, H, 2 * H, w_dtype=jnp.float32)
    return p


# ------------------------------ JAX glue + forward ----------------------------
def _timestep_embedding(timestep, dim=256):
    # diffusers Timesteps(256, flip_sin_to_cos=True, downscale_freq_shift=0)
    half = dim // 2
    exponent = -math.log(10000.0) * jnp.arange(half, dtype=jnp.float32) / half
    freqs = jnp.exp(exponent)
    args = timestep.astype(jnp.float32)[:, None] * freqs[None, :]
    return jnp.concatenate([jnp.cos(args), jnp.sin(args)], axis=-1)


def _glue_inputs(params, hidden_states, timestep):
    """Everything with M=1 or one-shot weights stays in plain JAX."""
    B, S, C = hidden_states.shape
    # TODO(synk): attention_mask path (masked mean pooling) not implemented.
    pooled = jnp.mean(hidden_states, axis=1)                          # (B, C)
    sinus = _timestep_embedding(timestep)                             # (B, 256)
    t = _silu(sinus @ params["wt1"] + params["bt1"]) @ params["wt2"] + params["bt2"]
    p = _silu(pooled @ params["wp1"] + params["bp1"]) @ params["wp2"] + params["bp2"]
    temb = t + p                                                      # (B, H)
    # AdaNorm gates for all layers, hoisted out of the kernel (M=1 matmul).
    gates = jnp.einsum('bh,lhg->lbg', _silu(temb), params["wada"]) + params["bada"]
    # proj_in hoisted out of the kernel (used once; big weight would squat VMEM).
    x0 = (hidden_states.reshape(B * S, C) @ params["win"]
          + params["bin"]).astype(jnp.float32)                        # (M, H)
    return x0, gates


def _pick_ff_tile(mlp_dim):
    return 512 if (mlp_dim % 512 == 0 and mlp_dim > 512) else mlp_dim


def hunyuan_token_refiner_forward(params, hidden_states, timestep):
    """hidden_states: (B, S, C) float32; timestep: (B,) int32."""
    B, S, C = hidden_states.shape
    H = params["hidden_size"]
    L = params["num_layers"]
    mlp = params["mlp_dim"]
    ff_tile = _pick_ff_tile(mlp)

    x0, gates = _glue_inputs(params, hidden_states, timestep)
    call = build_refiner_call(B, S, H, L, params["num_heads"],
                              params["head_dim"], mlp, ff_tile)
    out = call(x0, gates,
               params["ln1w"], params["ln1b"],
               params["wqkv"], params["bqkv"], params["wo"], params["bo"],
               params["ln2w"], params["ln2b"],
               params["wf1"], params["bf1"], params["wf2"], params["bf2"])
    return out.reshape(B, S, H)


# ------------------------- pure-JAX reference (for checking) ------------------
def refiner_reference(params, hidden_states, timestep):
    B, S, C = hidden_states.shape
    H = params["hidden_size"]
    L = params["num_layers"]
    NH = params["num_heads"]
    d = params["head_dim"]
    mlp = params["mlp_dim"]
    ff_tile = _pick_ff_tile(mlp)
    NF = mlp // ff_tile
    M = B * S

    x, gates = _glue_inputs(params, hidden_states, timestep)
    for l in range(L):
        xn = _layernorm(x, params["ln1w"][l, 0], params["ln1b"][l, 0]).astype(jnp.bfloat16)
        acc = jnp.zeros((M, H), jnp.float32)
        for h in range(NH):
            qkv = (jnp.dot(xn, params["wqkv"][l, h], preferred_element_type=jnp.float32)
                   + params["bqkv"][l, h])
            qkv = qkv.astype(jnp.bfloat16).reshape(B, S, 3 * d)
            q, k, v = qkv[..., :d], qkv[..., d:2 * d], qkv[..., 2 * d:]
            s = jnp.einsum('bqd,bkd->bqk', q, k, preferred_element_type=jnp.float32)
            p = jax.nn.softmax(s, axis=-1)
            o = jnp.einsum('bqk,bkd->bqd', p.astype(jnp.bfloat16), v,
                           preferred_element_type=jnp.float32)
            o = o.reshape(M, d).astype(jnp.bfloat16)
            acc = acc + jnp.dot(o, params["wo"][l, h], preferred_element_type=jnp.float32)
        gate_msa = gates[l, :, :H].reshape(B, 1, H)
        gate_mlp = gates[l, :, H:].reshape(B, 1, H)
        x = (x.reshape(B, S, H)
             + (acc + params["bo"][l]).reshape(B, S, H) * gate_msa).reshape(M, H)
        xn2 = _layernorm(x, params["ln2w"][l, 0], params["ln2b"][l, 0]).astype(jnp.bfloat16)
        ffacc = jnp.zeros((M, H), jnp.float32)
        for f in range(NF):
            sl = slice(f * ff_tile, (f + 1) * ff_tile)
            h1 = (jnp.dot(xn2, params["wf1"][l][:, sl], preferred_element_type=jnp.float32)
                  + params["bf1"][l][:, sl])
            h1 = _silu(h1).astype(jnp.bfloat16)
            ffacc = ffacc + jnp.dot(h1, params["wf2"][l][sl, :],
                                    preferred_element_type=jnp.float32)
        x = (x.reshape(B, S, H)
             + (ffacc + params["bf2"][l]).reshape(B, S, H) * gate_mlp).reshape(M, H)
    return x.reshape(B, S, H)


# ------------------------------ main ------------------------------------------
if __name__ == "__main__":
    B, S, C = 2, 16, 8             # batch, seq, in_channels
    num_heads, head_dim = 2, 128   # hidden_size = 256 (lane-aligned heads)
    num_layers = 2
    mlp_ratio = 4.0                # mlp_dim = 1024 -> two FF tiles of 512

    key = jax.random.PRNGKey(0)
    k_hs, k_params = jax.random.split(key)
    hidden_states = jax.random.normal(k_hs, (B, S, C), jnp.float32)
    timestep = jnp.array([100, 900], dtype=jnp.int32)

    params = init_params(k_params, C, num_heads, head_dim, num_layers, mlp_ratio)

    out = hunyuan_token_refiner_forward(params, hidden_states, timestep)
    out = jax.block_until_ready(out)

    assert out.shape == (B, S, num_heads * head_dim)
    assert bool(jnp.all(jnp.isfinite(out)))

    ref = refiner_reference(params, hidden_states, timestep)
    err = float(jnp.max(jnp.abs(out - ref)))
    assert err < 5e-2, f"max abs err vs reference: {err}"

    print("KERNEL_OK")
</pallas_src>

<mosaic_0001>
module attributes {stable_mosaic.version = 11 : i64} {
  func.func @refiner_kernel(%arg0: i32, %arg1: i32, %arg2: memref<32x256xf32, #tpu.memory_space<vmem>>, %arg3: memref<1x2x512xf32, #tpu.memory_space<vmem>>, %arg4: memref<1x1x256xf32, #tpu.memory_space<vmem>>, %arg5: memref<1x1x256xf32, #tpu.memory_space<vmem>>, %arg6: memref<1x1x256x384xbf16, #tpu.memory_space<vmem>>, %arg7: memref<1x1x1x384xf32, #tpu.memory_space<vmem>>, %arg8: memref<1x1x128x256xbf16, #tpu.memory_space<vmem>>, %arg9: memref<1x1x256xf32, #tpu.memory_space<vmem>>, %arg10: memref<1x1x256xf32, #tpu.memory_space<vmem>>, %arg11: memref<1x1x256xf32, #tpu.memory_space<vmem>>, %arg12: memref<1x256x512xbf16, #tpu.memory_space<vmem>>, %arg13: memref<1x1x512xf32, #tpu.memory_space<vmem>>, %arg14: memref<1x512x256xbf16, #tpu.memory_space<vmem>>, %arg15: memref<1x1x256xf32, #tpu.memory_space<vmem>>, %arg16: memref<32x256xf32, #tpu.memory_space<vmem>>, %arg17: memref<32x256xf32, #tpu.memory_space<vmem>>, %arg18: memref<32x256xbf16, #tpu.memory_space<vmem>>, %arg19: memref<32x256xf32, #tpu.memory_space<vmem>>) attributes {dimension_semantics = [#tpu.dimension_semantics<arbitrary>, #tpu.dimension_semantics<arbitrary>], iteration_bounds = array<i64: 2, 4>, scalar_prefetch = 0 : i64, scratch_operands = 3 : i64, tpu.core_type = #tpu.core_type<tc>, window_params = [{pipeline_mode = #tpu.pipeline_mode<synchronous>, transform_indices = @transform_0, window_bounds = array<i64: 32, 256>}, {transform_indices = @transform_1, window_bounds = array<i64: 1, 2, 512>}, {transform_indices = @transform_2, window_bounds = array<i64: 1, 1, 256>}, {transform_indices = @transform_3, window_bounds = array<i64: 1, 1, 256>}, {transform_indices = @transform_4, window_bounds = array<i64: 1, 1, 256, 384>}, {transform_indices = @transform_5, window_bounds = array<i64: 1, 1, 1, 384>}, {transform_indices = @transform_6, window_bounds = array<i64: 1, 1, 128, 256>}, {transform_indices = @transform_7, window_bounds = array<i64: 1, 1, 256>}, {transform_indices = @transform_8, window_bounds = array<i64: 1, 1, 256>}, {transform_indices = @transform_9, window_bounds = array<i64: 1, 1, 256>}, {transform_indices = @transform_10, window_bounds = array<i64: 1, 256, 512>}, {transform_indices = @transform_11, window_bounds = array<i64: 1, 1, 512>}, {transform_indices = @transform_12, window_bounds = array<i64: 1, 512, 256>}, {transform_indices = @transform_13, window_bounds = array<i64: 1, 1, 256>}, {pipeline_mode = #tpu.pipeline_mode<synchronous>, transform_indices = @transform_14, window_bounds = array<i64: 32, 256>}]} {
    %c0_i32 = arith.constant 0 : i32
    %0 = arith.cmpi eq, %arg0, %c0_i32 : i32
    %c0_i32_0 = arith.constant 0 : i32
    %1 = arith.cmpi eq, %arg1, %c0_i32_0 : i32
    %2 = arith.andi %0, %1 : i1
    %3 = arith.extui %2 : i1 to i32
    %c0_i32_1 = arith.constant 0 : i32
    %4 = arith.cmpi ne, %3, %c0_i32_1 : i32
    scf.if %4 {
      %c0 = arith.constant 0 : index
      %c0_12 = arith.constant 0 : index
      %25 = vector.load %arg2[%c0, %c0_12] : memref<32x256xf32, #tpu.memory_space<vmem>>, vector<32x256xf32>
      %c0_13 = arith.constant 0 : index
      %c0_14 = arith.constant 0 : index
      %26 = vector.load %arg17[%c0_13, %c0_14] : memref<32x256xf32, #tpu.memory_space<vmem>>, vector<32x256xf32>
      tpu.vector_store %arg17[%c0_13, %c0_14], %25 {strides = array<i32>} : memref<32x256xf32, #tpu.memory_space<vmem>>, vector<32x256xf32>,
    } else {
    }
    %c0_i32_2 = arith.constant 0 : i32
    %5 = arith.cmpi eq, %arg1, %c0_i32_2 : i32
    %6 = arith.extui %5 : i1 to i32
    %c0_i32_3 = arith.constant 0 : i32
    %7 = arith.cmpi ne, %6, %c0_i32_3 : i32
    scf.if %7 {
      %c0 = arith.constant 0 : index
      %c0_12 = arith.constant 0 : index
      %25 = vector.load %arg17[%c0, %c0_12] : memref<32x256xf32, #tpu.memory_space<vmem>>, vector<32x256xf32>
      %c0_13 = arith.constant 0 : index
      %c0_14 = arith.constant 0 : index
      %c0_15 = arith.constant 0 : index
      %26 = vector.load %arg4[%c0_13, %c0_14, %c0_15] : memref<1x1x256xf32, #tpu.memory_space<vmem>>, vector<1x1x256xf32>
      %27 = vector.shape_cast %26 : vector<1x1x256xf32> to vector<1x256xf32>
      %c0_16 = arith.constant 0 : index
      %c0_17 = arith.constant 0 : index
      %c0_18 = arith.constant 0 : index
      %28 = vector.load %arg5[%c0_16, %c0_17, %c0_18] : memref<1x1x256xf32, #tpu.memory_space<vmem>>, vector<1x1x256xf32>
      %29 = vector.shape_cast %28 : vector<1x1x256xf32> to vector<1x256xf32>
      %cst = arith.constant dense<0.000000e+00> : vector<32xf32>
      %30 = vector.multi_reduction <add>, %25, %cst [1] : vector<32x256xf32> to vector<32xf32>
      %31 = vector.shape_cast %30 : vector<32xf32> to vector<32x1xf32>
      %cst_19 = arith.constant 2.560000e+02 : f32
      %32 = vector.broadcast %cst_19 : f32 to vector<32x1xf32>
      %33 = arith.divf %31, %32 : vector<32x1xf32>
      %34 = vector.broadcast %33 : vector<32x1xf32> to vector<32x256xf32>
      %35 = arith.subf %25, %34 : vector<32x256xf32>
      %36 = arith.mulf %35, %35 : vector<32x256xf32>
      %cst_20 = arith.constant dense<0.000000e+00> : vector<32xf32>
      %37 = vector.multi_reduction <add>, %36, %cst_20 [1] : vector<32x256xf32> to vector<32xf32>
      %38 = vector.shape_cast %37 : vector<32xf32> to vector<32x1xf32>
      %cst_21 = arith.constant 2.560000e+02 : f32
      %39 = vector.broadcast %cst_21 : f32 to vector<32x1xf32>
      %40 = arith.divf %38, %39 : vector<32x1xf32>
      %41 = vector.broadcast %33 : vector<32x1xf32> to vector<32x256xf32>
      %42 = arith.subf %25, %41 : vector<32x256xf32>
      %cst_22 = arith.constant 9.99999997E-7 : f32
      %43 = vector.broadcast %cst_22 : f32 to vector<32x1xf32>
      %44 = arith.addf %40, %43 : vector<32x1xf32>
      %45 = math.rsqrt %44 : vector<32x1xf32>
      %46 = vector.broadcast %45 : vector<32x1xf32> to vector<32x256xf32>
      %47 = arith.mulf %42, %46 : vector<32x256xf32>
      %48 = vector.broadcast %27 : vector<1x256xf32> to vector<32x256xf32>
      %49 = arith.mulf %47, %48 : vector<32x256xf32>
      %50 = vector.broadcast %29 : vector<1x256xf32> to vector<32x256xf32>
      %51 = arith.addf %49, %50 : vector<32x256xf32>
      %52 = arith.truncf %51 : vector<32x256xf32> to vector<32x256xbf16>
      %c0_23 = arith.constant 0 : index
      %c0_24 = arith.constant 0 : index
      %53 = vector.load %arg18[%c0_23, %c0_24] : memref<32x256xbf16, #tpu.memory_space<vmem>>, vector<32x256xbf16>
      tpu.vector_store %arg18[%c0_23, %c0_24], %52 {strides = array<i32>} : memref<32x256xbf16, #tpu.memory_space<vmem>>, vector<32x256xbf16>,
      %cst_25 = arith.constant 0.000000e+00 : f32
      %54 = vector.broadcast %cst_25 : f32 to vector<32x256xf32>
      %c0_26 = arith.constant 0 : index
      %c0_27 = arith.constant 0 : index
      %55 = vector.load %arg19[%c0_26, %c0_27] : memref<32x256xf32, #tpu.memory_space<vmem>>, vector<32x256xf32>
      tpu.vector_store %arg19[%c0_26, %c0_27], %54 {strides = array<i32>} : memref<32x256xf32, #tpu.memory_space<vmem>>, vector<32x256xf32>,
    } else {
    }
    %c2_i32 = arith.constant 2 : i32
    %8 = arith.cmpi slt, %arg1, %c2_i32 : i32
    %9 = arith.extui %8 : i1 to i32
    %c0_i32_4 = arith.constant 0 : i32
    %10 = arith.cmpi ne, %9, %c0_i32_4 : i32
    scf.if %10 {
      %c0 = arith.constant 0 : index
      %c0_12 = arith.constant 0 : index
      %25 = vector.load %arg18[%c0, %c0_12] : memref<32x256xbf16, #tpu.memory_space<vmem>>, vector<32x256xbf16>
      %c0_13 = arith.constant 0 : index
      %c0_14 = arith.constant 0 : index
      %c0_15 = arith.constant 0 : index
      %c0_16 = arith.constant 0 : index
      %26 = vector.load %arg6[%c0_13, %c0_14, %c0_15, %c0_16] : memref<1x1x256x384xbf16, #tpu.memory_space<vmem>>, vector<1x1x256x384xbf16>
      %27 = vector.shape_cast %26 : vector<1x1x256x384xbf16> to vector<256x384xbf16>
      %cst = arith.constant dense<0.000000e+00> : vector<32x384xf32>
      %28 = tpu.matmul %25, %27, %cst {dimension_numbers = #tpu.dot_dimension_numbers<[1], [0], [0], [1], [0, 0, 1, 1], [], []>} : vector<32x256xbf16>, vector<256x384xbf16>, vector<32x384xf32> -> vector<32x384xf32>
      %c0_17 = arith.constant 0 : index
      %c0_18 = arith.constant 0 : index
      %c0_19 = arith.constant 0 : index
      %c0_20 = arith.constant 0 : index
      %29 = vector.load %arg7[%c0_17, %c0_18, %c0_19, %c0_20] : memref<1x1x1x384xf32, #tpu.memory_space<vmem>>, vector<1x1x1x384xf32>
      %30 = vector.shape_cast %29 : vector<1x1x1x384xf32> to vector<1x384xf32>
      %31 = vector.broadcast %30 : vector<1x384xf32> to vector<32x384xf32>
      %32 = arith.addf %28, %31 : vector<32x384xf32>
      %33 = arith.truncf %32 : vector<32x384xf32> to vector<32x384xbf16>
      %34 = vector.shape_cast %33 : vector<32x384xbf16> to vector<2x16x384xbf16>
      %35 = vector.extract_strided_slice %34 {offsets = [0, 0, 0], sizes = [2, 16, 128], strides = [1, 1, 1]} : vector<2x16x384xbf16> to vector<2x16x128xbf16>
      %36 = vector.extract_strided_slice %34 {offsets = [0, 0, 128], sizes = [2, 16, 128], strides = [1, 1, 1]} : vector<2x16x384xbf16> to vector<2x16x128xbf16>
      %37 = vector.extract_strided_slice %34 {offsets = [0, 0, 256], sizes = [2, 16, 128], strides = [1, 1, 1]} : vector<2x16x384xbf16> to vector<2x16x128xbf16>
      "tpu.trace_start"() <{level = 10 : i32, message = "bqd,bkd->bqk"}> : () -> ()
      %cst_21 = arith.constant dense<0.000000e+00> : vector<2x16x16xf32>
      %38 = tpu.matmul %35, %36, %cst_21 {dimension_numbers = #tpu.dot_dimension_numbers<[2], [2], [1], [1], [0, 0, 0, 1, 1, 1], [0], [0]>} : vector<2x16x128xbf16>, vector<2x16x128xbf16>, vector<2x16x16xf32> -> vector<2x16x16xf32>
      "tpu.trace_stop"() : () -> ()
      %cst_22 = arith.constant dense<0xFF800000> : vector<2x16xf32>
      %39 = vector.multi_reduction <maximumf>, %38, %cst_22 [2] : vector<2x16x16xf32> to vector<2x16xf32>
      %40 = vector.shape_cast %39 : vector<2x16xf32> to vector<2x16x1xf32>
      %41 = vector.broadcast %40 : vector<2x16x1xf32> to vector<2x16x16xf32>
      %42 = arith.subf %38, %41 : vector<2x16x16xf32>
      %43 = math.exp %42 : vector<2x16x16xf32>
      %cst_23 = arith.constant dense<0.000000e+00> : vector<2x16xf32>
      %44 = vector.multi_reduction <add>, %43, %cst_23 [2] : vector<2x16x16xf32> to vector<2x16xf32>
      %45 = vector.shape_cast %44 : vector<2x16xf32> to vector<2x16x1xf32>
      %46 = tpu.reciprocal %45 {approx = true} : vector<2x16x1xf32> -> vector<2x16x1xf32>
      %47 = vector.broadcast %46 : vector<2x16x1xf32> to vector<2x16x16xf32>
      %48 = arith.mulf %43, %47 : vector<2x16x16xf32>
      %49 = arith.truncf %48 : vector<2x16x16xf32> to vector<2x16x16xbf16>
      "tpu.trace_start"() <{level = 10 : i32, message = "bqk,bkd->bqd"}> : () -> ()
      %cst_24 = arith.constant dense<0.000000e+00> : vector<2x16x128xf32>
      %50 = tpu.matmul %49, %37, %cst_24 {dimension_numbers = #tpu.dot_dimension_numbers<[2], [1], [1], [2], [0, 0, 0, 1, 1, 2], [0], [0]>} : vector<2x16x16xbf16>, vector<2x16x128xbf16>, vector<2x16x128xf32> -> vector<2x16x128xf32>
      "tpu.trace_stop"() : () -> ()
      %51 = vector.shape_cast %50 : vector<2x16x128xf32> to vector<32x128xf32>
      %52 = arith.truncf %51 : vector<32x128xf32> to vector<32x128xbf16>
      %c0_25 = arith.constant 0 : index
      %c0_26 = arith.constant 0 : index
      %53 = vector.load %arg19[%c0_25, %c0_26] : memref<32x256xf32, #tpu.memory_space<vmem>>, vector<32x256xf32>
      %c0_27 = arith.constant 0 : index
      %c0_28 = arith.constant 0 : index
      %c0_29 = arith.constant 0 : index
      %c0_30 = arith.constant 0 : index
      %54 = vector.load %arg8[%c0_27, %c0_28, %c0_29, %c0_30] : memref<1x1x128x256xbf16, #tpu.memory_space<vmem>>, vector<1x1x128x256xbf16>
      %55 = vector.shape_cast %54 : vector<1x1x128x256xbf16> to vector<128x256xbf16>
      %cst_31 = arith.constant dense<0.000000e+00> : vector<32x256xf32>
      %56 = tpu.matmul %52, %55, %cst_31 {dimension_numbers = #tpu.dot_dimension_numbers<[1], [0], [0], [1], [0, 0, 1, 1], [], []>} : vector<32x128xbf16>, vector<128x256xbf16>, vector<32x256xf32> -> vector<32x256xf32>
      %57 = arith.addf %53, %56 : vector<32x256xf32>
      %c0_32 = arith.constant 0 : index
      %c0_33 = arith.constant 0 : index
      %58 = vector.load %arg19[%c0_32, %c0_33] : memref<32x256xf32, #tpu.memory_space<vmem>>, vector<32x256xf32>
      tpu.vector_store %arg19[%c0_32, %c0_33], %57 {strides = array<i32>} : memref<32x256xf32, #tpu.memory_space<vmem>>, vector<32x256xf32>,
    } else {
    }
    %c1_i32 = arith.constant 1 : i32
    %11 = arith.cmpi eq, %arg1, %c1_i32 : i32
    %12 = arith.extui %11 : i1 to i32
    %c0_i32_5 = arith.constant 0 : i32
    %13 = arith.cmpi ne, %12, %c0_i32_5 : i32
    scf.if %13 {
      %c0 = arith.constant 0 : index
      %c0_12 = arith.constant 0 : index
      %c0_13 = arith.constant 0 : index
      %25 = vector.load %arg3[%c0, %c0_12, %c0_13] : memref<1x2x512xf32, #tpu.memory_space<vmem>>, vector<1x2x512xf32>
      %26 = vector.shape_cast %25 : vector<1x2x512xf32> to vector<2x512xf32>
      %27 = vector.extract_strided_slice %26 {offsets = [0, 0], sizes = [2, 256], strides = [1, 1]} : vector<2x512xf32> to vector<2x256xf32>
      %28 = vector.shape_cast %27 : vector<2x256xf32> to vector<2x1x256xf32>
      %c0_14 = arith.constant 0 : index
      %c0_15 = arith.constant 0 : index
      %29 = vector.load %arg17[%c0_14, %c0_15] : memref<32x256xf32, #tpu.memory_space<vmem>>, vector<32x256xf32>
      %30 = vector.shape_cast %29 : vector<32x256xf32> to vector<2x16x256xf32>
      %c0_16 = arith.constant 0 : index
      %c0_17 = arith.constant 0 : index
      %31 = vector.load %arg19[%c0_16, %c0_17] : memref<32x256xf32, #tpu.memory_space<vmem>>, vector<32x256xf32>
      %c0_18 = arith.constant 0 : index
      %c0_19 = arith.constant 0 : index
      %c0_20 = arith.constant 0 : index
      %32 = vector.load %arg9[%c0_18, %c0_19, %c0_20] : memref<1x1x256xf32, #tpu.memory_space<vmem>>, vector<1x1x256xf32>
      %33 = vector.shape_cast %32 : vector<1x1x256xf32> to vector<1x256xf32>
      %34 = vector.broadcast %33 : vector<1x256xf32> to vector<32x256xf32>
      %35 = arith.addf %31, %34 : vector<32x256xf32>
      %36 = vector.shape_cast %35 : vector<32x256xf32> to vector<2x16x256xf32>
      %37 = vector.broadcast %28 : vector<2x1x256xf32> to vector<2x16x256xf32>
      %38 = arith.mulf %36, %37 : vector<2x16x256xf32>
      %39 = arith.addf %30, %38 : vector<2x16x256xf32>
      %40 = vector.shape_cast %39 : vector<2x16x256xf32> to vector<32x256xf32>
      %c0_21 = arith.constant 0 : index
      %c0_22 = arith.constant 0 : index
      %41 = vector.load %arg17[%c0_21, %c0_22] : memref<32x256xf32, #tpu.memory_space<vmem>>, vector<32x256xf32>
      tpu.vector_store %arg17[%c0_21, %c0_22], %40 {strides = array<i32>} : memref<32x256xf32, #tpu.memory_space<vmem>>, vector<32x256xf32>,
      %c0_23 = arith.constant 0 : index
      %c0_24 = arith.constant 0 : index
      %c0_25 = arith.constant 0 : index
      %42 = vector.load %arg10[%c0_23, %c0_24, %c0_25] : memref<1x1x256xf32, #tpu.memory_space<vmem>>, vector<1x1x256xf32>
      %43 = vector.shape_cast %42 : vector<1x1x256xf32> to vector<1x256xf32>
      %c0_26 = arith.constant 0 : index
      %c0_27 = arith.constant 0 : index
      %c0_28 = arith.constant 0 : index
      %44 = vector.load %arg11[%c0_26, %c0_27, %c0_28] : memref<1x1x256xf32, #tpu.memory_space<vmem>>, vector<1x1x256xf32>
      %45 = vector.shape_cast %44 : vector<1x1x256xf32> to vector<1x256xf32>
      %cst = arith.constant dense<0.000000e+00> : vector<32xf32>
      %46 = vector.multi_reduction <add>, %40, %cst [1] : vector<32x256xf32> to vector<32xf32>
      %47 = vector.shape_cast %46 : vector<32xf32> to vector<32x1xf32>
      %cst_29 = arith.constant 2.560000e+02 : f32
      %48 = vector.broadcast %cst_29 : f32 to vector<32x1xf32>
      %49 = arith.divf %47, %48 : vector<32x1xf32>
      %50 = vector.broadcast %49 : vector<32x1xf32> to vector<32x256xf32>
      %51 = arith.subf %40, %50 : vector<32x256xf32>
      %52 = arith.mulf %51, %51 : vector<32x256xf32>
      %cst_30 = arith.constant dense<0.000000e+00> : vector<32xf32>
      %53 = vector.multi_reduction <add>, %52, %cst_30 [1] : vector<32x256xf32> to vector<32xf32>
      %54 = vector.shape_cast %53 : vector<32xf32> to vector<32x1xf32>
      %cst_31 = arith.constant 2.560000e+02 : f32
      %55 = vector.broadcast %cst_31 : f32 to vector<32x1xf32>
      %56 = arith.divf %54, %55 : vector<32x1xf32>
      %57 = vector.broadcast %49 : vector<32x1xf32> to vector<32x256xf32>
      %58 = arith.subf %40, %57 : vector<32x256xf32>
      %cst_32 = arith.constant 9.99999997E-7 : f32
      %59 = vector.broadcast %cst_32 : f32 to vector<32x1xf32>
      %60 = arith.addf %56, %59 : vector<32x1xf32>
      %61 = math.rsqrt %60 : vector<32x1xf32>
      %62 = vector.broadcast %61 : vector<32x1xf32> to vector<32x256xf32>
      %63 = arith.mulf %58, %62 : vector<32x256xf32>
      %64 = vector.broadcast %43 : vector<1x256xf32> to vector<32x256xf32>
      %65 = arith.mulf %63, %64 : vector<32x256xf32>
      %66 = vector.broadcast %45 : vector<1x256xf32> to vector<32x256xf32>
      %67 = arith.addf %65, %66 : vector<32x256xf32>
      %68 = arith.truncf %67 : vector<32x256xf32> to vector<32x256xbf16>
      %c0_33 = arith.constant 0 : index
      %c0_34 = arith.constant 0 : index
      %69 = vector.load %arg18[%c0_33, %c0_34] : memref<32x256xbf16, #tpu.memory_space<vmem>>, vector<32x256xbf16>
      tpu.vector_store %arg18[%c0_33, %c0_34], %68 {strides = array<i32>} : memref<32x256xbf16, #tpu.memory_space<vmem>>, vector<32x256xbf16>,
      %cst_35 = arith.constant 0.000000e+00 : f32
      %70 = vector.broadcast %cst_35 : f32 to vector<32x256xf32>
      %c0_36 = arith.constant 0 : index
      %c0_37 = arith.constant 0 : index
      %71 = vector.load %arg19[%c0_36, %c0_37] : memref<32x256xf32, #tpu.memory_space<vmem>>, vector<32x256xf32>
      tpu.vector_store %arg19[%c0_36, %c0_37], %70 {strides = array<i32>} : memref<32x256xf32, #tpu.memory_space<vmem>>, vector<32x256xf32>,
    } else {
    }
    %c2_i32_6 = arith.constant 2 : i32
    %14 = arith.cmpi sge, %arg1, %c2_i32_6 : i32
    %15 = arith.extui %14 : i1 to i32
    %c0_i32_7 = arith.constant 0 : i32
    %16 = arith.cmpi ne, %15, %c0_i32_7 : i32
    scf.if %16 {
      %c0 = arith.constant 0 : index
      %c0_12 = arith.constant 0 : index
      %25 = vector.load %arg18[%c0, %c0_12] : memref<32x256xbf16, #tpu.memory_space<vmem>>, vector<32x256xbf16>
      %c0_13 = arith.constant 0 : index
      %c0_14 = arith.constant 0 : index
      %c0_15 = arith.constant 0 : index
      %26 = vector.load %arg12[%c0_13, %c0_14, %c0_15] : memref<1x256x512xbf16, #tpu.memory_space<vmem>>, vector<1x256x512xbf16>
      %27 = vector.shape_cast %26 : vector<1x256x512xbf16> to vector<256x512xbf16>
      %cst = arith.constant dense<0.000000e+00> : vector<32x512xf32>
      %28 = tpu.matmul %25, %27, %cst {dimension_numbers = #tpu.dot_dimension_numbers<[1], [0], [0], [1], [0, 0, 1, 1], [], []>} : vector<32x256xbf16>, vector<256x512xbf16>, vector<32x512xf32> -> vector<32x512xf32>
      %c0_16 = arith.constant 0 : index
      %c0_17 = arith.constant 0 : index
      %c0_18 = arith.constant 0 : index
      %29 = vector.load %arg13[%c0_16, %c0_17, %c0_18] : memref<1x1x512xf32, #tpu.memory_space<vmem>>, vector<1x1x512xf32>
      %30 = vector.shape_cast %29 : vector<1x1x512xf32> to vector<1x512xf32>
      %31 = vector.broadcast %30 : vector<1x512xf32> to vector<32x512xf32>
      %32 = arith.addf %28, %31 : vector<32x512xf32>
      %33 = arith.negf %32 : vector<32x512xf32>
      %34 = math.exp %33 : vector<32x512xf32>
      %cst_19 = arith.constant 1.000000e+00 : f32
      %35 = vector.broadcast %cst_19 : f32 to vector<32x512xf32>
      %36 = arith.addf %35, %34 : vector<32x512xf32>
      %37 = arith.divf %35, %36 : vector<32x512xf32>
      %38 = arith.mulf %32, %37 : vector<32x512xf32>
      %39 = arith.truncf %38 : vector<32x512xf32> to vector<32x512xbf16>
      %c0_20 = arith.constant 0 : index
      %c0_21 = arith.constant 0 : index
      %40 = vector.load %arg19[%c0_20, %c0_21] : memref<32x256xf32, #tpu.memory_space<vmem>>, vector<32x256xf32>
      %c0_22 = arith.constant 0 : index
      %c0_23 = arith.constant 0 : index
      %c0_24 = arith.constant 0 : index
      %41 = vector.load %arg14[%c0_22, %c0_23, %c0_24] : memref<1x512x256xbf16, #tpu.memory_space<vmem>>, vector<1x512x256xbf16>
      %42 = vector.shape_cast %41 : vector<1x512x256xbf16> to vector<512x256xbf16>
      %cst_25 = arith.constant dense<0.000000e+00> : vector<32x256xf32>
      %43 = tpu.matmul %39, %42, %cst_25 {dimension_numbers = #tpu.dot_dimension_numbers<[1], [0], [0], [1], [0, 0, 1, 1], [], []>} : vector<32x512xbf16>, vector<512x256xbf16>, vector<32x256xf32> -> vector<32x256xf32>
      %44 = arith.addf %40, %43 : vector<32x256xf32>
      %c0_26 = arith.constant 0 : index
      %c0_27 = arith.constant 0 : index
      %45 = vector.load %arg19[%c0_26, %c0_27] : memref<32x256xf32, #tpu.memory_space<vmem>>, vector<32x256xf32>
      tpu.vector_store %arg19[%c0_26, %c0_27], %44 {strides = array<i32>} : memref<32x256xf32, #tpu.memory_space<vmem>>, vector<32x256xf32>,
    } else {
    }
    %c3_i32 = arith.constant 3 : i32
    %17 = arith.cmpi eq, %arg1, %c3_i32 : i32
    %18 = arith.extui %17 : i1 to i32
    %c0_i32_8 = arith.constant 0 : i32
    %19 = arith.cmpi ne, %18, %c0_i32_8 : i32
    scf.if %19 {
      %c0 = arith.constant 0 : index
      %c0_12 = arith.constant 0 : index
      %c0_13 = arith.constant 0 : index
      %25 = vector.load %arg3[%c0, %c0_12, %c0_13] : memref<1x2x512xf32, #tpu.memory_space<vmem>>, vector<1x2x512xf32>
      %26 = vector.shape_cast %25 : vector<1x2x512xf32> to vector<2x512xf32>
      %27 = vector.extract_strided_slice %26 {offsets = [0, 256], sizes = [2, 256], strides = [1, 1]} : vector<2x512xf32> to vector<2x256xf32>
      %28 = vector.shape_cast %27 : vector<2x256xf32> to vector<2x1x256xf32>
      %c0_14 = arith.constant 0 : index
      %c0_15 = arith.constant 0 : index
      %29 = vector.load %arg17[%c0_14, %c0_15] : memref<32x256xf32, #tpu.memory_space<vmem>>, vector<32x256xf32>
      %30 = vector.shape_cast %29 : vector<32x256xf32> to vector<2x16x256xf32>
      %c0_16 = arith.constant 0 : index
      %c0_17 = arith.constant 0 : index
      %31 = vector.load %arg19[%c0_16, %c0_17] : memref<32x256xf32, #tpu.memory_space<vmem>>, vector<32x256xf32>
      %c0_18 = arith.constant 0 : index
      %c0_19 = arith.constant 0 : index
      %c0_20 = arith.constant 0 : index
      %32 = vector.load %arg15[%c0_18, %c0_19, %c0_20] : memref<1x1x256xf32, #tpu.memory_space<vmem>>, vector<1x1x256xf32>
      %33 = vector.shape_cast %32 : vector<1x1x256xf32> to vector<1x256xf32>
      %34 = vector.broadcast %33 : vector<1x256xf32> to vector<32x256xf32>
      %35 = arith.addf %31, %34 : vector<32x256xf32>
      %36 = vector.shape_cast %35 : vector<32x256xf32> to vector<2x16x256xf32>
      %37 = vector.broadcast %28 : vector<2x1x256xf32> to vector<2x16x256xf32>
      %38 = arith.mulf %36, %37 : vector<2x16x256xf32>
      %39 = arith.addf %30, %38 : vector<2x16x256xf32>
      %40 = vector.shape_cast %39 : vector<2x16x256xf32> to vector<32x256xf32>
      %c0_21 = arith.constant 0 : index
      %c0_22 = arith.constant 0 : index
      %41 = vector.load %arg17[%c0_21, %c0_22] : memref<32x256xf32, #tpu.memory_space<vmem>>, vector<32x256xf32>
      tpu.vector_store %arg17[%c0_21, %c0_22], %40 {strides = array<i32>} : memref<32x256xf32, #tpu.memory_space<vmem>>, vector<32x256xf32>,
    } else {
    }
    %c3_i32_9 = arith.constant 3 : i32
    %20 = arith.cmpi eq, %arg1, %c3_i32_9 : i32
    %c1_i32_10 = arith.constant 1 : i32
    %21 = arith.cmpi eq, %arg0, %c1_i32_10 : i32
    %22 = arith.andi %20, %21 : i1
    %23 = arith.extui %22 : i1 to i32
    %c0_i32_11 = arith.constant 0 : i32
    %24 = arith.cmpi ne, %23, %c0_i32_11 : i32
    scf.if %24 {
      %c0 = arith.constant 0 : index
      %c0_12 = arith.constant 0 : index
      %25 = vector.load %arg17[%c0, %c0_12] : memref<32x256xf32, #tpu.memory_space<vmem>>, vector<32x256xf32>
      %c0_13 = arith.constant 0 : index
      %c0_14 = arith.constant 0 : index
      %26 = vector.load %arg16[%c0_13, %c0_14] : memref<32x256xf32, #tpu.memory_space<vmem>>, vector<32x256xf32>
      tpu.vector_store %arg16[%c0_13, %c0_14], %25 {strides = array<i32>} : memref<32x256xf32, #tpu.memory_space<vmem>>, vector<32x256xf32>,
    } else {
    }
    return
  }
  func.func @transform_0(%arg0: i32, %arg1: i32) -> (i32, i32) {
    %c0_i32 = arith.constant 0 : i32
    %c0_i32_0 = arith.constant 0 : i32
    %c0_i32_1 = arith.constant 0 : i32
    return %c0_i32, %c0_i32_0 : i32, i32
  }
  func.func @transform_1(%arg0: i32, %arg1: i32) -> (i32, i32, i32) {
    %c0_i32 = arith.constant 0 : i32
    %c0_i32_0 = arith.constant 0 : i32
    %c0_i32_1 = arith.constant 0 : i32
    return %arg0, %c0_i32, %c0_i32_0 : i32, i32, i32
  }
  func.func @transform_2(%arg0: i32, %arg1: i32) -> (i32, i32, i32) {
    %c0_i32 = arith.constant 0 : i32
    %c0_i32_0 = arith.constant 0 : i32
    %c0_i32_1 = arith.constant 0 : i32
    return %arg0, %c0_i32, %c0_i32_0 : i32, i32, i32
  }
  func.func @transform_3(%arg0: i32, %arg1: i32) -> (i32, i32, i32) {
    %c0_i32 = arith.constant 0 : i32
    %c0_i32_0 = arith.constant 0 : i32
    %c0_i32_1 = arith.constant 0 : i32
    return %arg0, %c0_i32, %c0_i32_0 : i32, i32, i32
  }
  func.func @transform_4(%arg0: i32, %arg1: i32) -> (i32, i32, i32, i32) {
    %c1_i32 = arith.constant 1 : i32
    %0 = arith.minsi %arg1, %c1_i32 : i32
    %c0_i32 = arith.constant 0 : i32
    %c0_i32_0 = arith.constant 0 : i32
    %c0_i32_1 = arith.constant 0 : i32
    return %arg0, %0, %c0_i32, %c0_i32_0 : i32, i32, i32, i32
  }
  func.func @transform_5(%arg0: i32, %arg1: i32) -> (i32, i32, i32, i32) {
    %c1_i32 = arith.constant 1 : i32
    %0 = arith.minsi %arg1, %c1_i32 : i32
    %c0_i32 = arith.constant 0 : i32
    %c0_i32_0 = arith.constant 0 : i32
    %c0_i32_1 = arith.constant 0 : i32
    return %arg0, %0, %c0_i32, %c0_i32_0 : i32, i32, i32, i32
  }
  func.func @transform_6(%arg0: i32, %arg1: i32) -> (i32, i32, i32, i32) {
    %c1_i32 = arith.constant 1 : i32
    %0 = arith.minsi %arg1, %c1_i32 : i32
    %c0_i32 = arith.constant 0 : i32
    %c0_i32_0 = arith.constant 0 : i32
    %c0_i32_1 = arith.constant 0 : i32
    return %arg0, %0, %c0_i32, %c0_i32_0 : i32, i32, i32, i32
  }
  func.func @transform_7(%arg0: i32, %arg1: i32) -> (i32, i32, i32) {
    %c0_i32 = arith.constant 0 : i32
    %c0_i32_0 = arith.constant 0 : i32
    %c0_i32_1 = arith.constant 0 : i32
    return %arg0, %c0_i32, %c0_i32_0 : i32, i32, i32
  }
  func.func @transform_8(%arg0: i32, %arg1: i32) -> (i32, i32, i32) {
    %c0_i32 = arith.constant 0 : i32
    %c0_i32_0 = arith.constant 0 : i32
    %c0_i32_1 = arith.constant 0 : i32
    return %arg0, %c0_i32, %c0_i32_0 : i32, i32, i32
  }
  func.func @transform_9(%arg0: i32, %arg1: i32) -> (i32, i32, i32) {
    %c0_i32 = arith.constant 0 : i32
    %c0_i32_0 = arith.constant 0 : i32
    %c0_i32_1 = arith.constant 0 : i32
    return %arg0, %c0_i32, %c0_i32_0 : i32, i32, i32
  }
  func.func @transform_10(%arg0: i32, %arg1: i32) -> (i32, i32, i32) {
    %c2_i32 = arith.constant 2 : i32
    %0 = arith.subi %arg1, %c2_i32 : i32
    %c0_i32 = arith.constant 0 : i32
    %c1_i32 = arith.constant 1 : i32
    %1 = arith.maxsi %c0_i32, %0 : i32
    %2 = arith.minsi %c1_i32, %1 : i32
    %c0_i32_0 = arith.constant 0 : i32
    %c0_i32_1 = arith.constant 0 : i32
    return %arg0, %c0_i32_0, %2 : i32, i32, i32
  }
  func.func @transform_11(%arg0: i32, %arg1: i32) -> (i32, i32, i32) {
    %c2_i32 = arith.constant 2 : i32
    %0 = arith.subi %arg1, %c2_i32 : i32
    %c0_i32 = arith.constant 0 : i32
    %c1_i32 = arith.constant 1 : i32
    %1 = arith.maxsi %c0_i32, %0 : i32
    %2 = arith.minsi %c1_i32, %1 : i32
    %c0_i32_0 = arith.constant 0 : i32
    %c0_i32_1 = arith.constant 0 : i32
    return %arg0, %c0_i32_0, %2 : i32, i32, i32
  }
  func.func @transform_12(%arg0: i32, %arg1: i32) -> (i32, i32, i32) {
    %c2_i32 = arith.constant 2 : i32
    %0 = arith.subi %arg1, %c2_i32 : i32
    %c0_i32 = arith.constant 0 : i32
    %c1_i32 = arith.constant 1 : i32
    %1 = arith.maxsi %c0_i32, %0 : i32
    %2 = arith.minsi %c1_i32, %1 : i32
    %c0_i32_0 = arith.constant 0 : i32
    %c0_i32_1 = arith.constant 0 : i32
    return %arg0, %2, %c0_i32_0 : i32, i32, i32
  }
  func.func @transform_13(%arg0: i32, %arg1: i32) -> (i32, i32, i32) {
    %c0_i32 = arith.constant 0 : i32
    %c0_i32_0 = arith.constant 0 : i32
    %c0_i32_1 = arith.constant 0 : i32
    return %arg0, %c0_i32, %c0_i32_0 : i32, i32, i32
  }
  func.func @transform_14(%arg0: i32, %arg1: i32) -> (i32, i32) {
    %c0_i32 = arith.constant 0 : i32
    %c0_i32_0 = arith.constant 0 : i32
    %c0_i32_1 = arith.constant 0 : i32
    return %c0_i32, %c0_i32_0 : i32, i32
  }
}

</mosaic_0001>

<llo_original>
// kernel: tpu_custom_call.1
$region0: #{tpu_custom_call.1}
  #allocation0 [shape = 'u32[]', space=smem, size = 0x4, offset = 0x4, fixed_abs, tag = 'smem constant byte address 0x4 - core index']
  #allocation1 [shape = 'u32[144,128]{1,0:T(1,128)}', space=vmem, size = 0x12000, scoped, tag = 'internal scratch']
  #allocation2 [shape = 'f32[32,256]{1,0:T(8,128)}', space=vmem, size = 0x8000, scoped, tag = 'scratch operand']
  #allocation3 [shape = 'bf16[32,256]{1,0:T(8,128)(2,1)}', space=vmem, size = 0x4000, scoped, tag = 'scratch operand']
  #allocation4 [shape = 'f32[32,256]{1,0:T(8,128)}', space=vmem, size = 0x8000, scoped, tag = 'scratch operand']
  %s0 = inlined_call_operand.hbm [shape: f32[32,256], index: 0, kind: input, shape index: {}]
  %s1 = inlined_call_operand.hbm [shape: f32[2,2,512], index: 1, kind: input, shape index: {}]
  %s2 = inlined_call_operand.hbm [shape: f32[2,1,256], index: 2, kind: input, shape index: {}]
  %s3 = inlined_call_operand.vmem [shape: f32[2,1,256], index: 3, kind: input, shape index: {}]
  %s4 = inlined_call_operand.hbm [shape: bf16[2,2,256,384], index: 4, kind: input, shape index: {}]
  %s5 = inlined_call_operand.hbm [shape: f32[2,2,1,384], index: 5, kind: input, shape index: {}]
  %s6 = inlined_call_operand.hbm [shape: bf16[2,2,128,256], index: 6, kind: input, shape index: {}]
  %s7 = inlined_call_operand.hbm [shape: f32[2,1,256], index: 7, kind: input, shape index: {}]
  %s8 = inlined_call_operand.hbm [shape: f32[2,1,256], index: 8, kind: input, shape index: {}]
  %s9 = inlined_call_operand.hbm [shape: f32[2,1,256], index: 9, kind: input, shape index: {}]
  %s10 = inlined_call_operand.hbm [shape: bf16[2,256,1024], index: 10, kind: input, shape index: {}]
  %s11 = inlined_call_operand.vmem [shape: f32[2,1,1024], index: 11, kind: input, shape index: {}]
  %s12 = inlined_call_operand.hbm [shape: bf16[2,1024,256], index: 12, kind: input, shape index: {}]
  %s13 = inlined_call_operand.hbm [shape: f32[2,1,256], index: 13, kind: input, shape index: {}]
  %s14 = inlined_call_operand.hbm [shape: f32[32,256], index: 14, kind: output, shape index: {}]
  %s15 = sld [smem:[#allocation0]]
  $region165: #{tpu_custom_call.1} parent=0
    _
  %s17 = ssub.s32 1, %s15
  %s18 = scalar_select 0, %s17, %s15
  $region1: #{tpu_custom_call.1} parent=0
    #allocation5 [shape = 'u8[32768]{0}', space=vmem, size = 0x8000, scoped, tag = 'input window, operand 0, single buffered']
    #allocation6 [shape = 's32[2]{0}', space=sflag, size = 0x8, scoped, tag = 'scoped memory for tpu_custom_call.1']
    #allocation7 [shape = 's32[2]{0}', space=sflag, size = 0x8, scoped, tag = 'scoped memory for tpu_custom_call.1']
    #allocation8 [shape = 'u8[8192]{0}', space=vmem, size = 0x2000, scoped, tag = 'input window, operand 1']
    #allocation9 [shape = 's32[2]{0}', space=sflag, size = 0x8, scoped, tag = 'scoped memory for tpu_custom_call.1']
    #allocation10 [shape = 'u8[2048]{0}', space=vmem, size = 0x800, scoped, tag = 'input window, operand 2']
    #allocation11 [shape = 'u8[393216]{0}', space=vmem, size = 0x60000, scoped, tag = 'input window, operand 4']
    #allocation12 [shape = 's32[2]{0}', space=sflag, size = 0x8, scoped, tag = 'scoped memory for tpu_custom_call.1']
    #allocation13 [shape = 'u8[3072]{0}', space=vmem, size = 0xc00, scoped, tag = 'input window, operand 5']
    #allocation14 [shape = 'u8[131072]{0}', space=vmem, size = 0x20000, scoped, tag = 'input window, operand 6']
    #allocation15 [shape = 's32[2]{0}', space=sflag, size = 0x8, scoped, tag = 'scoped memory for tpu_custom_call.1']
    #allocation16 [shape = 'u8[2048]{0}', space=vmem, size = 0x800, scoped, tag = 'input window, operand 7']
    #allocation17 [shape = 'u8[2048]{0}', space=vmem, size = 0x800, scoped, tag = 'input window, operand 8']
    #allocation18 [shape = 's32[2]{0}', space=sflag, size = 0x8, scoped, tag = 'scoped memory for tpu_custom_call.1']
    #allocation19 [shape = 'u8[2048]{0}', space=vmem, size = 0x800, scoped, tag = 'input window, operand 9']
    #allocation20 [shape = 'u8[524288]{0}', space=vmem, size = 0x80000, scoped, tag = 'input window, operand 10']
    #allocation21 [shape = 's32[2]{0}', space=sflag, size = 0x8, scoped, tag = 'scoped memory for tpu_custom_call.1']
    #allocation22 [shape = 'u8[524288]{0}', space=vmem, size = 0x80000, scoped, tag = 'input window, operand 12']
    #allocation23 [shape = 'u8[2048]{0}', space=vmem, size = 0x800, scoped, tag = 'input window, operand 13']
    #allocation24 [shape = 's32[2]{0}', space=sflag, size = 0x8, scoped, tag = 'scoped memory for tpu_custom_call.1']
    #allocation25 [shape = 'u8[32768]{0}', space=vmem, size = 0x8000, scoped, tag = 'output window, operand 0, single buffered']
    %19 = vsyncpa [#allocation6], 0
    %20 = vsyncpa [#allocation9], 0
    %s21 = scalar_lea.sflag [#allocation9], 1
    %22 = vsyncpa %s21, 0
    %23 = vsyncpa [#allocation12], 0
    %s24 = scalar_lea.sflag [#allocation12], 1
    %25 = vsyncpa %s24, 0
    %26 = vsyncpa [#allocation15], 0
    %s27 = scalar_lea.sflag [#allocation15], 1
    %28 = vsyncpa %s27, 0
    %29 = vsyncpa [#allocation18], 0
    %s30 = scalar_lea.sflag [#allocation18], 1
    %31 = vsyncpa %s30, 0
    %32 = vsyncpa [#allocation21], 0
    %s33 = scalar_lea.sflag [#allocation21], 1
    %34 = vsyncpa %s33, 0
    %35 = vsyncpa [#allocation24], 0
    %s36 = scalar_lea.sflag [#allocation24], 1
    %37 = vsyncpa %s36, 0
    %38 = vsyncpa [#allocation7], 0
    loop: start=0, step=1, limit=10
    $region2: #{tpu_custom_call.1} parent=1 // loop_pre_header
      _
    $region3: #{tpu_custom_call.1} parent=1 // loop_header
      %s40 = sphi 0, %s44
      %p41 = scmp.ge.s32.totalorder %s40, 10
      %s47 = sphi 0, %s59
      %s48 = sphi 0, %s55
      %s49 = sphi 0, %s47
      %s50 = sphi 0, %s48
      %s51 = sphi 0, %s49
      %s52 = sphi 0, %s50
      %s60 = sphi 0, %s60
      %s62 = sphi 0, %s60
      %s63 = sphi 0, %s62
      %s77 = sphi 0, %s63
      %s83 = sphi 0, %s85
      %s86 = sphi 0, %s83
      %s87 = sphi 0, %s86
      %s103 = sphi 0, %s87
      %s109 = sphi 0, %s111
      %s112 = sphi 0, %s109
      %s113 = sphi 0, %s112
      %s129 = sphi 0, %s113
      %s135 = sphi 0, %s137
      %s138 = sphi 0, %s135
      %s139 = sphi 0, %s138
      %s155 = sphi 0, %s139
      %s167 = sphi 0, %s169
      %s170 = sphi 0, %s167
      %s171 = sphi 0, %s170
      %s187 = sphi 0, %s171
      %s199 = sphi 0, %s201
      %s202 = sphi 0, %s199
      %s203 = sphi 0, %s202
      %s219 = sphi 0, %s203
      %s231 = sphi 0, %s233
      %s234 = sphi 0, %s231
      %s235 = sphi 0, %s234
      %s251 = sphi 0, %s235
      %s257 = sphi 0, %s259
      %s260 = sphi 0, %s257
      %s261 = sphi 0, %s260
      %s277 = sphi 0, %s261
      %s283 = sphi 0, %s285
      %s286 = sphi 0, %s283
      %s287 = sphi 0, %s286
      %s303 = sphi 0, %s287
      %s309 = sphi 0, %s311
      %s312 = sphi 0, %s309
      %s313 = sphi 0, %s312
      %s329 = sphi 0, %s313
      %s347 = sphi 0, %s349
      %s350 = sphi 0, %s347
      %s351 = sphi 0, %s350
      %s367 = sphi 0, %s351
      %s385 = sphi 0, %s387
      %s388 = sphi 0, %s385
      %s389 = sphi 0, %s388
      %s405 = sphi 0, %s389
      %s423 = sphi 0, %s425
      %s426 = sphi 0, %s423
      %s427 = sphi 0, %s426
      %s443 = sphi 0, %s427
      %s449 = sphi 0, %s451
      %s452 = sphi 0, %s449
      %s453 = sphi 0, %s452
      %s469 = sphi 0, %s453
      %s473 = sphi 0, %s473
      %s475 = sphi 0, %s473
      %s476 = sphi 0, %s475
      %s490 = sphi 0, %s476
    $region4: #{tpu_custom_call.1} parent=1 // loop_header_branch
      %43 = sbr.rel (%p41) target = $region8
    $region5: #{tpu_custom_call.1} parent=1 // loop_body
      %s45 = ssub.s32 %s40, 1
      %s46 = ssub.s32 %s40, 2
      %s53 = sadd.s32 1, %s48
      %p54 = scmp.ge.s32.totalorder %s53, 4
      %s55 = scalar_select %p54, 0, %s53
      %s56 = sadd.s32 1, %s47
      %s57 = scalar_select %p54, %s56, %s47
      %p58 = scmp.ge.s32.totalorder %s57, 2
      %s59 = scalar_select %p58, 0, %s57
      %s61 = sadd.s32 %s60, 1
      %p64 = scmp.eq.s32.totalorder %s40, 7
      %p65 = scmp.ne.s32.totalorder %s60, %s62
      %p66 = scmp.eq.s32.totalorder %s40, 0
      %p67 = por %p65, %p66
      %p68 = scmp.ne.s32.totalorder %s60, %s62
      %p69 = scmp.eq.s32.totalorder %s45, 7
      %p70 = por %p68, %p69
      %p71 = scmp.ne.s32.totalorder %s62, %s63
      %p72 = scmp.eq.s32.totalorder %s45, 0
      %p73 = por %p71, %p72
      %p74 = scmp.ne.s32.totalorder %s62, %s63
      %p75 = scmp.eq.s32.totalorder %s46, 7
      %p76 = por %p74, %p75
      %p78 = scmp.ne.s32.totalorder %s63, %s77
      %p79 = scmp.eq.s32.totalorder %s46, 0
      %p80 = por %p78, %p79
      %s81 = ssub.s32 %s47, %s59
      %p82 = scmp.eq.s32.totalorder %s81, 0
      %s84 = sadd.s32 %s83, 1
      %s85 = scalar_select %p82, %s83, %s84
      %p88 = pneg %p82
      %p89 = scmp.eq.s32.totalorder %s40, 7
      %p90 = por %p88, %p89
      %p91 = scmp.ne.s32.totalorder %s83, %s86
      %p92 = scmp.eq.s32.totalorder %s40, 0
      %p93 = por %p91, %p92
      %p94 = scmp.ne.s32.totalorder %s83, %s86
      %p95 = scmp.eq.s32.totalorder %s45, 7
      %p96 = por %p94, %p95
      %p97 = scmp.ne.s32.totalorder %s86, %s87
      %p98 = scmp.eq.s32.totalorder %s45, 0
      %p99 = por %p97, %p98
      %p100 = scmp.ne.s32.totalorder %s86, %s87
      %p101 = scmp.eq.s32.totalorder %s46, 7
      %p102 = por %p100, %p101
      %p104 = scmp.ne.s32.totalorder %s87, %s103
      %p105 = scmp.eq.s32.totalorder %s46, 0
      %p106 = por %p104, %p105
      %s107 = ssub.s32 %s47, %s59
      %p108 = scmp.eq.s32.totalorder %s107, 0
      %s110 = sadd.s32 %s109, 1
      %s111 = scalar_select %p108, %s109, %s110
      %p114 = pneg %p108
      %p115 = scmp.eq.s32.totalorder %s40, 7
      %p116 = por %p114, %p115
      %p117 = scmp.ne.s32.totalorder %s109, %s112
      %p118 = scmp.eq.s32.totalorder %s40, 0
      %p119 = por %p117, %p118
      %p120 = scmp.ne.s32.totalorder %s109, %s112
      %p121 = scmp.eq.s32.totalorder %s45, 7
      %p122 = por %p120, %p121
      %p123 = scmp.ne.s32.totalorder %s112, %s113
      %p124 = scmp.eq.s32.totalorder %s45, 0
      %p125 = por %p123, %p124
      %p126 = scmp.ne.s32.totalorder %s112, %s113
      %p127 = scmp.eq.s32.totalorder %s46, 7
      %p128 = por %p126, %p127
      %p130 = scmp.ne.s32.totalorder %s113, %s129
      %p131 = scmp.eq.s32.totalorder %s46, 0
      %p132 = por %p130, %p131
      %s133 = ssub.s32 %s47, %s59
      %p134 = scmp.eq.s32.totalorder %s133, 0
      %s136 = sadd.s32 %s135, 1
      %s137 = scalar_select %p134, %s135, %s136
      %p140 = pneg %p134
      %p141 = scmp.eq.s32.totalorder %s40, 7
      %p142 = por %p140, %p141
      %p143 = scmp.ne.s32.totalorder %s135, %s138
      %p144 = scmp.eq.s32.totalorder %s40, 0
      %p145 = por %p143, %p144
      %p146 = scmp.ne.s32.totalorder %s135, %s138
      %p147 = scmp.eq.s32.totalorder %s45, 7
      %p148 = por %p146, %p147
      %p149 = scmp.ne.s32.totalorder %s138, %s139
      %p150 = scmp.eq.s32.totalorder %s45, 0
      %p151 = por %p149, %p150
      %p152 = scmp.ne.s32.totalorder %s138, %s139
      %p153 = scmp.eq.s32.totalorder %s46, 7
      %p154 = por %p152, %p153
      %p156 = scmp.ne.s32.totalorder %s139, %s155
      %p157 = scmp.eq.s32.totalorder %s46, 0
      %p158 = por %p156, %p157
      %p159 = scmp.lt.s32.totalorder %s48, 1
      %s160 = scalar_select %p159, %s48, 1
      %p161 = scmp.lt.s32.totalorder %s55, 1
      %s162 = scalar_select %p161, %s55, 1
      %s163 = ssub.s32 %s47, %s59
      %s164 = ssub.s32 %s160, %s162
      %s165 = sor.u32 %s163, %s164
      %p166 = scmp.eq.s32.totalorder %s165, 0
      %s168 = sadd.s32 %s167, 1
      %s169 = scalar_select %p166, %s167, %s168
      %p172 = pneg %p166
      %p173 = scmp.eq.s32.totalorder %s40, 7
      %p174 = por %p172, %p173
      %p175 = scmp.ne.s32.totalorder %s167, %s170
      %p176 = scmp.eq.s32.totalorder %s40, 0
      %p177 = por %p175, %p176
      %p178 = scmp.ne.s32.totalorder %s167, %s170
      %p179 = scmp.eq.s32.totalorder %s45, 7
      %p180 = por %p178, %p179
      %p181 = scmp.ne.s32.totalorder %s170, %s171
      %p182 = scmp.eq.s32.totalorder %s45, 0
      %p183 = por %p181, %p182
      %p184 = scmp.ne.s32.totalorder %s170, %s171
      %p185 = scmp.eq.s32.totalorder %s46, 7
      %p186 = por %p184, %p185
      %p188 = scmp.ne.s32.totalorder %s171, %s187
      %p189 = scmp.eq.s32.totalorder %s46, 0
      %p190 = por %p188, %p189
      %p191 = scmp.lt.s32.totalorder %s48, 1
      %s192 = scalar_select %p191, %s48, 1
      %p193 = scmp.lt.s32.totalorder %s55, 1
      %s194 = scalar_select %p193, %s55, 1
      %s195 = ssub.s32 %s47, %s59
      %s196 = ssub.s32 %s192, %s194
      %s197 = sor.u32 %s195, %s196
      %p198 = scmp.eq.s32.totalorder %s197, 0
      %s200 = sadd.s32 %s199, 1
      %s201 = scalar_select %p198, %s199, %s200
      %p204 = pneg %p198
      %p205 = scmp.eq.s32.totalorder %s40, 7
      %p206 = por %p204, %p205
      %p207 = scmp.ne.s32.totalorder %s199, %s202
      %p208 = scmp.eq.s32.totalorder %s40, 0
      %p209 = por %p207, %p208
      %p210 = scmp.ne.s32.totalorder %s199, %s202
      %p211 = scmp.eq.s32.totalorder %s45, 7
      %p212 = por %p210, %p211
      %p213 = scmp.ne.s32.totalorder %s202, %s203
      %p214 = scmp.eq.s32.totalorder %s45, 0
      %p215 = por %p213, %p214
      %p216 = scmp.ne.s32.totalorder %s202, %s203
      %p217 = scmp.eq.s32.totalorder %s46, 7
      %p218 = por %p216, %p217
      %p220 = scmp.ne.s32.totalorder %s203, %s219
      %p221 = scmp.eq.s32.totalorder %s46, 0
      %p222 = por %p220, %p221
      %p223 = scmp.lt.s32.totalorder %s48, 1
      %s224 = scalar_select %p223, %s48, 1
      %p225 = scmp.lt.s32.totalorder %s55, 1
      %s226 = scalar_select %p225, %s55, 1
      %s227 = ssub.s32 %s47, %s59
      %s228 = ssub.s32 %s224, %s226
      %s229 = sor.u32 %s227, %s228
      %p230 = scmp.eq.s32.totalorder %s229, 0
      %s232 = sadd.s32 %s231, 1
      %s233 = scalar_select %p230, %s231, %s232
      %p236 = pneg %p230
      %p237 = scmp.eq.s32.totalorder %s40, 7
      %p238 = por %p236, %p237
      %p239 = scmp.ne.s32.totalorder %s231, %s234
      %p240 = scmp.eq.s32.totalorder %s40, 0
      %p241 = por %p239, %p240
      %p242 = scmp.ne.s32.totalorder %s231, %s234
      %p243 = scmp.eq.s32.totalorder %s45, 7
      %p244 = por %p242, %p243
      %p245 = scmp.ne.s32.totalorder %s234, %s235
      %p246 = scmp.eq.s32.totalorder %s45, 0
      %p247 = por %p245, %p246
      %p248 = scmp.ne.s32.totalorder %s234, %s235
      %p249 = scmp.eq.s32.totalorder %s46, 7
      %p250 = por %p248, %p249
      %p252 = scmp.ne.s32.totalorder %s235, %s251
      %p253 = scmp.eq.s32.totalorder %s46, 0
      %p254 = por %p252, %p253
      %s255 = ssub.s32 %s47, %s59
      %p256 = scmp.eq.s32.totalorder %s255, 0
      %s258 = sadd.s32 %s257, 1
      %s259 = scalar_select %p256, %s257, %s258
      %p262 = pneg %p256
      %p263 = scmp.eq.s32.totalorder %s40, 7
      %p264 = por %p262, %p263
      %p265 = scmp.ne.s32.totalorder %s257, %s260
      %p266 = scmp.eq.s32.totalorder %s40, 0
      %p267 = por %p265, %p266
      %p268 = scmp.ne.s32.totalorder %s257, %s260
      %p269 = scmp.eq.s32.totalorder %s45, 7
      %p270 = por %p268, %p269
      %p271 = scmp.ne.s32.totalorder %s260, %s261
      %p272 = scmp.eq.s32.totalorder %s45, 0
      %p273 = por %p271, %p272
      %p274 = scmp.ne.s32.totalorder %s260, %s261
      %p275 = scmp.eq.s32.totalorder %s46, 7
      %p276 = por %p274, %p275
      %p278 = scmp.ne.s32.totalorder %s261, %s277
      %p279 = scmp.eq.s32.totalorder %s46, 0
      %p280 = por %p278, %p279
      %s281 = ssub.s32 %s47, %s59
      %p282 = scmp.eq.s32.totalorder %s281, 0
      %s284 = sadd.s32 %s283, 1
      %s285 = scalar_select %p282, %s283, %s284
      %p288 = pneg %p282
      %p289 = scmp.eq.s32.totalorder %s40, 7
      %p290 = por %p288, %p289
      %p291 = scmp.ne.s32.totalorder %s283, %s286
      %p292 = scmp.eq.s32.totalorder %s40, 0
      %p293 = por %p291, %p292
      %p294 = scmp.ne.s32.totalorder %s283, %s286
      %p295 = scmp.eq.s32.totalorder %s45, 7
      %p296 = por %p294, %p295
      %p297 = scmp.ne.s32.totalorder %s286, %s287
      %p298 = scmp.eq.s32.totalorder %s45, 0
      %p299 = por %p297, %p298
      %p300 = scmp.ne.s32.totalorder %s286, %s287
      %p301 = scmp.eq.s32.totalorder %s46, 7
      %p302 = por %p300, %p301
      %p304 = scmp.ne.s32.totalorder %s287, %s303
      %p305 = scmp.eq.s32.totalorder %s46, 0
      %p306 = por %p304, %p305
      %s307 = ssub.s32 %s47, %s59
      %p308 = scmp.eq.s32.totalorder %s307, 0
      %s310 = sadd.s32 %s309, 1
      %s311 = scalar_select %p308, %s309, %s310
      %p314 = pneg %p308
      %p315 = scmp.eq.s32.totalorder %s40, 7
      %p316 = por %p314, %p315
      %p317 = scmp.ne.s32.totalorder %s309, %s312
      %p318 = scmp.eq.s32.totalorder %s40, 0
      %p319 = por %p317, %p318
      %p320 = scmp.ne.s32.totalorder %s309, %s312
      %p321 = scmp.eq.s32.totalorder %s45, 7
      %p322 = por %p320, %p321
      %p323 = scmp.ne.s32.totalorder %s312, %s313
      %p324 = scmp.eq.s32.totalorder %s45, 0
      %p325 = por %p323, %p324
      %p326 = scmp.ne.s32.totalorder %s312, %s313
      %p327 = scmp.eq.s32.totalorder %s46, 7
      %p328 = por %p326, %p327
      %p330 = scmp.ne.s32.totalorder %s313, %s329
      %p331 = scmp.eq.s32.totalorder %s46, 0
      %p332 = por %p330, %p331
      %s333 = ssub.s32 %s48, 2
      %p334 = scmp.gt.s32.totalorder %s333, 0
      %s335 = scalar_select %p334, %s333, 0
      %p336 = scmp.lt.s32.totalorder %s335, 1
      %s337 = scalar_select %p336, %s335, 1
      %s338 = ssub.s32 %s55, 2
      %p339 = scmp.gt.s32.totalorder %s338, 0
      %s340 = scalar_select %p339, %s338, 0
      %p341 = scmp.lt.s32.totalorder %s340, 1
      %s342 = scalar_select %p341, %s340, 1
      %s343 = ssub.s32 %s47, %s59
      %s344 = ssub.s32 %s337, %s342
      %s345 = sor.u32 %s343, %s344
      %p346 = scmp.eq.s32.totalorder %s345, 0
      %s348 = sadd.s32 %s347, 1
      %s349 = scalar_select %p346, %s347, %s348
      %p352 = pneg %p346
      %p353 = scmp.eq.s32.totalorder %s40, 7
      %p354 = por %p352, %p353
      %p355 = scmp.ne.s32.totalorder %s347, %s350
      %p356 = scmp.eq.s32.totalorder %s40, 0
      %p357 = por %p355, %p356
      %p358 = scmp.ne.s32.totalorder %s347, %s350
      %p359 = scmp.eq.s32.totalorder %s45, 7
      %p360 = por %p358, %p359
      %p361 = scmp.ne.s32.totalorder %s350, %s351
      %p362 = scmp.eq.s32.totalorder %s45, 0
      %p363 = por %p361, %p362
      %p364 = scmp.ne.s32.totalorder %s350, %s351
      %p365 = scmp.eq.s32.totalorder %s46, 7
      %p366 = por %p364, %p365
      %p368 = scmp.ne.s32.totalorder %s351, %s367
      %p369 = scmp.eq.s32.totalorder %s46, 0
      %p370 = por %p368, %p369
      %s371 = ssub.s32 %s48, 2
      %p372 = scmp.gt.s32.totalorder %s371, 0
      %s373 = scalar_select %p372, %s371, 0
      %p374 = scmp.lt.s32.totalorder %s373, 1
      %s375 = scalar_select %p374, %s373, 1
      %s376 = ssub.s32 %s55, 2
      %p377 = scmp.gt.s32.totalorder %s376, 0
      %s378 = scalar_select %p377, %s376, 0
      %p379 = scmp.lt.s32.totalorder %s378, 1
      %s380 = scalar_select %p379, %s378, 1
      %s381 = ssub.s32 %s47, %s59
      %s382 = ssub.s32 %s375, %s380
      %s383 = sor.u32 %s381, %s382
      %p384 = scmp.eq.s32.totalorder %s383, 0
      %s386 = sadd.s32 %s385, 1
      %s387 = scalar_select %p384, %s385, %s386
      %p390 = pneg %p384
      %p391 = scmp.eq.s32.totalorder %s40, 7
      %p392 = por %p390, %p391
      %p393 = scmp.ne.s32.totalorder %s385, %s388
      %p394 = scmp.eq.s32.totalorder %s40, 0
      %p395 = por %p393, %p394
      %p396 = scmp.ne.s32.totalorder %s385, %s388
      %p397 = scmp.eq.s32.totalorder %s45, 7
      %p398 = por %p396, %p397
      %p399 = scmp.ne.s32.totalorder %s388, %s389
      %p400 = scmp.eq.s32.totalorder %s45, 0
      %p401 = por %p399, %p400
      %p402 = scmp.ne.s32.totalorder %s388, %s389
      %p403 = scmp.eq.s32.totalorder %s46, 7
      %p404 = por %p402, %p403
      %p406 = scmp.ne.s32.totalorder %s389, %s405
      %p407 = scmp.eq.s32.totalorder %s46, 0
      %p408 = por %p406, %p407
      %s409 = ssub.s32 %s48, 2
      %p410 = scmp.gt.s32.totalorder %s409, 0
      %s411 = scalar_select %p410, %s409, 0
      %p412 = scmp.lt.s32.totalorder %s411, 1
      %s413 = scalar_select %p412, %s411, 1
      %s414 = ssub.s32 %s55, 2
      %p415 = scmp.gt.s32.totalorder %s414, 0
      %s416 = scalar_select %p415, %s414, 0
      %p417 = scmp.lt.s32.totalorder %s416, 1
      %s418 = scalar_select %p417, %s416, 1
      %s419 = ssub.s32 %s47, %s59
      %s420 = ssub.s32 %s413, %s418
      %s421 = sor.u32 %s419, %s420
      %p422 = scmp.eq.s32.totalorder %s421, 0
      %s424 = sadd.s32 %s423, 1
      %s425 = scalar_select %p422, %s423, %s424
      %p428 = pneg %p422
      %p429 = scmp.eq.s32.totalorder %s40, 7
      %p430 = por %p428, %p429
      %p431 = scmp.ne.s32.totalorder %s423, %s426
      %p432 = scmp.eq.s32.totalorder %s40, 0
      %p433 = por %p431, %p432
      %p434 = scmp.ne.s32.totalorder %s423, %s426
      %p435 = scmp.eq.s32.totalorder %s45, 7
      %p436 = por %p434, %p435
      %p437 = scmp.ne.s32.totalorder %s426, %s427
      %p438 = scmp.eq.s32.totalorder %s45, 0
      %p439 = por %p437, %p438
      %p440 = scmp.ne.s32.totalorder %s426, %s427
      %p441 = scmp.eq.s32.totalorder %s46, 7
      %p442 = por %p440, %p441
      %p444 = scmp.ne.s32.totalorder %s427, %s443
      %p445 = scmp.eq.s32.totalorder %s46, 0
      %p446 = por %p444, %p445
      %s447 = ssub.s32 %s47, %s59
      %p448 = scmp.eq.s32.totalorder %s447, 0
      %s450 = sadd.s32 %s449, 1
      %s451 = scalar_select %p448, %s449, %s450
      %p454 = pneg %p448
      %p455 = scmp.eq.s32.totalorder %s40, 7
      %p456 = por %p454, %p455
      %p457 = scmp.ne.s32.totalorder %s449, %s452
      %p458 = scmp.eq.s32.totalorder %s40, 0
      %p459 = por %p457, %p458
      %p460 = scmp.ne.s32.totalorder %s449, %s452
      %p461 = scmp.eq.s32.totalorder %s45, 7
      %p462 = por %p460, %p461
      %p463 = scmp.ne.s32.totalorder %s452, %s453
      %p464 = scmp.eq.s32.totalorder %s45, 0
      %p465 = por %p463, %p464
      %p466 = scmp.ne.s32.totalorder %s452, %s453
      %p467 = scmp.eq.s32.totalorder %s46, 7
      %p468 = por %p466, %p467
      %p470 = scmp.ne.s32.totalorder %s453, %s469
      %p471 = scmp.eq.s32.totalorder %s46, 0
      %p472 = por %p470, %p471
      %s474 = sadd.s32 %s473, 1
      %p477 = scmp.eq.s32.totalorder %s40, 7
      %p478 = scmp.ne.s32.totalorder %s473, %s475
      %p479 = scmp.eq.s32.totalorder %s40, 0
      %p480 = por %p478, %p479
      %p481 = scmp.ne.s32.totalorder %s473, %s475
      %p482 = scmp.eq.s32.totalorder %s45, 7
      %p483 = por %p481, %p482
      %p484 = scmp.ne.s32.totalorder %s475, %s476
      %p485 = scmp.eq.s32.totalorder %s45, 0
      %p486 = por %p484, %p485
      %p487 = scmp.ne.s32.totalorder %s475, %s476
      %p488 = scmp.eq.s32.totalorder %s46, 7
      %p489 = por %p487, %p488
      %p491 = scmp.ne.s32.totalorder %s476, %s490
      %p492 = scmp.eq.s32.totalorder %s46, 0
      %p493 = por %p491, %p492
      %p494 = scmp.le.s32.totalorder 1, %s40
      %p495 = scmp.lt.s32.totalorder %s40, 9
      %p496 = pnand %p494, %p495
      %p497 = pneg %p496
      // Predicated region
      $region9: #{tpu_custom_call.1} parent=5 // pred_check
        _
      $region10: #{tpu_custom_call.1} parent=5 // pred_check_branch
        %499 = sbr.rel (%p496) target = $region12
      $region11: #{tpu_custom_call.1} parent=5 // pred_region
        %s500 = ssub.s32 %s40, 1
        // Predicated region
        $region13: #{tpu_custom_call.1} parent=11 // pred_check
          %p501 = pneg %p73
        $region14: #{tpu_custom_call.1} parent=11 // pred_check_branch
          %503 = sbr.rel (%p501) target = $region16
        $region15: #{tpu_custom_call.1} parent=11 // pred_region
          %s505 = ssub.s32 1024, 1024
          %506 = vsyncadd [#allocation6], %s505
          %s507 = sshll.u32 [#allocation5], 4
          %s508 = int_to_ptr.vmem [resolvable:$true] %s507
          %513 = dma.hbm_to_vmem [thread:$0]  %s0, 1024, %s508, [#allocation6], 256, 256, 16
        $region16: #{tpu_custom_call.1} parent=11 // pred_fallthru
          _
      $region12: #{tpu_custom_call.1} parent=5 // pred_fallthru
        _
      %p514 = scmp.lt.s32.totalorder %s40, 8
      // Predicated region
      $region17: #{tpu_custom_call.1} parent=5 // pred_check
        %p515 = pneg %p514
      $region18: #{tpu_custom_call.1} parent=5 // pred_check_branch
        %517 = sbr.rel (%p515) target = $region20
      $region19: #{tpu_custom_call.1} parent=5 // pred_region
        // Predicated region
        $region21: #{tpu_custom_call.1} parent=19 // pred_check
          %p518 = pneg %p93
        $region22: #{tpu_custom_call.1} parent=19 // pred_check_branch
          %520 = sbr.rel (%p518) target = $region24
        $region23: #{tpu_custom_call.1} parent=19 // pred_region
          %s521 = sand.u32 %s40, 1
          %s522 = scalar_lea.sflag [#allocation9], %s521
          %s523 = sand.u32 %s83, 1
          %s524 = smul.addr %s523, 8
          %s525 = scalar_lea.vmem [#allocation8], %s524
          %s527 = ssub.s32 128, 128
          %528 = vsyncadd %s522, %s527
          %s529 = smul.addr %s47, 4
          %s530 = smul.addr %s529, 32
          %s531 = scalar_lea.hbm %s1, %s530
          %s533 = sshll.u32 %s525, 4
          %s534 = int_to_ptr.vmem [resolvable:$true] %s533
          %536 = dma.hbm_to_vmem [thread:$0]  %s531, 128, %s534, %s522
        $region24: #{tpu_custom_call.1} parent=19 // pred_fallthru
          _
        // Predicated region
        $region25: #{tpu_custom_call.1} parent=19 // pred_check
          %p537 = pneg %p119
        $region26: #{tpu_custom_call.1} parent=19 // pred_check_branch
          %539 = sbr.rel (%p537) target = $region28
        $region27: #{tpu_custom_call.1} parent=19 // pred_region
          %s540 = sand.u32 %s40, 1
          %s541 = scalar_lea.sflag [#allocation9], %s540
          %s542 = sand.u32 %s109, 1
          %s543 = smul.addr %s542, 2
          %s544 = scalar_lea.vmem [#allocation10], %s543
          %s546 = ssub.s32 32, 32
          %547 = vsyncadd %s541, %s546
          %s548 = smul.addr %s47, 2
          %s549 = smul.addr %s548, 16
          %s550 = scalar_lea.hbm %s2, %s549
          %s552 = sshll.u32 %s544, 4
          %s553 = int_to_ptr.vmem [resolvable:$true] %s552
          %555 = dma.hbm_to_vmem [thread:$0]  %s550, 32, %s553, %s541
        $region28: #{tpu_custom_call.1} parent=19 // pred_fallthru
          _
        // Predicated region
        $region29: #{tpu_custom_call.1} parent=19 // pred_check
          %p556 = pneg %p145
        $region30: #{tpu_custom_call.1} parent=19 // pred_check_branch
          %558 = sbr.rel (%p556) target = $region32
        $region31: #{tpu_custom_call.1} parent=19 // pred_region
          %p559 = scmp.lt.s32.totalorder %s47, 1
          %s560 = scalar_select %p559, %s47, 1
          %s561 = smul.addr %s560, 2
          %s562 = scalar_lea.vmem %s3, %s561
        $region32: #{tpu_custom_call.1} parent=19 // pred_fallthru
          _
        // Predicated region
        $region33: #{tpu_custom_call.1} parent=19 // pred_check
          %p563 = pneg %p177
        $region34: #{tpu_custom_call.1} parent=19 // pred_check_branch
          %565 = sbr.rel (%p563) target = $region36
        $region35: #{tpu_custom_call.1} parent=19 // pred_region
          %s566 = sand.u32 %s40, 1
          %s567 = scalar_lea.sflag [#allocation12], %s566
          %s568 = sand.u32 %s167, 1
          %s569 = smul.addr %s568, 384
          %s570 = scalar_lea.vmem [#allocation11], %s569
          %p571 = scmp.lt.s32.totalorder %s48, 1
          %s572 = scalar_select %p571, %s48, 1
          %s574 = ssub.s32 6144, 6144
          %575 = vsyncadd %s567, %s574
          %s576 = smul.addr %s572, 96
          %s577 = smul.addr %s47, 192
          %s578 = sadd.s32 %s576, %s577
          %s579 = smul.addr %s578, 64
          %s580 = scalar_lea.hbm %s4, %s579
          %s581 = sshll.u32 %s570, 4
          %s582 = int_to_ptr.vmem [resolvable:$true] %s581
          %587 = dma.hbm_to_vmem [thread:$0]  %s580, 6144, %s582, %s567, 192, 192, 12
        $region36: #{tpu_custom_call.1} parent=19 // pred_fallthru
          _
        // Predicated region
        $region37: #{tpu_custom_call.1} parent=19 // pred_check
          %p588 = pneg %p209
        $region38: #{tpu_custom_call.1} parent=19 // pred_check_branch
          %590 = sbr.rel (%p588) target = $region40
        $region39: #{tpu_custom_call.1} parent=19 // pred_region
          %s591 = sand.u32 %s40, 1
          %s592 = scalar_lea.sflag [#allocation12], %s591
          %s593 = sand.u32 %s199, 1
          %s594 = smul.addr %s593, 3
          %s595 = scalar_lea.vmem [#allocation13], %s594
          %p596 = scmp.lt.s32.totalorder %s48, 1
          %s597 = scalar_select %p596, %s48, 1
          %s599 = ssub.s32 48, 48
          %600 = vsyncadd %s592, %s599
          %s601 = smul.addr %s597, 3
          %s602 = smul.addr %s47, 6
          %s603 = sadd.s32 %s601, %s602
          %s604 = smul.addr %s603, 16
          %s605 = scalar_lea.hbm %s5, %s604
          %s607 = sshll.u32 %s595, 4
          %s608 = int_to_ptr.vmem [resolvable:$true] %s607
          %610 = dma.hbm_to_vmem [thread:$0]  %s605, 48, %s608, %s592
        $region40: #{tpu_custom_call.1} parent=19 // pred_fallthru
          _
        // Predicated region
        $region41: #{tpu_custom_call.1} parent=19 // pred_check
          %p611 = pneg %p241
        $region42: #{tpu_custom_call.1} parent=19 // pred_check_branch
          %613 = sbr.rel (%p611) target = $region44
        $region43: #{tpu_custom_call.1} parent=19 // pred_region
          %s614 = sand.u32 %s40, 1
          %s615 = scalar_lea.sflag [#allocation15], %s614
          %s616 = sand.u32 %s231, 1
          %s617 = smul.addr %s616, 128
          %s618 = scalar_lea.vmem [#allocation14], %s617
          %p619 = scmp.lt.s32.totalorder %s48, 1
          %s620 = scalar_select %p619, %s48, 1
          %s622 = ssub.s32 2048, 2048
          %623 = vsyncadd %s615, %s622
          %s624 = smul.addr %s620, 32
          %s625 = smul.addr %s47, 64
          %s626 = sadd.s32 %s624, %s625
          %s627 = smul.addr %s626, 64
          %s628 = scalar_lea.hbm %s6, %s627
          %s629 = sshll.u32 %s618, 4
          %s630 = int_to_ptr.vmem [resolvable:$true] %s629
          %635 = dma.hbm_to_vmem [thread:$0]  %s628, 2048, %s630, %s615, 128, 128, 8
        $region44: #{tpu_custom_call.1} parent=19 // pred_fallthru
          _
        // Predicated region
        $region45: #{tpu_custom_call.1} parent=19 // pred_check
          %p636 = pneg %p267
        $region46: #{tpu_custom_call.1} parent=19 // pred_check_branch
          %638 = sbr.rel (%p636) target = $region48
        $region47: #{tpu_custom_call.1} parent=19 // pred_region
          %s639 = sand.u32 %s40, 1
          %s640 = scalar_lea.sflag [#allocation15], %s639
          %s641 = sand.u32 %s257, 1
          %s642 = smul.addr %s641, 2
          %s643 = scalar_lea.vmem [#allocation16], %s642
          %s645 = ssub.s32 32, 32
          %646 = vsyncadd %s640, %s645
          %s647 = smul.addr %s47, 2
          %s648 = smul.addr %s647, 16
          %s649 = scalar_lea.hbm %s7, %s648
          %s651 = sshll.u32 %s643, 4
          %s652 = int_to_ptr.vmem [resolvable:$true] %s651
          %654 = dma.hbm_to_vmem [thread:$0]  %s649, 32, %s652, %s640
        $region48: #{tpu_custom_call.1} parent=19 // pred_fallthru
          _
        // Predicated region
        $region49: #{tpu_custom_call.1} parent=19 // pred_check
          %p655 = pneg %p293
        $region50: #{tpu_custom_call.1} parent=19 // pred_check_branch
          %657 = sbr.rel (%p655) target = $region52
        $region51: #{tpu_custom_call.1} parent=19 // pred_region
          %s658 = sand.u32 %s40, 1
          %s659 = scalar_lea.sflag [#allocation18], %s658
          %s660 = sand.u32 %s283, 1
          %s661 = smul.addr %s660, 2
          %s662 = scalar_lea.vmem [#allocation17], %s661
          %s664 = ssub.s32 32, 32
          %665 = vsyncadd %s659, %s664
          %s666 = smul.addr %s47, 2
          %s667 = smul.addr %s666, 16
          %s668 = scalar_lea.hbm %s8, %s667
          %s670 = sshll.u32 %s662, 4
          %s671 = int_to_ptr.vmem [resolvable:$true] %s670
          %673 = dma.hbm_to_vmem [thread:$0]  %s668, 32, %s671, %s659
        $region52: #{tpu_custom_call.1} parent=19 // pred_fallthru
          _
        // Predicated region
        $region53: #{tpu_custom_call.1} parent=19 // pred_check
          %p674 = pneg %p319
        $region54: #{tpu_custom_call.1} parent=19 // pred_check_branch
          %676 = sbr.rel (%p674) target = $region56
        $region55: #{tpu_custom_call.1} parent=19 // pred_region
          %s677 = sand.u32 %s40, 1
          %s678 = scalar_lea.sflag [#allocation18], %s677
          %s679 = sand.u32 %s309, 1
          %s680 = smul.addr %s679, 2
          %s681 = scalar_lea.vmem [#allocation19], %s680
          %s683 = ssub.s32 32, 32
          %684 = vsyncadd %s678, %s683
          %s685 = smul.addr %s47, 2
          %s686 = smul.addr %s685, 16
          %s687 = scalar_lea.hbm %s9, %s686
          %s689 = sshll.u32 %s681, 4
          %s690 = int_to_ptr.vmem [resolvable:$true] %s689
          %692 = dma.hbm_to_vmem [thread:$0]  %s687, 32, %s690, %s678
        $region56: #{tpu_custom_call.1} parent=19 // pred_fallthru
          _
        // Predicated region
        $region57: #{tpu_custom_call.1} parent=19 // pred_check
          %p693 = pneg %p357
        $region58: #{tpu_custom_call.1} parent=19 // pred_check_branch
          %695 = sbr.rel (%p693) target = $region60
        $region59: #{tpu_custom_call.1} parent=19 // pred_region
          %s696 = sand.u32 %s40, 1
          %s697 = scalar_lea.sflag [#allocation21], %s696
          %s698 = sand.u32 %s347, 1
          %s699 = smul.addr %s698, 512
          %s700 = scalar_lea.vmem [#allocation20], %s699
          %s701 = ssub.s32 %s48, 2
          %p702 = scmp.gt.s32.totalorder %s701, 0
          %s703 = scalar_select %p702, %s701, 0
          %p704 = scmp.lt.s32.totalorder %s703, 1
          %s705 = scalar_select %p704, %s703, 1
          %s706 = smul.u32 4, %s705
          %s708 = ssub.s32 8192, 8192
          %709 = vsyncadd %s697, %s708
          %s710 = smul.addr %s47, 256
          %s711 = sadd.s32 %s706, %s710
          %s712 = smul.addr %s711, 64
          %s713 = scalar_lea.hbm %s10, %s712
          %s714 = sshll.u32 %s700, 4
          %s715 = int_to_ptr.vmem [resolvable:$true] %s714
          %720 = dma.hbm_to_vmem [thread:$0]  %s713, 8192, %s715, %s697, 512, 256, 16
        $region60: #{tpu_custom_call.1} parent=19 // pred_fallthru
          _
        // Predicated region
        $region61: #{tpu_custom_call.1} parent=19 // pred_check
          %p721 = pneg %p395
        $region62: #{tpu_custom_call.1} parent=19 // pred_check_branch
          %723 = sbr.rel (%p721) target = $region64
        $region63: #{tpu_custom_call.1} parent=19 // pred_region
          %s724 = ssub.s32 %s48, 2
          %p725 = scmp.gt.s32.totalorder %s724, 0
          %s726 = scalar_select %p725, %s724, 0
          %p727 = scmp.lt.s32.totalorder %s726, 1
          %s728 = scalar_select %p727, %s726, 1
          %s729 = smul.u32 4, %s728
          %p730 = scmp.lt.s32.totalorder %s47, 1
          %s731 = scalar_select %p730, %s47, 1
          %p732 = scmp.lt.s32.totalorder %s729, 7
          %s733 = scalar_select %p732, %s729, 7
          %s734 = smul.addr %s731, 8
          %s735 = sadd.s32 %s733, %s734
          %s736 = scalar_lea.vmem %s11, %s735
          %s737 = ssub.s32 %s48, 2
          %p738 = scmp.gt.s32.totalorder %s737, 0
          %s739 = scalar_select %p738, %s737, 0
          %p740 = scmp.lt.s32.totalorder %s739, 1
          %s741 = scalar_select %p740, %s739, 1
          %s742 = smul.u32 4, %s741
        $region64: #{tpu_custom_call.1} parent=19 // pred_fallthru
          _
        // Predicated region
        $region65: #{tpu_custom_call.1} parent=19 // pred_check
          %p743 = pneg %p433
        $region66: #{tpu_custom_call.1} parent=19 // pred_check_branch
          %745 = sbr.rel (%p743) target = $region68
        $region67: #{tpu_custom_call.1} parent=19 // pred_region
          %s746 = sand.u32 %s40, 1
          %s747 = scalar_lea.sflag [#allocation21], %s746
          %s748 = sand.u32 %s423, 1
          %s749 = smul.addr %s748, 512
          %s750 = scalar_lea.vmem [#allocation22], %s749
          %s751 = ssub.s32 %s48, 2
          %p752 = scmp.gt.s32.totalorder %s751, 0
          %s753 = scalar_select %p752, %s751, 0
          %p754 = scmp.lt.s32.totalorder %s753, 1
          %s755 = scalar_select %p754, %s753, 1
          %s756 = smul.u32 64, %s755
          %s758 = ssub.s32 8192, 8192
          %759 = vsyncadd %s747, %s758
          %s760 = smul.addr %s756, 2
          %s761 = smul.addr %s47, 256
          %s762 = sadd.s32 %s760, %s761
          %s763 = smul.addr %s762, 64
          %s764 = scalar_lea.hbm %s12, %s763
          %s765 = sshll.u32 %s750, 4
          %s766 = int_to_ptr.vmem [resolvable:$true] %s765
          %771 = dma.hbm_to_vmem [thread:$0]  %s764, 8192, %s766, %s747, 128, 128, 8
        $region68: #{tpu_custom_call.1} parent=19 // pred_fallthru
          _
        // Predicated region
        $region69: #{tpu_custom_call.1} parent=19 // pred_check
          %p772 = pneg %p459
        $region70: #{tpu_custom_call.1} parent=19 // pred_check_branch
          %774 = sbr.rel (%p772) target = $region72
        $region71: #{tpu_custom_call.1} parent=19 // pred_region
          %s775 = sand.u32 %s449, 1
          %s776 = scalar_lea.sflag [#allocation24], %s775
          %s777 = sand.u32 %s449, 1
          %s778 = smul.addr %s777, 2
          %s779 = scalar_lea.vmem [#allocation23], %s778
          %s781 = ssub.s32 32, 32
          %782 = vsyncadd %s776, %s781
          %s783 = smul.addr %s47, 2
          %s784 = smul.addr %s783, 16
          %s785 = scalar_lea.hbm %s13, %s784
          %s787 = sshll.u32 %s779, 4
          %s788 = int_to_ptr.vmem [resolvable:$true] %s787
          %790 = dma.hbm_to_vmem [thread:$0]  %s785, 32, %s788, %s776
        $region72: #{tpu_custom_call.1} parent=19 // pred_fallthru
          _
      $region20: #{tpu_custom_call.1} parent=5 // pred_fallthru
        _
      %p791 = scmp.le.s32.totalorder 1, %s40
      %p792 = scmp.lt.s32.totalorder %s40, 9
      %p793 = pnand %p791, %p792
      %p794 = pneg %p793
      // Predicated region
      $region73: #{tpu_custom_call.1} parent=5 // pred_check
        _
      $region74: #{tpu_custom_call.1} parent=5 // pred_check_branch
        %796 = sbr.rel (%p793) target = $region76
      $region75: #{tpu_custom_call.1} parent=5 // pred_region
        %s797 = ssub.s32 %s40, 1
        // Predicated region
        $region77: #{tpu_custom_call.1} parent=75 // pred_check
          %p798 = pneg %p73
        $region78: #{tpu_custom_call.1} parent=75 // pred_check_branch
          %800 = sbr.rel (%p798) target = $region80
        $region79: #{tpu_custom_call.1} parent=75 // pred_region
          %801 = dma.done [#allocation6], 1024
        $region80: #{tpu_custom_call.1} parent=75 // pred_fallthru
          _
        %s802 = sand.u32 %s45, 1
        %s803 = scalar_lea.sflag [#allocation9], %s802
        %s804 = sand.u32 %s86, 1
        %s805 = smul.addr %s804, 8
        %s806 = scalar_lea.vmem [#allocation8], %s805
        // Predicated region
        $region81: #{tpu_custom_call.1} parent=75 // pred_check
          %p807 = pneg %p99
        $region82: #{tpu_custom_call.1} parent=75 // pred_check_branch
          %809 = sbr.rel (%p807) target = $region84
        $region83: #{tpu_custom_call.1} parent=75 // pred_region
          %810 = dma.done %s803, 128
        $region84: #{tpu_custom_call.1} parent=75 // pred_fallthru
          _
        %s811 = sand.u32 %s45, 1
        %s812 = scalar_lea.sflag [#allocation9], %s811
        %s813 = sand.u32 %s112, 1
        %s814 = smul.addr %s813, 2
        %s815 = scalar_lea.vmem [#allocation10], %s814
        // Predicated region
        $region85: #{tpu_custom_call.1} parent=75 // pred_check
          %p816 = pneg %p125
        $region86: #{tpu_custom_call.1} parent=75 // pred_check_branch
          %818 = sbr.rel (%p816) target = $region88
        $region87: #{tpu_custom_call.1} parent=75 // pred_region
          %819 = dma.done %s812, 32
        $region88: #{tpu_custom_call.1} parent=75 // pred_fallthru
          _
        %s820 = sand.u32 %s45, 1
        %s821 = scalar_lea.sflag [#allocation12], %s820
        %s822 = sand.u32 %s170, 1
        %s823 = smul.addr %s822, 384
        %s824 = scalar_lea.vmem [#allocation11], %s823
        // Predicated region
        $region89: #{tpu_custom_call.1} parent=75 // pred_check
          %p825 = pneg %p183
        $region90: #{tpu_custom_call.1} parent=75 // pred_check_branch
          %827 = sbr.rel (%p825) target = $region92
        $region91: #{tpu_custom_call.1} parent=75 // pred_region
          %828 = dma.done %s821, 6144
        $region92: #{tpu_custom_call.1} parent=75 // pred_fallthru
          _
        %s829 = sand.u32 %s45, 1
        %s830 = scalar_lea.sflag [#allocation12], %s829
        %s831 = sand.u32 %s202, 1
        %s832 = smul.addr %s831, 3
        %s833 = scalar_lea.vmem [#allocation13], %s832
        // Predicated region
        $region93: #{tpu_custom_call.1} parent=75 // pred_check
          %p834 = pneg %p215
        $region94: #{tpu_custom_call.1} parent=75 // pred_check_branch
          %836 = sbr.rel (%p834) target = $region96
        $region95: #{tpu_custom_call.1} parent=75 // pred_region
          %837 = dma.done %s830, 48
        $region96: #{tpu_custom_call.1} parent=75 // pred_fallthru
          _
        %s838 = sand.u32 %s45, 1
        %s839 = scalar_lea.sflag [#allocation15], %s838
        %s840 = sand.u32 %s234, 1
        %s841 = smul.addr %s840, 128
        %s842 = scalar_lea.vmem [#allocation14], %s841
        // Predicated region
        $region97: #{tpu_custom_call.1} parent=75 // pred_check
          %p843 = pneg %p247
        $region98: #{tpu_custom_call.1} parent=75 // pred_check_branch
          %845 = sbr.rel (%p843) target = $region100
        $region99: #{tpu_custom_call.1} parent=75 // pred_region
          %846 = dma.done %s839, 2048
        $region100: #{tpu_custom_call.1} parent=75 // pred_fallthru
          _
        %s847 = sand.u32 %s45, 1
        %s848 = scalar_lea.sflag [#allocation15], %s847
        %s849 = sand.u32 %s260, 1
        %s850 = smul.addr %s849, 2
        %s851 = scalar_lea.vmem [#allocation16], %s850
        // Predicated region
        $region101: #{tpu_custom_call.1} parent=75 // pred_check
          %p852 = pneg %p273
        $region102: #{tpu_custom_call.1} parent=75 // pred_check_branch
          %854 = sbr.rel (%p852) target = $region104
        $region103: #{tpu_custom_call.1} parent=75 // pred_region
          %855 = dma.done %s848, 32
        $region104: #{tpu_custom_call.1} parent=75 // pred_fallthru
          _
        %s856 = sand.u32 %s45, 1
        %s857 = scalar_lea.sflag [#allocation18], %s856
        %s858 = sand.u32 %s286, 1
        %s859 = smul.addr %s858, 2
        %s860 = scalar_lea.vmem [#allocation17], %s859
        // Predicated region
        $region105: #{tpu_custom_call.1} parent=75 // pred_check
          %p861 = pneg %p299
        $region106: #{tpu_custom_call.1} parent=75 // pred_check_branch
          %863 = sbr.rel (%p861) target = $region108
        $region107: #{tpu_custom_call.1} parent=75 // pred_region
          %864 = dma.done %s857, 32
        $region108: #{tpu_custom_call.1} parent=75 // pred_fallthru
          _
        %s865 = sand.u32 %s45, 1
        %s866 = scalar_lea.sflag [#allocation18], %s865
        %s867 = sand.u32 %s312, 1
        %s868 = smul.addr %s867, 2
        %s869 = scalar_lea.vmem [#allocation19], %s868
        // Predicated region
        $region109: #{tpu_custom_call.1} parent=75 // pred_check
          %p870 = pneg %p325
        $region110: #{tpu_custom_call.1} parent=75 // pred_check_branch
          %872 = sbr.rel (%p870) target = $region112
        $region111: #{tpu_custom_call.1} parent=75 // pred_region
          %873 = dma.done %s866, 32
        $region112: #{tpu_custom_call.1} parent=75 // pred_fallthru
          _
        %s874 = sand.u32 %s45, 1
        %s875 = scalar_lea.sflag [#allocation21], %s874
        %s876 = sand.u32 %s350, 1
        %s877 = smul.addr %s876, 512
        %s878 = scalar_lea.vmem [#allocation20], %s877
        // Predicated region
        $region113: #{tpu_custom_call.1} parent=75 // pred_check
          %p879 = pneg %p363
        $region114: #{tpu_custom_call.1} parent=75 // pred_check_branch
          %881 = sbr.rel (%p879) target = $region116
        $region115: #{tpu_custom_call.1} parent=75 // pred_region
          %882 = dma.done %s875, 8192
        $region116: #{tpu_custom_call.1} parent=75 // pred_fallthru
          _
        %s883 = sand.u32 %s45, 1
        %s884 = scalar_lea.sflag [#allocation21], %s883
        %s885 = sand.u32 %s426, 1
        %s886 = smul.addr %s885, 512
        %s887 = scalar_lea.vmem [#allocation22], %s886
        // Predicated region
        $region117: #{tpu_custom_call.1} parent=75 // pred_check
          %p888 = pneg %p439
        $region118: #{tpu_custom_call.1} parent=75 // pred_check_branch
          %890 = sbr.rel (%p888) target = $region120
        $region119: #{tpu_custom_call.1} parent=75 // pred_region
          %891 = dma.done %s884, 8192
        $region120: #{tpu_custom_call.1} parent=75 // pred_fallthru
          _
        %s892 = sand.u32 %s452, 1
        %s893 = scalar_lea.sflag [#allocation24], %s892
        %s894 = sand.u32 %s452, 1
        %s895 = smul.addr %s894, 2
        %s896 = scalar_lea.vmem [#allocation23], %s895
        // Predicated region
        $region121: #{tpu_custom_call.1} parent=75 // pred_check
          %p897 = pneg %p465
        $region122: #{tpu_custom_call.1} parent=75 // pred_check_branch
          %899 = sbr.rel (%p897) target = $region124
        $region123: #{tpu_custom_call.1} parent=75 // pred_region
          %900 = dma.done %s893, 32
        $region124: #{tpu_custom_call.1} parent=75 // pred_fallthru
          _
        %p901 = pneg %p73
        %p902 = pneg %p70
        %s903 = sand.u32 %s45, 1
        %s904 = scalar_lea.sflag [#allocation9], %s903
        %s905 = sand.u32 %s86, 1
        %s906 = smul.addr %s905, 8
        %s907 = scalar_lea.vmem [#allocation8], %s906
        %p908 = pneg %p99
        %p909 = pneg %p96
        %s910 = sand.u32 %s45, 1
        %s911 = scalar_lea.sflag [#allocation9], %s910
        %s912 = sand.u32 %s112, 1
        %s913 = smul.addr %s912, 2
        %s914 = scalar_lea.vmem [#allocation10], %s913
        %p915 = pneg %p125
        %p916 = pneg %p122
        %p917 = scmp.lt.s32.totalorder %s49, 1
        %s918 = scalar_select %p917, %s49, 1
        %s919 = smul.addr %s918, 2
        %s920 = scalar_lea.vmem %s3, %s919
        %p921 = pneg %p151
        %p922 = pneg %p148
        %s923 = sand.u32 %s45, 1
        %s924 = scalar_lea.sflag [#allocation12], %s923
        %s925 = sand.u32 %s170, 1
        %s926 = smul.addr %s925, 384
        %s927 = scalar_lea.vmem [#allocation11], %s926
        %p928 = pneg %p183
        %p929 = pneg %p180
        %s930 = sand.u32 %s45, 1
        %s931 = scalar_lea.sflag [#allocation12], %s930
        %s932 = sand.u32 %s202, 1
        %s933 = smul.addr %s932, 3
        %s934 = scalar_lea.vmem [#allocation13], %s933
        %p935 = pneg %p215
        %p936 = pneg %p212
        %s937 = sand.u32 %s45, 1
        %s938 = scalar_lea.sflag [#allocation15], %s937
        %s939 = sand.u32 %s234, 1
        %s940 = smul.addr %s939, 128
        %s941 = scalar_lea.vmem [#allocation14], %s940
        %p942 = pneg %p247
        %p943 = pneg %p244
        %s944 = sand.u32 %s45, 1
        %s945 = scalar_lea.sflag [#allocation15], %s944
        %s946 = sand.u32 %s260, 1
        %s947 = smul.addr %s946, 2
        %s948 = scalar_lea.vmem [#allocation16], %s947
        %p949 = pneg %p273
        %p950 = pneg %p270
        %s951 = sand.u32 %s45, 1
        %s952 = scalar_lea.sflag [#allocation18], %s951
        %s953 = sand.u32 %s286, 1
        %s954 = smul.addr %s953, 2
        %s955 = scalar_lea.vmem [#allocation17], %s954
        %p956 = pneg %p299
        %p957 = pneg %p296
        %s958 = sand.u32 %s45, 1
        %s959 = scalar_lea.sflag [#allocation18], %s958
        %s960 = sand.u32 %s312, 1
        %s961 = smul.addr %s960, 2
        %s962 = scalar_lea.vmem [#allocation19], %s961
        %p963 = pneg %p325
        %p964 = pneg %p322
        %s965 = sand.u32 %s45, 1
        %s966 = scalar_lea.sflag [#allocation21], %s965
        %s967 = sand.u32 %s350, 1
        %s968 = smul.addr %s967, 512
        %s969 = scalar_lea.vmem [#allocation20], %s968
        %p970 = pneg %p363
        %p971 = pneg %p360
        %s972 = ssub.s32 %s50, 2
        %p973 = scmp.gt.s32.totalorder %s972, 0
        %s974 = scalar_select %p973, %s972, 0
        %p975 = scmp.lt.s32.totalorder %s974, 1
        %s976 = scalar_select %p975, %s974, 1
        %s977 = smul.u32 4, %s976
        %p978 = scmp.lt.s32.totalorder %s49, 1
        %s979 = scalar_select %p978, %s49, 1
        %p980 = scmp.lt.s32.totalorder %s977, 7
        %s981 = scalar_select %p980, %s977, 7
        %s982 = smul.addr %s979, 8
        %s983 = sadd.s32 %s981, %s982
        %s984 = scalar_lea.vmem %s11, %s983
        %p985 = pneg %p401
        %p986 = pneg %p398
        %s987 = sand.u32 %s45, 1
        %s988 = scalar_lea.sflag [#allocation21], %s987
        %s989 = sand.u32 %s426, 1
        %s990 = smul.addr %s989, 512
        %s991 = scalar_lea.vmem [#allocation22], %s990
        %p992 = pneg %p439
        %p993 = pneg %p436
        %s994 = sand.u32 %s452, 1
        %s995 = scalar_lea.sflag [#allocation24], %s994
        %s996 = sand.u32 %s452, 1
        %s997 = smul.addr %s996, 2
        %s998 = scalar_lea.vmem [#allocation23], %s997
        %p999 = pneg %p465
        %p1000 = pneg %p462
        %p1001 = pneg %p486
        %p1002 = pneg %p483
        %p1003 = scmp.lt.s32.totalorder %s49, 1
        %s1004 = scalar_select %p1003, %s49, 1
        %s1005 = smul.addr %s1004, 2
        %s1006 = scalar_lea.vmem %s3, %s1005
        %p1007 = scmp.lt.s32.totalorder %s50, 1
        %s1008 = scalar_select %p1007, %s50, 1
        %p1009 = scmp.lt.s32.totalorder %s50, 1
        %s1010 = scalar_select %p1009, %s50, 1
        %p1011 = scmp.lt.s32.totalorder %s50, 1
        %s1012 = scalar_select %p1011, %s50, 1
        %s1013 = ssub.s32 %s50, 2
        %p1014 = scmp.gt.s32.totalorder %s1013, 0
        %s1015 = scalar_select %p1014, %s1013, 0
        %p1016 = scmp.lt.s32.totalorder %s1015, 1
        %s1017 = scalar_select %p1016, %s1015, 1
        %s1018 = smul.u32 4, %s1017
        %s1019 = ssub.s32 %s50, 2
        %p1020 = scmp.gt.s32.totalorder %s1019, 0
        %s1021 = scalar_select %p1020, %s1019, 0
        %p1022 = scmp.lt.s32.totalorder %s1021, 1
        %s1023 = scalar_select %p1022, %s1021, 1
        %s1024 = smul.u32 4, %s1023
        %p1025 = scmp.lt.s32.totalorder %s49, 1
        %s1026 = scalar_select %p1025, %s49, 1
        %p1027 = scmp.lt.s32.totalorder %s1024, 7
        %s1028 = scalar_select %p1027, %s1024, 7
        %s1029 = smul.addr %s1026, 8
        %s1030 = sadd.s32 %s1028, %s1029
        %s1031 = scalar_lea.vmem %s11, %s1030
        %s1032 = ssub.s32 %s50, 2
        %p1033 = scmp.gt.s32.totalorder %s1032, 0
        %s1034 = scalar_select %p1033, %s1032, 0
        %p1035 = scmp.lt.s32.totalorder %s1034, 1
        %s1036 = scalar_select %p1035, %s1034, 1
        %s1037 = smul.u32 4, %s1036
        %s1038 = ssub.s32 %s50, 2
        %p1039 = scmp.gt.s32.totalorder %s1038, 0
        %s1040 = scalar_select %p1039, %s1038, 0
        %p1041 = scmp.lt.s32.totalorder %s1040, 1
        %s1042 = scalar_select %p1041, %s1040, 1
        %s1043 = smul.u32 64, %s1042
        %p1045 = scmp.eq.s32.totalorder %s49, 0
        %p1046 = scmp.eq.s32.totalorder %s50, 0
        %p1047 = pnand %p1045, %p1046
        %p1048 = pneg %p1047
        // Predicated region
        $region125: #{tpu_custom_call.1} parent=75 // pred_check
          _
        $region126: #{tpu_custom_call.1} parent=75 // pred_check_branch
          %1050 = sbr.rel (%p1047) target = $region128
        $region127: #{tpu_custom_call.1} parent=75 // pred_region
          %v1051 = vld [vmem:[#allocation5] sm:$0xff]
          %v1052 = vld [vmem:[#allocation5 + $0x8] sm:$0xff]
          %v1053 = vld [vmem:[#allocation5 + $0x10] sm:$0xff]
          %v1054 = vld [vmem:[#allocation5 + $0x18] sm:$0xff]
          %v1055 = vld [vmem:[#allocation5 + $0x20] sm:$0xff]
          %v1056 = vld [vmem:[#allocation5 + $0x28] sm:$0xff]
          %v1057 = vld [vmem:[#allocation5 + $0x30] sm:$0xff]
          %v1058 = vld [vmem:[#allocation5 + $0x38] sm:$0xff]
          %1059 = vst [vmem:[#allocation2] sm:$0xff] %v1051
          %1060 = vst [vmem:[#allocation2 + $0x8] sm:$0xff] %v1052
          %1061 = vst [vmem:[#allocation2 + $0x10] sm:$0xff] %v1053
          %1062 = vst [vmem:[#allocation2 + $0x18] sm:$0xff] %v1054
          %1063 = vst [vmem:[#allocation2 + $0x20] sm:$0xff] %v1055
          %1064 = vst [vmem:[#allocation2 + $0x28] sm:$0xff] %v1056
          %1065 = vst [vmem:[#allocation2 + $0x30] sm:$0xff] %v1057
          %1066 = vst [vmem:[#allocation2 + $0x38] sm:$0xff] %v1058
        $region128: #{tpu_custom_call.1} parent=75 // pred_fallthru
          _
        // Predicated region
        $region129: #{tpu_custom_call.1} parent=75 // pred_check
          %p1067 = pneg %p1046
        $region130: #{tpu_custom_call.1} parent=75 // pred_check_branch
          %1069 = sbr.rel (%p1067) target = $region132
        $region131: #{tpu_custom_call.1} parent=75 // pred_region
          %v1070 = vld [vmem:[#allocation2] sm:$0xff]
          %v1071 = vld [vmem:[#allocation2 + $0x8] sm:$0xff]
          %v1072 = vld [vmem:[#allocation2 + $0x10] sm:$0xff]
          %v1073 = vld [vmem:[#allocation2 + $0x18] sm:$0xff]
          %v1074 = vld [vmem:[#allocation2 + $0x20] sm:$0xff]
          %v1075 = vld [vmem:[#allocation2 + $0x28] sm:$0xff]
          %v1076 = vld [vmem:[#allocation2 + $0x30] sm:$0xff]
          %v1077 = vld [vmem:[#allocation2 + $0x38] sm:$0xff]
          %v1078 = vld [vmem:[%s815] sm:$0x3]
          %v1079 = vld [vmem:[%s1006] sm:$0x3]
          %v1080 = vadd.f32 %v1070, %v1071
          %1081 = vadd.xlane.f32.xlu0 %v1080
          %v1082 = vpop.xlane.xlu0 %1081
          %v1083 = vadd.f32 %v1072, %v1073
          %1084 = vadd.xlane.f32.xlu0 %v1083
          %v1085 = vpop.xlane.xlu0 %1084
          %v1086 = vadd.f32 %v1074, %v1075
          %1087 = vadd.xlane.f32.xlu0 %v1086
          %v1088 = vpop.xlane.xlu0 %1087
          %v1089 = vadd.f32 %v1076, %v1077
          %1090 = vadd.xlane.f32.xlu0 %v1089
          %v1091 = vpop.xlane.xlu0 %1090
          %v1092 = vrcp.pop 256.0
          %v1093 = vmul.f32 %v1082, %v1092
          %v1094 = vmul.f32 %v1085, %v1092
          %v1095 = vmul.f32 %v1088, %v1092
          %v1096 = vmul.f32 %v1091, %v1092
          %v1097 = vsub.f32 %v1070, %v1093
          %v1098 = vsub.f32 %v1071, %v1093
          %v1099 = vsub.f32 %v1072, %v1094
          %v1100 = vsub.f32 %v1073, %v1094
          %v1101 = vsub.f32 %v1074, %v1095
          %v1102 = vsub.f32 %v1075, %v1095
          %v1103 = vsub.f32 %v1076, %v1096
          %v1104 = vsub.f32 %v1077, %v1096
          %v1105 = vmul.f32 %v1097, %v1097
          %v1106 = vmul.f32 %v1098, %v1098
          %v1107 = vmul.f32 %v1099, %v1099
          %v1108 = vmul.f32 %v1100, %v1100
          %v1109 = vmul.f32 %v1101, %v1101
          %v1110 = vmul.f32 %v1102, %v1102
          %v1111 = vmul.f32 %v1103, %v1103
          %v1112 = vmul.f32 %v1104, %v1104
          %v1113 = vadd.f32 %v1105, %v1106
          %1114 = vadd.xlane.f32.xlu0 %v1113
          %v1115 = vpop.xlane.xlu0 %1114
          %v1116 = vadd.f32 %v1107, %v1108
          %1117 = vadd.xlane.f32.xlu0 %v1116
          %v1118 = vpop.xlane.xlu0 %1117
          %v1119 = vadd.f32 %v1109, %v1110
          %1120 = vadd.xlane.f32.xlu0 %v1119
          %v1121 = vpop.xlane.xlu0 %1120
          %v1122 = vadd.f32 %v1111, %v1112
          %1123 = vadd.xlane.f32.xlu0 %v1122
          %v1124 = vpop.xlane.xlu0 %1123
          %v1125 = vmul.f32 %v1115, %v1092
          %v1126 = vmul.f32 %v1118, %v1092
          %v1127 = vmul.f32 %v1121, %v1092
          %v1128 = vmul.f32 %v1124, %v1092
          %v1129 = vadd.f32 %v1125, 1e-06
          %v1130 = vadd.f32 %v1126, 1e-06
          %v1131 = vadd.f32 %v1127, 1e-06
          %v1132 = vadd.f32 %v1128, 1e-06
          %v1133 = vrsqrt.pop %v1129
          %v1134 = vrsqrt.pop %v1130
          %v1135 = vrsqrt.pop %v1131
          %v1136 = vrsqrt.pop %v1132
          %v1137 = vmul.f32 %v1097, %v1133
          %v1138 = vmul.f32 %v1098, %v1133
          %v1139 = vmul.f32 %v1099, %v1134
          %v1140 = vmul.f32 %v1100, %v1134
          %v1141 = vmul.f32 %v1101, %v1135
          %v1142 = vmul.f32 %v1102, %v1135
          %v1143 = vmul.f32 %v1103, %v1136
          %v1144 = vmul.f32 %v1104, %v1136
          %v1146 = vlaneseq
          %v1147 = vshrl.u32 %v1146, 7
          %v1148 = vsub.s32 0, %v1147
          %v1149 = vrot.slane %v1078, %v1148
          %v1150 = vlaneseq
          %v1151 = vshrl.u32 %v1150, 7
          %v1152 = vsub.s32 1, %v1151
          %v1153 = vrot.slane %v1078, %v1152
          %v1156 = vmul.f32 %v1137, %v1149
          %v1157 = vmul.f32 %v1138, %v1153
          %v1158 = vmul.f32 %v1139, %v1149
          %v1159 = vmul.f32 %v1140, %v1153
          %v1160 = vmul.f32 %v1141, %v1149
          %v1161 = vmul.f32 %v1142, %v1153
          %v1162 = vmul.f32 %v1143, %v1149
          %v1163 = vmul.f32 %v1144, %v1153
          %v1165 = vlaneseq
          %v1166 = vshrl.u32 %v1165, 7
          %v1167 = vsub.s32 0, %v1166
          %v1168 = vrot.slane %v1079, %v1167
          %v1169 = vlaneseq
          %v1170 = vshrl.u32 %v1169, 7
          %v1171 = vsub.s32 1, %v1170
          %v1172 = vrot.slane %v1079, %v1171
          %v1175 = vadd.f32 %v1156, %v1168
          %v1176 = vadd.f32 %v1157, %v1172
          %v1177 = vadd.f32 %v1158, %v1168
          %v1178 = vadd.f32 %v1159, %v1172
          %v1179 = vadd.f32 %v1160, %v1168
          %v1180 = vadd.f32 %v1161, %v1172
          %v1181 = vadd.f32 %v1162, %v1168
          %v1182 = vadd.f32 %v1163, %v1172
          %v1183 = vpack.c.bf16 %v1177, %v1175
          %v1184 = vpack.c.bf16 %v1178, %v1176
          %v1185 = vpack.c.bf16 %v1181, %v1179
          %v1186 = vpack.c.bf16 %v1182, %v1180
          %v1191 = vunpack.c.l.b16 %v1183
          %v1192 = vunpack.c.l.b16 %v1184
          %v1193 = vunpack.c.h.b16 %v1183
          %v1194 = vunpack.c.h.b16 %v1184
          %v1195 = vunpack.c.l.b16 %v1185
          %v1196 = vunpack.c.l.b16 %v1186
          %v1197 = vunpack.c.h.b16 %v1185
          %v1198 = vunpack.c.h.b16 %v1186
          %v1199 = vpack.c.b16 %v1192, %v1191
          %v1200 = vpack.c.b16 %v1194, %v1193
          %v1201 = vpack.c.b16 %v1196, %v1195
          %v1202 = vpack.c.b16 %v1198, %v1197
          %1207 = vst [vmem:[#allocation3] sm:$0xff] %v1199
          %1208 = vst [vmem:[#allocation3 + $0x8] sm:$0xff] %v1200
          %1209 = vst [vmem:[#allocation3 + $0x10] sm:$0xff] %v1201
          %1210 = vst [vmem:[#allocation3 + $0x18] sm:$0xff] %v1202
          %1211 = vst [vmem:[#allocation4] sm:$0xff] 0.0
          %1212 = vst [vmem:[#allocation4 + $0x8] sm:$0xff] 0.0
          %1213 = vst [vmem:[#allocation4 + $0x10] sm:$0xff] 0.0
          %1214 = vst [vmem:[#allocation4 + $0x18] sm:$0xff] 0.0
          %1215 = vst [vmem:[#allocation4 + $0x20] sm:$0xff] 0.0
          %1216 = vst [vmem:[#allocation4 + $0x28] sm:$0xff] 0.0
          %1217 = vst [vmem:[#allocation4 + $0x30] sm:$0xff] 0.0
          %1218 = vst [vmem:[#allocation4 + $0x38] sm:$0xff] 0.0
        $region132: #{tpu_custom_call.1} parent=75 // pred_fallthru
          _
        %p1219 = scmp.lt.s32.totalorder %s50, 2
        // Predicated region
        $region133: #{tpu_custom_call.1} parent=75 // pred_check
          %p1220 = pneg %p1219
        $region134: #{tpu_custom_call.1} parent=75 // pred_check_branch
          %1222 = sbr.rel (%p1220) target = $region136
        $region135: #{tpu_custom_call.1} parent=75 // pred_region
          %v1223 = vld [vmem:[#allocation3] sm:$0xff]
          %v1224 = vld [vmem:[#allocation3 + $0x8] sm:$0xff]
          %v1225 = vld [vmem:[#allocation3 + $0x10] sm:$0xff]
          %v1226 = vld [vmem:[#allocation3 + $0x18] sm:$0xff]
          %v1227 = vld [vmem:[%s824] sm:$0xff]
          %v1228 = vld [vmem:[%s824 + $0x8] sm:$0xf]
          %v1229 = vld [vmem:[%s824 + $0xc] sm:$0xff]
          %v1230 = vld [vmem:[%s824 + $0x14] sm:$0xf]
          %v1231 = vld [vmem:[%s824 + $0x18] sm:$0xff]
          %v1232 = vld [vmem:[%s824 + $0x20] sm:$0xf]
          %v1233 = vld [vmem:[%s824 + $0x24] sm:$0xff]
          %v1234 = vld [vmem:[%s824 + $0x2c] sm:$0xf]
          %v1235 = vld [vmem:[%s824 + $0x30] sm:$0xff]
          %v1236 = vld [vmem:[%s824 + $0x38] sm:$0xf]
          %v1237 = vld [vmem:[%s824 + $0x3c] sm:$0xff]
          %v1238 = vld [vmem:[%s824 + $0x44] sm:$0xf]
          %v1239 = vld [vmem:[%s824 + $0x48] sm:$0xff]
          %v1240 = vld [vmem:[%s824 + $0x50] sm:$0xf]
          %v1241 = vld [vmem:[%s824 + $0x54] sm:$0xff]
          %v1242 = vld [vmem:[%s824 + $0x5c] sm:$0xf]
          %v1243 = vld [vmem:[%s824 + $0x60] sm:$0xff]
          %v1244 = vld [vmem:[%s824 + $0x68] sm:$0xf]
          %v1245 = vld [vmem:[%s824 + $0x6c] sm:$0xff]
          %v1246 = vld [vmem:[%s824 + $0x74] sm:$0xf]
          %v1247 = vld [vmem:[%s824 + $0x78] sm:$0xff]
          %v1248 = vld [vmem:[%s824 + $0x80] sm:$0xf]
          %v1249 = vld [vmem:[%s824 + $0x84] sm:$0xff]
          %v1250 = vld [vmem:[%s824 + $0x8c] sm:$0xf]
          %v1251 = vld [vmem:[%s824 + $0x90] sm:$0xff]
          %v1252 = vld [vmem:[%s824 + $0x98] sm:$0xf]
          %v1253 = vld [vmem:[%s824 + $0x9c] sm:$0xff]
          %v1254 = vld [vmem:[%s824 + $0xa4] sm:$0xf]
          %v1255 = vld [vmem:[%s824 + $0xa8] sm:$0xff]
          %v1256 = vld [vmem:[%s824 + $0xb0] sm:$0xf]
          %v1257 = vld [vmem:[%s824 + $0xb4] sm:$0xff]
          %v1258 = vld [vmem:[%s824 + $0xbc] sm:$0xf]
          %v1259 = vld [vmem:[%s824 + $0xc0] sm:$0xff]
          %v1260 = vld [vmem:[%s824 + $0xc8] sm:$0xf]
          %v1261 = vld [vmem:[%s824 + $0xcc] sm:$0xff]
          %v1262 = vld [vmem:[%s824 + $0xd4] sm:$0xf]
          %v1263 = vld [vmem:[%s824 + $0xd8] sm:$0xff]
          %v1264 = vld [vmem:[%s824 + $0xe0] sm:$0xf]
          %v1265 = vld [vmem:[%s824 + $0xe4] sm:$0xff]
          %v1266 = vld [vmem:[%s824 + $0xec] sm:$0xf]
          %v1267 = vld [vmem:[%s824 + $0xf0] sm:$0xff]
          %v1268 = vld [vmem:[%s824 + $0xf8] sm:$0xf]
          %v1269 = vld [vmem:[%s824 + $0xfc] sm:$0xff]
          %v1270 = vld [vmem:[%s824 + $0x104] sm:$0xf]
          %v1271 = vld [vmem:[%s824 + $0x108] sm:$0xff]
          %v1272 = vld [vmem:[%s824 + $0x110] sm:$0xf]
          %v1273 = vld [vmem:[%s824 + $0x114] sm:$0xff]
          %v1274 = vld [vmem:[%s824 + $0x11c] sm:$0xf]
          %v1275 = vld [vmem:[%s824 + $0x120] sm:$0xff]
          %v1276 = vld [vmem:[%s824 + $0x128] sm:$0xf]
          %v1277 = vld [vmem:[%s824 + $0x12c] sm:$0xff]
          %v1278 = vld [vmem:[%s824 + $0x134] sm:$0xf]
          %v1279 = vld [vmem:[%s824 + $0x138] sm:$0xff]
          %v1280 = vld [vmem:[%s824 + $0x140] sm:$0xf]
          %v1281 = vld [vmem:[%s824 + $0x144] sm:$0xff]
          %v1282 = vld [vmem:[%s824 + $0x14c] sm:$0xf]
          %v1283 = vld [vmem:[%s824 + $0x150] sm:$0xff]
          %v1284 = vld [vmem:[%s824 + $0x158] sm:$0xf]
          %v1285 = vld [vmem:[%s824 + $0x15c] sm:$0xff]
          %v1286 = vld [vmem:[%s824 + $0x164] sm:$0xf]
          %v1287 = vld [vmem:[%s824 + $0x168] sm:$0xff]
          %v1288 = vld [vmem:[%s824 + $0x170] sm:$0xf]
          %v1289 = vld [vmem:[%s824 + $0x174] sm:$0xff]
          %v1290 = vld [vmem:[%s824 + $0x17c] sm:$0xf]
          %v1291 = vld [vmem:[%s833] sm:$0x7]
          %v1293 = vlaneseq
          %v1294 = vshrl.u32 %v1293, 7
          %v1295 = vsub.s32 0, %v1294
          %v1296 = vrot.slane %v1291, %v1295
          %v1297 = vlaneseq
          %v1298 = vshrl.u32 %v1297, 7
          %v1299 = vsub.s32 1, %v1298
          %v1300 = vrot.slane %v1291, %v1299
          %v1301 = vlaneseq
          %v1302 = vshrl.u32 %v1301, 7
          %v1303 = vsub.s32 2, %v1302
          %v1304 = vrot.slane %v1291, %v1303
          %v1312 = vunpack.c.l.b16 %v1223
          %v1313 = vunpack.c.h.b16 %v1223
          %v1314 = vunpack.c.l.b16 %v1224
          %v1315 = vunpack.c.h.b16 %v1224
          %v1316 = vunpack.c.l.b16 %v1225
          %v1317 = vunpack.c.h.b16 %v1225
          %v1318 = vunpack.c.l.b16 %v1226
          %v1319 = vunpack.c.h.b16 %v1226
          %v1320 = vpack.c.b16 %v1314, %v1312
          %v1321 = vpack.c.b16 %v1315, %v1313
          %v1322 = vpack.c.b16 %v1318, %v1316
          %v1323 = vpack.c.b16 %v1319, %v1317
          %v1392 = vunpack.c.l.b16 %v1227
          %v1393 = vunpack.c.h.b16 %v1227
          %v1394 = vunpack.c.l.b16 %v1228
          %v1395 = vunpack.c.l.b16 %v1229
          %v1396 = vunpack.c.h.b16 %v1229
          %v1397 = vunpack.c.l.b16 %v1230
          %v1398 = vunpack.c.l.b16 %v1231
          %v1399 = vunpack.c.h.b16 %v1231
          %v1400 = vunpack.c.l.b16 %v1232
          %v1401 = vunpack.c.l.b16 %v1233
          %v1402 = vunpack.c.h.b16 %v1233
          %v1403 = vunpack.c.l.b16 %v1234
          %v1404 = vunpack.c.l.b16 %v1235
          %v1405 = vunpack.c.h.b16 %v1235
          %v1406 = vunpack.c.l.b16 %v1236
          %v1407 = vunpack.c.l.b16 %v1237
          %v1408 = vunpack.c.h.b16 %v1237
          %v1409 = vunpack.c.l.b16 %v1238
          %v1410 = vunpack.c.l.b16 %v1239
          %v1411 = vunpack.c.h.b16 %v1239
          %v1412 = vunpack.c.l.b16 %v1240
          %v1413 = vunpack.c.l.b16 %v1241
          %v1414 = vunpack.c.h.b16 %v1241
          %v1415 = vunpack.c.l.b16 %v1242
          %v1416 = vunpack.c.l.b16 %v1243
          %v1417 = vunpack.c.h.b16 %v1243
          %v1418 = vunpack.c.l.b16 %v1244
          %v1419 = vunpack.c.l.b16 %v1245
          %v1420 = vunpack.c.h.b16 %v1245
          %v1421 = vunpack.c.l.b16 %v1246
          %v1422 = vunpack.c.l.b16 %v1247
          %v1423 = vunpack.c.h.b16 %v1247
          %v1424 = vunpack.c.l.b16 %v1248
          %v1425 = vunpack.c.l.b16 %v1249
          %v1426 = vunpack.c.h.b16 %v1249
          %v1427 = vunpack.c.l.b16 %v1250
          %v1428 = vunpack.c.l.b16 %v1251
          %v1429 = vunpack.c.h.b16 %v1251
          %v1430 = vunpack.c.l.b16 %v1252
          %v1431 = vunpack.c.l.b16 %v1253
          %v1432 = vunpack.c.h.b16 %v1253
          %v1433 = vunpack.c.l.b16 %v1254
          %v1434 = vunpack.c.l.b16 %v1255
          %v1435 = vunpack.c.h.b16 %v1255
          %v1436 = vunpack.c.l.b16 %v1256
          %v1437 = vunpack.c.l.b16 %v1257
          %v1438 = vunpack.c.h.b16 %v1257
          %v1439 = vunpack.c.l.b16 %v1258
          %v1440 = vunpack.c.l.b16 %v1259
          %v1441 = vunpack.c.h.b16 %v1259
          %v1442 = vunpack.c.l.b16 %v1260
          %v1443 = vunpack.c.l.b16 %v1261
          %v1444 = vunpack.c.h.b16 %v1261
          %v1445 = vunpack.c.l.b16 %v1262
          %v1446 = vunpack.c.l.b16 %v1263
          %v1447 = vunpack.c.h.b16 %v1263
          %v1448 = vunpack.c.l.b16 %v1264
          %v1449 = vunpack.c.l.b16 %v1265
          %v1450 = vunpack.c.h.b16 %v1265
          %v1451 = vunpack.c.l.b16 %v1266
          %v1452 = vunpack.c.l.b16 %v1267
          %v1453 = vunpack.c.h.b16 %v1267
          %v1454 = vunpack.c.l.b16 %v1268
          %v1455 = vunpack.c.l.b16 %v1269
          %v1456 = vunpack.c.h.b16 %v1269
          %v1457 = vunpack.c.l.b16 %v1270
          %v1458 = vunpack.c.l.b16 %v1271
          %v1459 = vunpack.c.h.b16 %v1271
          %v1460 = vunpack.c.l.b16 %v1272
          %v1461 = vunpack.c.l.b16 %v1273
          %v1462 = vunpack.c.h.b16 %v1273
          %v1463 = vunpack.c.l.b16 %v1274
          %v1464 = vunpack.c.l.b16 %v1275
          %v1465 = vunpack.c.h.b16 %v1275
          %v1466 = vunpack.c.l.b16 %v1276
          %v1467 = vunpack.c.l.b16 %v1277
          %v1468 = vunpack.c.h.b16 %v1277
          %v1469 = vunpack.c.l.b16 %v1278
          %v1470 = vunpack.c.l.b16 %v1279
          %v1471 = vunpack.c.h.b16 %v1279
          %v1472 = vunpack.c.l.b16 %v1280
          %v1473 = vunpack.c.l.b16 %v1281
          %v1474 = vunpack.c.h.b16 %v1281
          %v1475 = vunpack.c.l.b16 %v1282
          %v1476 = vunpack.c.l.b16 %v1283
          %v1477 = vunpack.c.h.b16 %v1283
          %v1478 = vunpack.c.l.b16 %v1284
          %v1479 = vunpack.c.l.b16 %v1285
          %v1480 = vunpack.c.h.b16 %v1285
          %v1481 = vunpack.c.l.b16 %v1286
          %v1482 = vunpack.c.l.b16 %v1287
          %v1483 = vunpack.c.h.b16 %v1287
          %v1484 = vunpack.c.l.b16 %v1288
          %v1485 = vunpack.c.l.b16 %v1289
          %v1486 = vunpack.c.h.b16 %v1289
          %v1487 = vunpack.c.l.b16 %v1290
          %v1488 = vpack.c.b16 %v1395, %v1392
          %v1489 = vpack.c.b16 %v1396, %v1393
          %v1490 = vpack.c.b16 %v1397, %v1394
          %v1491 = vpack.c.b16 %v1401, %v1398
          %v1492 = vpack.c.b16 %v1402, %v1399
          %v1493 = vpack.c.b16 %v1403, %v1400
          %v1494 = vpack.c.b16 %v1407, %v1404
          %v1495 = vpack.c.b16 %v1408, %v1405
          %v1496 = vpack.c.b16 %v1409, %v1406
          %v1497 = vpack.c.b16 %v1413, %v1410
          %v1498 = vpack.c.b16 %v1414, %v1411
          %v1499 = vpack.c.b16 %v1415, %v1412
          %v1500 = vpack.c.b16 %v1419, %v1416
          %v1501 = vpack.c.b16 %v1420, %v1417
          %v1502 = vpack.c.b16 %v1421, %v1418
          %v1503 = vpack.c.b16 %v1425, %v1422
          %v1504 = vpack.c.b16 %v1426, %v1423
          %v1505 = vpack.c.b16 %v1427, %v1424
          %v1506 = vpack.c.b16 %v1431, %v1428
          %v1507 = vpack.c.b16 %v1432, %v1429
          %v1508 = vpack.c.b16 %v1433, %v1430
          %v1509 = vpack.c.b16 %v1437, %v1434
          %v1510 = vpack.c.b16 %v1438, %v1435
          %v1511 = vpack.c.b16 %v1439, %v1436
          %v1512 = vpack.c.b16 %v1443, %v1440
          %v1513 = vpack.c.b16 %v1444, %v1441
          %v1514 = vpack.c.b16 %v1445, %v1442
          %v1515 = vpack.c.b16 %v1449, %v1446
          %v1516 = vpack.c.b16 %v1450, %v1447
          %v1517 = vpack.c.b16 %v1451, %v1448
          %v1518 = vpack.c.b16 %v1455, %v1452
          %v1519 = vpack.c.b16 %v1456, %v1453
          %v1520 = vpack.c.b16 %v1457, %v1454
          %v1521 = vpack.c.b16 %v1461, %v1458
          %v1522 = vpack.c.b16 %v1462, %v1459
          %v1523 = vpack.c.b16 %v1463, %v1460
          %v1524 = vpack.c.b16 %v1467, %v1464
          %v1525 = vpack.c.b16 %v1468, %v1465
          %v1526 = vpack.c.b16 %v1469, %v1466
          %v1527 = vpack.c.b16 %v1473, %v1470
          %v1528 = vpack.c.b16 %v1474, %v1471
          %v1529 = vpack.c.b16 %v1475, %v1472
          %v1530 = vpack.c.b16 %v1479, %v1476
          %v1531 = vpack.c.b16 %v1480, %v1477
          %v1532 = vpack.c.b16 %v1481, %v1478
          %v1533 = vpack.c.b16 %v1485, %v1482
          %v1534 = vpack.c.b16 %v1486, %v1483
          %v1535 = vpack.c.b16 %v1487, %v1484
          %1584 = vmatprep.subr.bf16.mxu0 %v1510
          %1585 = vmatpush1.bf16.msra.mxu0 %v1509
          %1586 = vmatprep.subr.bf16.mxu0 %v1507
          %1587 = vmatpush1.bf16.msra.mxu0 %v1506
          %1588 = vmatprep.subr.bf16.mxu0 %v1504
          %1589 = vmatpush1.bf16.msra.mxu0 %v1503
          %1590 = vmatprep.subr.bf16.mxu0 %v1501
          %1591 = vmatpush1.bf16.msra.mxu0 %v1500
          %1592 = vmatprep.subr.bf16.mxu0 %v1498
          %1593 = vmatpush1.bf16.msra.mxu0 %v1497
          %1594 = vmatprep.subr.bf16.mxu0 %v1495
          %1595 = vmatpush1.bf16.msra.mxu0 %v1494
          %1596 = vmatprep.subr.bf16.mxu0 %v1492
          %1597 = vmatpush1.bf16.msra.mxu0 %v1491
          %1598 = vmatprep.subr.bf16.mxu0 %v1489
          %1599 = vmatpush1.bf16.msra.mxu0 %v1488
          %1600 = vmatprep.subr.bf16.mxu0 %v1534
          %1601 = vmatpush2.bf16.msra.mxu0 %v1533
          %1602 = vmatprep.subr.bf16.mxu0 %v1531
          %1603 = vmatpush2.bf16.msra.mxu0 %v1530
          %1604 = vmatprep.subr.bf16.mxu0 %v1528
          %1605 = vmatpush2.bf16.msra.mxu0 %v1527
          %1606 = vmatprep.subr.bf16.mxu0 %v1525
          %1607 = vmatpush2.bf16.msra.mxu0 %v1524
          %1608 = vmatprep.subr.bf16.mxu0 %v1522
          %1609 = vmatpush2.bf16.msra.mxu0 %v1521
          %1610 = vmatprep.subr.bf16.mxu0 %v1519
          %1611 = vmatpush2.bf16.msra.mxu0 %v1518
          %1612 = vmatprep.subr.bf16.mxu0 %v1516
          %1613 = vmatpush2.bf16.msra.mxu0 %v1515
          %1614 = vmatprep.subr.bf16.mxu0 %v1513
          %1615 = vmatpush2.bf16.msra.mxu0 %v1512
          %1616 = vmatprep.mubr.bf16.mxu0 %v1321
          %1617 = vmatmul.mubr.bf16.gmra.mxu0 %v1320
          %v1618 = vpop.f32.mrf.mxu0
          %v1619 = vadd.f32 %v1296, %v1618
          %v1620 = vpop.f32.mrf.mxu0
          %v1621 = vadd.f32 %v1300, %v1620
          %v1622 = vpop.f32.mrf.mxu0
          %v1623 = vadd.f32 %v1296, %v1622
          %v1624 = vpop.f32.mrf.mxu0
          %v1625 = vadd.f32 %v1300, %v1624
          %1626 = vmatprep.mubr.bf16.mxu0 %v1323
          %1627 = vmatmul.mubr.bf16.gmra.mxu0 %v1322
          %v1628 = vpop.f32.mrf.mxu0
          %v1629 = vadd.f32 %v1296, %v1628
          %v1630 = vpop.f32.mrf.mxu0
          %v1631 = vadd.f32 %v1300, %v1630
          %v1632 = vpop.f32.mrf.mxu0
          %v1633 = vadd.f32 %v1296, %v1632
          %v1634 = vpop.f32.mrf.mxu0
          %v1635 = vadd.f32 %v1300, %v1634
          %1636 = vdwg.mxu0
          %1637 = vmatprep.subr.bf16.mxu0 0
          %1638 = vmatpush1.bf16.msra.mxu0 %v1511
          %1639 = vmatprep.subr.bf16.mxu0 0
          %1640 = vmatpush1.bf16.msra.mxu0 %v1508
          %1641 = vmatprep.subr.bf16.mxu0 0
          %1642 = vmatpush1.bf16.msra.mxu0 %v1505
          %1643 = vmatprep.subr.bf16.mxu0 0
          %1644 = vmatpush1.bf16.msra.mxu0 %v1502
          %1645 = vmatprep.subr.bf16.mxu0 0
          %1646 = vmatpush1.bf16.msra.mxu0 %v1499
          %1647 = vmatprep.subr.bf16.mxu0 0
          %1648 = vmatpush1.bf16.msra.mxu0 %v1496
          %1649 = vmatprep.subr.bf16.mxu0 0
          %1650 = vmatpush1.bf16.msra.mxu0 %v1493
          %1651 = vmatprep.subr.bf16.mxu0 0
          %1652 = vmatpush1.bf16.msra.mxu0 %v1490
          %1653 = vmatprep.subr.bf16.mxu0 0
          %1654 = vmatpush2.bf16.msra.mxu0 %v1535
          %1655 = vmatprep.subr.bf16.mxu0 0
          %1656 = vmatpush2.bf16.msra.mxu0 %v1532
          %1657 = vmatprep.subr.bf16.mxu0 0
          %1658 = vmatpush2.bf16.msra.mxu0 %v1529
          %1659 = vmatprep.subr.bf16.mxu0 0
          %1660 = vmatpush2.bf16.msra.mxu0 %v1526
          %1661 = vmatprep.subr.bf16.mxu0 0
          %1662 = vmatpush2.bf16.msra.mxu0 %v1523
          %1663 = vmatprep.subr.bf16.mxu0 0
          %1664 = vmatpush2.bf16.msra.mxu0 %v1520
          %1665 = vmatprep.subr.bf16.mxu0 0
          %1666 = vmatpush2.bf16.msra.mxu0 %v1517
          %1667 = vmatprep.subr.bf16.mxu0 0
          %1668 = vmatpush2.bf16.msra.mxu0 %v1514
          %1669 = vmatprep.mubr.bf16.mxu0 %v1321
          %1670 = vmatmul.mubr.bf16.gmra.mxu0 %v1320
          %v1671 = vpop.f32.mrf.mxu0
          %v1672 = vadd.f32 %v1304, %v1671
          %v1673 = vpop.f32.mrf.mxu0
          %v1674 = vpop.f32.mrf.mxu0
          %v1675 = vadd.f32 %v1304, %v1674
          %v1676 = vpop.f32.mrf.mxu0
          %1677 = vmatprep.mubr.bf16.mxu0 %v1323
          %1678 = vmatmul.mubr.bf16.gmra.mxu0 %v1322
          %v1679 = vpop.f32.mrf.mxu0
          %v1680 = vadd.f32 %v1304, %v1679
          %v1681 = vpop.f32.mrf.mxu0
          %v1682 = vpop.f32.mrf.mxu0
          %v1683 = vadd.f32 %v1304, %v1682
          %v1684 = vpop.f32.mrf.mxu0
          %1685 = vdwg.mxu0
          %v1686 = vpack.c.bf16 %v1623, %v1619
          %v1687 = vpack.c.bf16 %v1625, %v1621
          %v1688 = vpack.c.bf16 %v1675, %v1672
          %v1689 = vpack.c.bf16 %v1633, %v1629
          %v1690 = vpack.c.bf16 %v1635, %v1631
          %v1691 = vpack.c.bf16 %v1683, %v1680
          %1692 = vmatprep.subr.bf16.mxu0 0
          %1693 = vmatpush1.bf16.xpose.msra.mxu0 0
          %1694 = vmatprep.subr.bf16.mxu0 0
          %1695 = vmatpush1.bf16.xpose.msra.mxu0 0
          %1696 = vmatprep.subr.bf16.mxu0 0
          %1697 = vmatpush1.bf16.xpose.msra.mxu0 0
          %1698 = vmatprep.subr.bf16.mxu0 0
          %1699 = vmatpush1.bf16.xpose.msra.mxu0 0
          %1700 = vmatprep.subr.bf16.mxu0 0
          %1701 = vmatpush1.bf16.xpose.msra.mxu0 0
          %1702 = vmatprep.subr.bf16.mxu0 0
          %1703 = vmatpush1.bf16.xpose.msra.mxu0 0
          %1704 = vmatprep.subr.bf16.mxu0 0
          %1705 = vmatpush1.bf16.xpose.msra.mxu0 0
          %1706 = vmatprep.subr.bf16.mxu0 0
          %1707 = vmatpush1.bf16.xpose.msra.mxu0 %v1687
          %1708 = vmatprep.subr.bf16.mxu0 0
          %1709 = vmatpush2.bf16.xpose.msra.mxu0 0
          %1710 = vmatprep.subr.bf16.mxu0 0
          %1711 = vmatpush2.bf16.xpose.msra.mxu0 0
          %1712 = vmatprep.subr.bf16.mxu0 0
          %1713 = vmatpush2.bf16.xpose.msra.mxu0 0
          %1714 = vmatprep.subr.bf16.mxu0 0
          %1715 = vmatpush2.bf16.xpose.msra.mxu0 0
          %1716 = vmatprep.subr.bf16.mxu0 0
          %1717 = vmatpush2.bf16.xpose.msra.mxu0 0
          %1718 = vmatprep.subr.bf16.mxu0 0
          %1719 = vmatpush2.bf16.xpose.msra.mxu0 0
          %1720 = vmatprep.subr.bf16.mxu0 0
          %1721 = vmatpush2.bf16.xpose.msra.mxu0 0
          %1722 = vmatprep.subr.bf16.mxu0 0
          %1723 = vmatpush2.bf16.xpose.msra.mxu0 0
          %1724 = vmatprep.mubr.bf16.mxu0 0
          %1725 = vmatmul.mubr.bf16.gmra.mxu0 %v1686
          %v1726 = vpop.f32.mrf.mxu0
          %v1727 = vadd.f32 0.0, %v1726
          %v1728 = vpop.f32.mrf.mxu0
          %v1729 = vpop.f32.mrf.mxu0
          %v1730 = vadd.f32 0.0, %v1729
          %v1731 = vpop.f32.mrf.mxu0
          %1732 = vdwg.mxu0
          %1733 = vmatprep.subr.bf16.mxu0 0
          %1734 = vmatpush1.bf16.xpose.msra.mxu0 0
          %1735 = vmatprep.subr.bf16.mxu0 0
          %1736 = vmatpush1.bf16.xpose.msra.mxu0 0
          %1737 = vmatprep.subr.bf16.mxu0 0
          %1738 = vmatpush1.bf16.xpose.msra.mxu0 0
          %1739 = vmatprep.subr.bf16.mxu0 0
          %1740 = vmatpush1.bf16.xpose.msra.mxu0 0
          %1741 = vmatprep.subr.bf16.mxu0 0
          %1742 = vmatpush1.bf16.xpose.msra.mxu0 0
          %1743 = vmatprep.subr.bf16.mxu0 0
          %1744 = vmatpush1.bf16.xpose.msra.mxu0 0
          %1745 = vmatprep.subr.bf16.mxu0 0
          %1746 = vmatpush1.bf16.xpose.msra.mxu0 0
          %1747 = vmatprep.subr.bf16.mxu0 0
          %1748 = vmatpush1.bf16.xpose.msra.mxu0 %v1690
          %1749 = vmatprep.subr.bf16.mxu0 0
          %1750 = vmatpush2.bf16.xpose.msra.mxu0 0
          %1751 = vmatprep.subr.bf16.mxu0 0
          %1752 = vmatpush2.bf16.xpose.msra.mxu0 0
          %1753 = vmatprep.subr.bf16.mxu0 0
          %1754 = vmatpush2.bf16.xpose.msra.mxu0 0
          %1755 = vmatprep.subr.bf16.mxu0 0
          %1756 = vmatpush2.bf16.xpose.msra.mxu0 0
          %1757 = vmatprep.subr.bf16.mxu0 0
          %1758 = vmatpush2.bf16.xpose.msra.mxu0 0
          %1759 = vmatprep.subr.bf16.mxu0 0
          %1760 = vmatpush2.bf16.xpose.msra.mxu0 0
          %1761 = vmatprep.subr.bf16.mxu0 0
          %1762 = vmatpush2.bf16.xpose.msra.mxu0 0
          %1763 = vmatprep.subr.bf16.mxu0 0
          %1764 = vmatpush2.bf16.xpose.msra.mxu0 0
          %1765 = vmatprep.mubr.bf16.mxu0 0
          %1766 = vmatmul.mubr.bf16.gmra.mxu0 %v1689
          %v1767 = vpop.f32.mrf.mxu0
          %v1768 = vadd.f32 0.0, %v1767
          %v1769 = vpop.f32.mrf.mxu0
          %v1770 = vpop.f32.mrf.mxu0
          %v1771 = vadd.f32 0.0, %v1770
          %v1772 = vpop.f32.mrf.mxu0
          %1773 = vdwg.mxu0
          %vm1774 = vcmask 130048
          %v1775 = vsel %vm1774, %v1727, -inf
          %1776 = vmax.xlane.f32.xlu0 %v1775
          %v1777 = vpop.xlane.xlu0 %1776
          %v1778 = vsel %vm1774, %v1730, -inf
          %1779 = vmax.xlane.f32.xlu0 %v1778
          %v1780 = vpop.xlane.xlu0 %1779
          %v1781 = vsel %vm1774, %v1768, -inf
          %1782 = vmax.xlane.f32.xlu0 %v1781
          %v1783 = vpop.xlane.xlu0 %1782
          %v1784 = vsel %vm1774, %v1771, -inf
          %1785 = vmax.xlane.f32.xlu0 %v1784
          %v1786 = vpop.xlane.xlu0 %1785
          %v1787 = vsub.f32 %v1727, %v1777
          %v1788 = vsub.f32 %v1730, %v1780
          %v1789 = vsub.f32 %v1768, %v1783
          %v1790 = vsub.f32 %v1771, %v1786
          %v1791 = vmul.f32 %v1787, 1.442695
          %v1792 = vpow.pop %v1791
          %v1793 = vmul.f32 %v1788, 1.442695
          %v1794 = vpow.pop %v1793
          %v1795 = vmul.f32 %v1789, 1.442695
          %v1796 = vpow.pop %v1795
          %v1797 = vmul.f32 %v1790, 1.442695
          %v1798 = vpow.pop %v1797
          %v1799 = vsel %vm1774, %v1792, 0.0
          %1800 = vadd.xlane.f32.xlu0 %v1799
          %v1801 = vpop.xlane.xlu0 %1800
          %v1802 = vsel %vm1774, %v1794, 0.0
          %1803 = vadd.xlane.f32.xlu0 %v1802
          %v1804 = vpop.xlane.xlu0 %1803
          %v1805 = vsel %vm1774, %v1796, 0.0
          %1806 = vadd.xlane.f32.xlu0 %v1805
          %v1807 = vpop.xlane.xlu0 %1806
          %v1808 = vsel %vm1774, %v1798, 0.0
          %1809 = vadd.xlane.f32.xlu0 %v1808
          %v1810 = vpop.xlane.xlu0 %1809
          %v1811 = vrcp.pop %v1801
          %v1812 = vrcp.pop %v1804
          %v1813 = vrcp.pop %v1807
          %v1814 = vrcp.pop %v1810
          %v1815 = vmul.f32 %v1792, %v1811
          %v1816 = vmul.f32 %v1794, %v1812
          %v1817 = vmul.f32 %v1796, %v1813
          %v1818 = vmul.f32 %v1798, %v1814
          %v1819 = vpack.c.bf16 %v1816, %v1815
          %v1820 = vpack.c.bf16 %v1818, %v1817
          %v1822 = vsel %vm1774, %v1819, 0
          %1824 = vmatprep.subr.bf16.mxu0 0
          %1825 = vmatpush1.bf16.msra.mxu0 0
          %1826 = vmatprep.subr.bf16.mxu0 0
          %1827 = vmatpush1.bf16.msra.mxu0 0
          %1828 = vmatprep.subr.bf16.mxu0 0
          %1829 = vmatpush1.bf16.msra.mxu0 0
          %1830 = vmatprep.subr.bf16.mxu0 0
          %1831 = vmatpush1.bf16.msra.mxu0 0
          %1832 = vmatprep.subr.bf16.mxu0 0
          %1833 = vmatpush1.bf16.msra.mxu0 0
          %1834 = vmatprep.subr.bf16.mxu0 0
          %1835 = vmatpush1.bf16.msra.mxu0 0
          %1836 = vmatprep.subr.bf16.mxu0 0
          %1837 = vmatpush1.bf16.msra.mxu0 0
          %1838 = vmatprep.subr.bf16.mxu0 0
          %1839 = vmatpush1.bf16.msra.mxu0 %v1688
          %1840 = vmatprep.subr.bf16.mxu0 0
          %1841 = vmatpush2.bf16.msra.mxu0 0
          %1842 = vmatprep.subr.bf16.mxu0 0
          %1843 = vmatpush2.bf16.msra.mxu0 0
          %1844 = vmatprep.subr.bf16.mxu0 0
          %1845 = vmatpush2.bf16.msra.mxu0 0
          %1846 = vmatprep.subr.bf16.mxu0 0
          %1847 = vmatpush2.bf16.msra.mxu0 0
          %1848 = vmatprep.subr.bf16.mxu0 0
          %1849 = vmatpush2.bf16.msra.mxu0 0
          %1850 = vmatprep.subr.bf16.mxu0 0
          %1851 = vmatpush2.bf16.msra.mxu0 0
          %1852 = vmatprep.subr.bf16.mxu0 0
          %1853 = vmatpush2.bf16.msra.mxu0 0
          %1854 = vmatprep.subr.bf16.mxu0 0
          %1855 = vmatpush2.bf16.msra.mxu0 0
          %1856 = vmatprep.mubr.bf16.mxu0 0
          %1857 = vmatmul.mubr.bf16.gmra.mxu0 %v1822
          %v1858 = vpop.f32.mrf.mxu0
          %v1859 = vadd.f32 0.0, %v1858
          %v1860 = vpop.f32.mrf.mxu0
          %v1861 = vpop.f32.mrf.mxu0
          %v1862 = vadd.f32 0.0, %v1861
          %v1863 = vpop.f32.mrf.mxu0
          %1864 = vdwg.mxu0
          %v1866 = vsel %vm1774, %v1820, 0
          %1868 = vmatprep.subr.bf16.mxu0 0
          %1869 = vmatpush1.bf16.msra.mxu0 0
          %1870 = vmatprep.subr.bf16.mxu0 0
          %1871 = vmatpush1.bf16.msra.mxu0 0
          %1872 = vmatprep.subr.bf16.mxu0 0
          %1873 = vmatpush1.bf16.msra.mxu0 0
          %1874 = vmatprep.subr.bf16.mxu0 0
          %1875 = vmatpush1.bf16.msra.mxu0 0
          %1876 = vmatprep.subr.bf16.mxu0 0
          %1877 = vmatpush1.bf16.msra.mxu0 0
          %1878 = vmatprep.subr.bf16.mxu0 0
          %1879 = vmatpush1.bf16.msra.mxu0 0
          %1880 = vmatprep.subr.bf16.mxu0 0
          %1881 = vmatpush1.bf16.msra.mxu0 0
          %1882 = vmatprep.subr.bf16.mxu0 0
          %1883 = vmatpush1.bf16.msra.mxu0 %v1691
          %1884 = vmatprep.subr.bf16.mxu0 0
          %1885 = vmatpush2.bf16.msra.mxu0 0
          %1886 = vmatprep.subr.bf16.mxu0 0
          %1887 = vmatpush2.bf16.msra.mxu0 0
          %1888 = vmatprep.subr.bf16.mxu0 0
          %1889 = vmatpush2.bf16.msra.mxu0 0
          %1890 = vmatprep.subr.bf16.mxu0 0
          %1891 = vmatpush2.bf16.msra.mxu0 0
          %1892 = vmatprep.subr.bf16.mxu0 0
          %1893 = vmatpush2.bf16.msra.mxu0 0
          %1894 = vmatprep.subr.bf16.mxu0 0
          %1895 = vmatpush2.bf16.msra.mxu0 0
          %1896 = vmatprep.subr.bf16.mxu0 0
          %1897 = vmatpush2.bf16.msra.mxu0 0
          %1898 = vmatprep.subr.bf16.mxu0 0
          %1899 = vmatpush2.bf16.msra.mxu0 0
          %1900 = vmatprep.mubr.bf16.mxu0 0
          %1901 = vmatmul.mubr.bf16.gmra.mxu0 %v1866
          %v1902 = vpop.f32.mrf.mxu0
          %v1903 = vadd.f32 0.0, %v1902
          %v1904 = vpop.f32.mrf.mxu0
          %v1905 = vpop.f32.mrf.mxu0
          %v1906 = vadd.f32 0.0, %v1905
          %v1907 = vpop.f32.mrf.mxu0
          %1908 = vdwg.mxu0
          %v1909 = vpack.c.bf16 %v1862, %v1859
          %v1910 = vpack.c.bf16 %v1906, %v1903
          %v1911 = vld [vmem:[#allocation4] sm:$0xff]
          %v1912 = vld [vmem:[#allocation4 + $0x8] sm:$0xff]
          %v1913 = vld [vmem:[#allocation4 + $0x10] sm:$0xff]
          %v1914 = vld [vmem:[#allocation4 + $0x18] sm:$0xff]
          %v1915 = vld [vmem:[#allocation4 + $0x20] sm:$0xff]
          %v1916 = vld [vmem:[#allocation4 + $0x28] sm:$0xff]
          %v1917 = vld [vmem:[#allocation4 + $0x30] sm:$0xff]
          %v1918 = vld [vmem:[#allocation4 + $0x38] sm:$0xff]
          %v1919 = vld [vmem:[%s842] sm:$0xff]
          %v1920 = vld [vmem:[%s842 + $0x8] sm:$0xff]
          %v1921 = vld [vmem:[%s842 + $0x10] sm:$0xff]
          %v1922 = vld [vmem:[%s842 + $0x18] sm:$0xff]
          %v1923 = vld [vmem:[%s842 + $0x20] sm:$0xff]
          %v1924 = vld [vmem:[%s842 + $0x28] sm:$0xff]
          %v1925 = vld [vmem:[%s842 + $0x30] sm:$0xff]
          %v1926 = vld [vmem:[%s842 + $0x38] sm:$0xff]
          %v1927 = vld [vmem:[%s842 + $0x40] sm:$0xff]
          %v1928 = vld [vmem:[%s842 + $0x48] sm:$0xff]
          %v1929 = vld [vmem:[%s842 + $0x50] sm:$0xff]
          %v1930 = vld [vmem:[%s842 + $0x58] sm:$0xff]
          %v1931 = vld [vmem:[%s842 + $0x60] sm:$0xff]
          %v1932 = vld [vmem:[%s842 + $0x68] sm:$0xff]
          %v1933 = vld [vmem:[%s842 + $0x70] sm:$0xff]
          %v1934 = vld [vmem:[%s842 + $0x78] sm:$0xff]
          %v1951 = vunpack.c.l.b16 %v1919
          %v1952 = vunpack.c.h.b16 %v1919
          %v1953 = vunpack.c.l.b16 %v1920
          %v1954 = vunpack.c.h.b16 %v1920
          %v1955 = vunpack.c.l.b16 %v1921
          %v1956 = vunpack.c.h.b16 %v1921
          %v1957 = vunpack.c.l.b16 %v1922
          %v1958 = vunpack.c.h.b16 %v1922
          %v1959 = vunpack.c.l.b16 %v1923
          %v1960 = vunpack.c.h.b16 %v1923
          %v1961 = vunpack.c.l.b16 %v1924
          %v1962 = vunpack.c.h.b16 %v1924
          %v1963 = vunpack.c.l.b16 %v1925
          %v1964 = vunpack.c.h.b16 %v1925
          %v1965 = vunpack.c.l.b16 %v1926
          %v1966 = vunpack.c.h.b16 %v1926
          %v1967 = vunpack.c.l.b16 %v1927
          %v1968 = vunpack.c.h.b16 %v1927
          %v1969 = vunpack.c.l.b16 %v1928
          %v1970 = vunpack.c.h.b16 %v1928
          %v1971 = vunpack.c.l.b16 %v1929
          %v1972 = vunpack.c.h.b16 %v1929
          %v1973 = vunpack.c.l.b16 %v1930
          %v1974 = vunpack.c.h.b16 %v1930
          %v1975 = vunpack.c.l.b16 %v1931
          %v1976 = vunpack.c.h.b16 %v1931
          %v1977 = vunpack.c.l.b16 %v1932
          %v1978 = vunpack.c.h.b16 %v1932
          %v1979 = vunpack.c.l.b16 %v1933
          %v1980 = vunpack.c.h.b16 %v1933
          %v1981 = vunpack.c.l.b16 %v1934
          %v1982 = vunpack.c.h.b16 %v1934
          %v1983 = vpack.c.b16 %v1953, %v1951
          %v1984 = vpack.c.b16 %v1954, %v1952
          %v1985 = vpack.c.b16 %v1957, %v1955
          %v1986 = vpack.c.b16 %v1958, %v1956
          %v1987 = vpack.c.b16 %v1961, %v1959
          %v1988 = vpack.c.b16 %v1962, %v1960
          %v1989 = vpack.c.b16 %v1965, %v1963
          %v1990 = vpack.c.b16 %v1966, %v1964
          %v1991 = vpack.c.b16 %v1969, %v1967
          %v1992 = vpack.c.b16 %v1970, %v1968
          %v1993 = vpack.c.b16 %v1973, %v1971
          %v1994 = vpack.c.b16 %v1974, %v1972
          %v1995 = vpack.c.b16 %v1977, %v1975
          %v1996 = vpack.c.b16 %v1978, %v1976
          %v1997 = vpack.c.b16 %v1981, %v1979
          %v1998 = vpack.c.b16 %v1982, %v1980
          %2015 = vmatprep.subr.bf16.mxu0 %v1998
          %2016 = vmatpush1.bf16.msra.mxu0 %v1997
          %2017 = vmatprep.subr.bf16.mxu0 %v1996
          %2018 = vmatpush1.bf16.msra.mxu0 %v1995
          %2019 = vmatprep.subr.bf16.mxu0 %v1994
          %2020 = vmatpush1.bf16.msra.mxu0 %v1993
          %2021 = vmatprep.subr.bf16.mxu0 %v1992
          %2022 = vmatpush1.bf16.msra.mxu0 %v1991
          %2023 = vmatprep.subr.bf16.mxu0 %v1990
          %2024 = vmatpush1.bf16.msra.mxu0 %v1989
          %2025 = vmatprep.subr.bf16.mxu0 %v1988
          %2026 = vmatpush1.bf16.msra.mxu0 %v1987
          %2027 = vmatprep.subr.bf16.mxu0 %v1986
          %2028 = vmatpush1.bf16.msra.mxu0 %v1985
          %2029 = vmatprep.subr.bf16.mxu0 %v1984
          %2030 = vmatpush1.bf16.msra.mxu0 %v1983
          %2031 = vmatprep.subr.bf16.mxu0 0
          %2032 = vmatpush2.bf16.msra.mxu0 0
          %2033 = vmatprep.subr.bf16.mxu0 0
          %2034 = vmatpush2.bf16.msra.mxu0 0
          %2035 = vmatprep.subr.bf16.mxu0 0
          %2036 = vmatpush2.bf16.msra.mxu0 0
          %2037 = vmatprep.subr.bf16.mxu0 0
          %2038 = vmatpush2.bf16.msra.mxu0 0
          %2039 = vmatprep.subr.bf16.mxu0 0
          %2040 = vmatpush2.bf16.msra.mxu0 0
          %2041 = vmatprep.subr.bf16.mxu0 0
          %2042 = vmatpush2.bf16.msra.mxu0 0
          %2043 = vmatprep.subr.bf16.mxu0 0
          %2044 = vmatpush2.bf16.msra.mxu0 0
          %2045 = vmatprep.subr.bf16.mxu0 0
          %2046 = vmatpush2.bf16.msra.mxu0 0
          %2047 = vmatprep.mubr.bf16.mxu0 0
          %2048 = vmatmul.mubr.bf16.gmra.mxu0 %v1909
          %v2049 = vpop.f32.mrf.mxu0
          %v2050 = vadd.f32 0.0, %v2049
          %v2051 = vpop.f32.mrf.mxu0
          %v2052 = vadd.f32 0.0, %v2051
          %v2053 = vpop.f32.mrf.mxu0
          %v2054 = vadd.f32 0.0, %v2053
          %v2055 = vpop.f32.mrf.mxu0
          %v2056 = vadd.f32 0.0, %v2055
          %2057 = vmatprep.mubr.bf16.mxu0 0
          %2058 = vmatmul.mubr.bf16.gmra.mxu0 %v1910
          %v2059 = vpop.f32.mrf.mxu0
          %v2060 = vadd.f32 0.0, %v2059
          %v2061 = vpop.f32.mrf.mxu0
          %v2062 = vadd.f32 0.0, %v2061
          %v2063 = vpop.f32.mrf.mxu0
          %v2064 = vadd.f32 0.0, %v2063
          %v2065 = vpop.f32.mrf.mxu0
          %v2066 = vadd.f32 0.0, %v2065
          %2067 = vdwg.mxu0
          %v2068 = vadd.f32 %v1911, %v2050
          %v2069 = vadd.f32 %v1912, %v2052
          %v2070 = vadd.f32 %v1913, %v2054
          %v2071 = vadd.f32 %v1914, %v2056
          %v2072 = vadd.f32 %v1915, %v2060
          %v2073 = vadd.f32 %v1916, %v2062
          %v2074 = vadd.f32 %v1917, %v2064
          %v2075 = vadd.f32 %v1918, %v2066
          %2076 = vst [vmem:[#allocation4] sm:$0xff] %v2068
          %2077 = vst [vmem:[#allocation4 + $0x8] sm:$0xff] %v2069
          %2078 = vst [vmem:[#allocation4 + $0x10] sm:$0xff] %v2070
          %2079 = vst [vmem:[#allocation4 + $0x18] sm:$0xff] %v2071
          %2080 = vst [vmem:[#allocation4 + $0x20] sm:$0xff] %v2072
          %2081 = vst [vmem:[#allocation4 + $0x28] sm:$0xff] %v2073
          %2082 = vst [vmem:[#allocation4 + $0x30] sm:$0xff] %v2074
          %2083 = vst [vmem:[#allocation4 + $0x38] sm:$0xff] %v2075
        $region136: #{tpu_custom_call.1} parent=75 // pred_fallthru
          _
        %p2084 = scmp.eq.s32.totalorder %s50, 1
        // Predicated region
        $region137: #{tpu_custom_call.1} parent=75 // pred_check
          %p2085 = pneg %p2084
        $region138: #{tpu_custom_call.1} parent=75 // pred_check_branch
          %2087 = sbr.rel (%p2085) target = $region140
        $region139: #{tpu_custom_call.1} parent=75 // pred_region
          %v2088 = vld [vmem:[%s806] sm:$0xff]
          %v2091 = vunpack.c.l.s4 1966171168
          %v2092 = vunpack.c.0.s8 %v2091
          %v2093 = vlaneseq
          %v2094 = vshrl.u32 %v2093, 7
          %v2095 = vsub.s32 %v2092, %v2094
          %v2096 = vrot.slane %v2088, %v2095
          %v2097 = vcombine.high %v2096, %v2096
          %v2098 = vld [vmem:[#allocation2] sm:$0xff]
          %v2099 = vld [vmem:[#allocation2 + $0x8] sm:$0xff]
          %v2100 = vld [vmem:[#allocation2 + $0x10] sm:$0xff]
          %v2101 = vld [vmem:[#allocation2 + $0x18] sm:$0xff]
          %v2102 = vld [vmem:[#allocation2 + $0x20] sm:$0xff]
          %v2103 = vld [vmem:[#allocation2 + $0x28] sm:$0xff]
          %v2104 = vld [vmem:[#allocation2 + $0x30] sm:$0xff]
          %v2105 = vld [vmem:[#allocation2 + $0x38] sm:$0xff]
          %v2106 = vld [vmem:[#allocation4] sm:$0xff]
          %v2107 = vld [vmem:[#allocation4 + $0x8] sm:$0xff]
          %v2108 = vld [vmem:[#allocation4 + $0x10] sm:$0xff]
          %v2109 = vld [vmem:[#allocation4 + $0x18] sm:$0xff]
          %v2110 = vld [vmem:[#allocation4 + $0x20] sm:$0xff]
          %v2111 = vld [vmem:[#allocation4 + $0x28] sm:$0xff]
          %v2112 = vld [vmem:[#allocation4 + $0x30] sm:$0xff]
          %v2113 = vld [vmem:[#allocation4 + $0x38] sm:$0xff]
          %v2114 = vld [vmem:[%s851] sm:$0x3]
          %v2116 = vlaneseq
          %v2117 = vshrl.u32 %v2116, 7
          %v2118 = vsub.s32 0, %v2117
          %v2119 = vrot.slane %v2114, %v2118
          %v2120 = vlaneseq
          %v2121 = vshrl.u32 %v2120, 7
          %v2122 = vsub.s32 1, %v2121
          %v2123 = vrot.slane %v2114, %v2122
          %v2126 = vadd.f32 %v2106, %v2119
          %v2127 = vadd.f32 %v2107, %v2123
          %v2128 = vadd.f32 %v2108, %v2119
          %v2129 = vadd.f32 %v2109, %v2123
          %v2130 = vadd.f32 %v2110, %v2119
          %v2131 = vadd.f32 %v2111, %v2123
          %v2132 = vadd.f32 %v2112, %v2119
          %v2133 = vadd.f32 %v2113, %v2123
          %v2134 = vlaneseq
          %v2135 = vshrl.u32 %v2134, 7
          %v2136 = vsub.s32 0, %v2135
          %v2137 = vrot.slane %v2096, %v2136
          %v2138 = vlaneseq
          %v2139 = vshrl.u32 %v2138, 7
          %v2140 = vsub.s32 1, %v2139
          %v2141 = vrot.slane %v2096, %v2140
          %v2142 = vlaneseq
          %v2143 = vshrl.u32 %v2142, 7
          %v2144 = vsub.s32 0, %v2143
          %v2145 = vrot.slane %v2097, %v2144
          %v2146 = vlaneseq
          %v2147 = vshrl.u32 %v2146, 7
          %v2148 = vsub.s32 1, %v2147
          %v2149 = vrot.slane %v2097, %v2148
          %v2154 = vmul.f32 %v2126, %v2137
          %v2155 = vmul.f32 %v2127, %v2141
          %v2156 = vmul.f32 %v2128, %v2137
          %v2157 = vmul.f32 %v2129, %v2141
          %v2158 = vmul.f32 %v2130, %v2145
          %v2159 = vmul.f32 %v2131, %v2149
          %v2160 = vmul.f32 %v2132, %v2145
          %v2161 = vmul.f32 %v2133, %v2149
          %v2162 = vadd.f32 %v2098, %v2154
          %v2163 = vadd.f32 %v2099, %v2155
          %v2164 = vadd.f32 %v2100, %v2156
          %v2165 = vadd.f32 %v2101, %v2157
          %v2166 = vadd.f32 %v2102, %v2158
          %v2167 = vadd.f32 %v2103, %v2159
          %v2168 = vadd.f32 %v2104, %v2160
          %v2169 = vadd.f32 %v2105, %v2161
          %2170 = vst [vmem:[#allocation2] sm:$0xff] %v2162
          %2171 = vst [vmem:[#allocation2 + $0x8] sm:$0xff] %v2163
          %2172 = vst [vmem:[#allocation2 + $0x10] sm:$0xff] %v2164
          %2173 = vst [vmem:[#allocation2 + $0x18] sm:$0xff] %v2165
          %2174 = vst [vmem:[#allocation2 + $0x20] sm:$0xff] %v2166
          %2175 = vst [vmem:[#allocation2 + $0x28] sm:$0xff] %v2167
          %2176 = vst [vmem:[#allocation2 + $0x30] sm:$0xff] %v2168
          %2177 = vst [vmem:[#allocation2 + $0x38] sm:$0xff] %v2169
          %v2178 = vld [vmem:[%s860] sm:$0x3]
          %v2179 = vld [vmem:[%s869] sm:$0x3]
          %v2180 = vadd.f32 %v2162, %v2163
          %2181 = vadd.xlane.f32.xlu0 %v2180
          %v2182 = vpop.xlane.xlu0 %2181
          %v2183 = vadd.f32 %v2164, %v2165
          %2184 = vadd.xlane.f32.xlu0 %v2183
          %v2185 = vpop.xlane.xlu0 %2184
          %v2186 = vadd.f32 %v2166, %v2167
          %2187 = vadd.xlane.f32.xlu0 %v2186
          %v2188 = vpop.xlane.xlu0 %2187
          %v2189 = vadd.f32 %v2168, %v2169
          %2190 = vadd.xlane.f32.xlu0 %v2189
          %v2191 = vpop.xlane.xlu0 %2190
          %v2192 = vrcp.pop 256.0
          %v2193 = vmul.f32 %v2182, %v2192
          %v2194 = vmul.f32 %v2185, %v2192
          %v2195 = vmul.f32 %v2188, %v2192
          %v2196 = vmul.f32 %v2191, %v2192
          %v2197 = vsub.f32 %v2162, %v2193
          %v2198 = vsub.f32 %v2163, %v2193
          %v2199 = vsub.f32 %v2164, %v2194
          %v2200 = vsub.f32 %v2165, %v2194
          %v2201 = vsub.f32 %v2166, %v2195
          %v2202 = vsub.f32 %v2167, %v2195
          %v2203 = vsub.f32 %v2168, %v2196
          %v2204 = vsub.f32 %v2169, %v2196
          %v2205 = vmul.f32 %v2197, %v2197
          %v2206 = vmul.f32 %v2198, %v2198
          %v2207 = vmul.f32 %v2199, %v2199
          %v2208 = vmul.f32 %v2200, %v2200
          %v2209 = vmul.f32 %v2201, %v2201
          %v2210 = vmul.f32 %v2202, %v2202
          %v2211 = vmul.f32 %v2203, %v2203
          %v2212 = vmul.f32 %v2204, %v2204
          %v2213 = vadd.f32 %v2205, %v2206
          %2214 = vadd.xlane.f32.xlu0 %v2213
          %v2215 = vpop.xlane.xlu0 %2214
          %v2216 = vadd.f32 %v2207, %v2208
          %2217 = vadd.xlane.f32.xlu0 %v2216
          %v2218 = vpop.xlane.xlu0 %2217
          %v2219 = vadd.f32 %v2209, %v2210
          %2220 = vadd.xlane.f32.xlu0 %v2219
          %v2221 = vpop.xlane.xlu0 %2220
          %v2222 = vadd.f32 %v2211, %v2212
          %2223 = vadd.xlane.f32.xlu0 %v2222
          %v2224 = vpop.xlane.xlu0 %2223
          %v2225 = vmul.f32 %v2215, %v2192
          %v2226 = vmul.f32 %v2218, %v2192
          %v2227 = vmul.f32 %v2221, %v2192
          %v2228 = vmul.f32 %v2224, %v2192
          %v2229 = vadd.f32 %v2225, 1e-06
          %v2230 = vadd.f32 %v2226, 1e-06
          %v2231 = vadd.f32 %v2227, 1e-06
          %v2232 = vadd.f32 %v2228, 1e-06
          %v2233 = vrsqrt.pop %v2229
          %v2234 = vrsqrt.pop %v2230
          %v2235 = vrsqrt.pop %v2231
          %v2236 = vrsqrt.pop %v2232
          %v2237 = vmul.f32 %v2197, %v2233
          %v2238 = vmul.f32 %v2198, %v2233
          %v2239 = vmul.f32 %v2199, %v2234
          %v2240 = vmul.f32 %v2200, %v2234
          %v2241 = vmul.f32 %v2201, %v2235
          %v2242 = vmul.f32 %v2202, %v2235
          %v2243 = vmul.f32 %v2203, %v2236
          %v2244 = vmul.f32 %v2204, %v2236
          %v2246 = vlaneseq
          %v2247 = vshrl.u32 %v2246, 7
          %v2248 = vsub.s32 0, %v2247
          %v2249 = vrot.slane %v2178, %v2248
          %v2250 = vlaneseq
          %v2251 = vshrl.u32 %v2250, 7
          %v2252 = vsub.s32 1, %v2251
          %v2253 = vrot.slane %v2178, %v2252
          %v2256 = vmul.f32 %v2237, %v2249
          %v2257 = vmul.f32 %v2238, %v2253
          %v2258 = vmul.f32 %v2239, %v2249
          %v2259 = vmul.f32 %v2240, %v2253
          %v2260 = vmul.f32 %v2241, %v2249
          %v2261 = vmul.f32 %v2242, %v2253
          %v2262 = vmul.f32 %v2243, %v2249
          %v2263 = vmul.f32 %v2244, %v2253
          %v2265 = vlaneseq
          %v2266 = vshrl.u32 %v2265, 7
          %v2267 = vsub.s32 0, %v2266
          %v2268 = vrot.slane %v2179, %v2267
          %v2269 = vlaneseq
          %v2270 = vshrl.u32 %v2269, 7
          %v2271 = vsub.s32 1, %v2270
          %v2272 = vrot.slane %v2179, %v2271
          %v2275 = vadd.f32 %v2256, %v2268
          %v2276 = vadd.f32 %v2257, %v2272
          %v2277 = vadd.f32 %v2258, %v2268
          %v2278 = vadd.f32 %v2259, %v2272
          %v2279 = vadd.f32 %v2260, %v2268
          %v2280 = vadd.f32 %v2261, %v2272
          %v2281 = vadd.f32 %v2262, %v2268
          %v2282 = vadd.f32 %v2263, %v2272
          %v2283 = vpack.c.bf16 %v2277, %v2275
          %v2284 = vpack.c.bf16 %v2278, %v2276
          %v2285 = vpack.c.bf16 %v2281, %v2279
          %v2286 = vpack.c.bf16 %v2282, %v2280
          %v2291 = vunpack.c.l.b16 %v2283
          %v2292 = vunpack.c.l.b16 %v2284
          %v2293 = vunpack.c.h.b16 %v2283
          %v2294 = vunpack.c.h.b16 %v2284
          %v2295 = vunpack.c.l.b16 %v2285
          %v2296 = vunpack.c.l.b16 %v2286
          %v2297 = vunpack.c.h.b16 %v2285
          %v2298 = vunpack.c.h.b16 %v2286
          %v2299 = vpack.c.b16 %v2292, %v2291
          %v2300 = vpack.c.b16 %v2294, %v2293
          %v2301 = vpack.c.b16 %v2296, %v2295
          %v2302 = vpack.c.b16 %v2298, %v2297
          %2307 = vst [vmem:[#allocation3] sm:$0xff] %v2299
          %2308 = vst [vmem:[#allocation3 + $0x8] sm:$0xff] %v2300
          %2309 = vst [vmem:[#allocation3 + $0x10] sm:$0xff] %v2301
          %2310 = vst [vmem:[#allocation3 + $0x18] sm:$0xff] %v2302
          %2311 = vst [vmem:[#allocation4] sm:$0xff] 0.0
          %2312 = vst [vmem:[#allocation4 + $0x8] sm:$0xff] 0.0
          %2313 = vst [vmem:[#allocation4 + $0x10] sm:$0xff] 0.0
          %2314 = vst [vmem:[#allocation4 + $0x18] sm:$0xff] 0.0
          %2315 = vst [vmem:[#allocation4 + $0x20] sm:$0xff] 0.0
          %2316 = vst [vmem:[#allocation4 + $0x28] sm:$0xff] 0.0
          %2317 = vst [vmem:[#allocation4 + $0x30] sm:$0xff] 0.0
          %2318 = vst [vmem:[#allocation4 + $0x38] sm:$0xff] 0.0
        $region140: #{tpu_custom_call.1} parent=75 // pred_fallthru
          _
        %p2319 = scmp.ge.s32.totalorder %s50, 2
        // Predicated region
        $region141: #{tpu_custom_call.1} parent=75 // pred_check
          %p2320 = pneg %p2319
        $region142: #{tpu_custom_call.1} parent=75 // pred_check_branch
          %2322 = sbr.rel (%p2320) target = $region144
        $region143: #{tpu_custom_call.1} parent=75 // pred_region
          %v2323 = vld [vmem:[#allocation3] sm:$0xff]
          %v2324 = vld [vmem:[#allocation3 + $0x8] sm:$0xff]
          %v2325 = vld [vmem:[#allocation3 + $0x10] sm:$0xff]
          %v2326 = vld [vmem:[#allocation3 + $0x18] sm:$0xff]
          %v2327 = vld [vmem:[%s878] sm:$0xff]
          %v2328 = vld [vmem:[%s878 + $0x8] sm:$0xff]
          %v2329 = vld [vmem:[%s878 + $0x10] sm:$0xff]
          %v2330 = vld [vmem:[%s878 + $0x18] sm:$0xff]
          %v2331 = vld [vmem:[%s878 + $0x20] sm:$0xff]
          %v2332 = vld [vmem:[%s878 + $0x28] sm:$0xff]
          %v2333 = vld [vmem:[%s878 + $0x30] sm:$0xff]
          %v2334 = vld [vmem:[%s878 + $0x38] sm:$0xff]
          %v2335 = vld [vmem:[%s878 + $0x40] sm:$0xff]
          %v2336 = vld [vmem:[%s878 + $0x48] sm:$0xff]
          %v2337 = vld [vmem:[%s878 + $0x50] sm:$0xff]
          %v2338 = vld [vmem:[%s878 + $0x58] sm:$0xff]
          %v2339 = vld [vmem:[%s878 + $0x60] sm:$0xff]
          %v2340 = vld [vmem:[%s878 + $0x68] sm:$0xff]
          %v2341 = vld [vmem:[%s878 + $0x70] sm:$0xff]
          %v2342 = vld [vmem:[%s878 + $0x78] sm:$0xff]
          %v2343 = vld [vmem:[%s878 + $0x80] sm:$0xff]
          %v2344 = vld [vmem:[%s878 + $0x88] sm:$0xff]
          %v2345 = vld [vmem:[%s878 + $0x90] sm:$0xff]
          %v2346 = vld [vmem:[%s878 + $0x98] sm:$0xff]
          %v2347 = vld [vmem:[%s878 + $0xa0] sm:$0xff]
          %v2348 = vld [vmem:[%s878 + $0xa8] sm:$0xff]
          %v2349 = vld [vmem:[%s878 + $0xb0] sm:$0xff]
          %v2350 = vld [vmem:[%s878 + $0xb8] sm:$0xff]
          %v2351 = vld [vmem:[%s878 + $0xc0] sm:$0xff]
          %v2352 = vld [vmem:[%s878 + $0xc8] sm:$0xff]
          %v2353 = vld [vmem:[%s878 + $0xd0] sm:$0xff]
          %v2354 = vld [vmem:[%s878 + $0xd8] sm:$0xff]
          %v2355 = vld [vmem:[%s878 + $0xe0] sm:$0xff]
          %v2356 = vld [vmem:[%s878 + $0xe8] sm:$0xff]
          %v2357 = vld [vmem:[%s878 + $0xf0] sm:$0xff]
          %v2358 = vld [vmem:[%s878 + $0xf8] sm:$0xff]
          %v2359 = vld [vmem:[%s878 + $0x100] sm:$0xff]
          %v2360 = vld [vmem:[%s878 + $0x108] sm:$0xff]
          %v2361 = vld [vmem:[%s878 + $0x110] sm:$0xff]
          %v2362 = vld [vmem:[%s878 + $0x118] sm:$0xff]
          %v2363 = vld [vmem:[%s878 + $0x120] sm:$0xff]
          %v2364 = vld [vmem:[%s878 + $0x128] sm:$0xff]
          %v2365 = vld [vmem:[%s878 + $0x130] sm:$0xff]
          %v2366 = vld [vmem:[%s878 + $0x138] sm:$0xff]
          %v2367 = vld [vmem:[%s878 + $0x140] sm:$0xff]
          %v2368 = vld [vmem:[%s878 + $0x148] sm:$0xff]
          %v2369 = vld [vmem:[%s878 + $0x150] sm:$0xff]
          %v2370 = vld [vmem:[%s878 + $0x158] sm:$0xff]
          %v2371 = vld [vmem:[%s878 + $0x160] sm:$0xff]
          %v2372 = vld [vmem:[%s878 + $0x168] sm:$0xff]
          %v2373 = vld [vmem:[%s878 + $0x170] sm:$0xff]
          %v2374 = vld [vmem:[%s878 + $0x178] sm:$0xff]
          %v2375 = vld [vmem:[%s878 + $0x180] sm:$0xff]
          %v2376 = vld [vmem:[%s878 + $0x188] sm:$0xff]
          %v2377 = vld [vmem:[%s878 + $0x190] sm:$0xff]
          %v2378 = vld [vmem:[%s878 + $0x198] sm:$0xff]
          %v2379 = vld [vmem:[%s878 + $0x1a0] sm:$0xff]
          %v2380 = vld [vmem:[%s878 + $0x1a8] sm:$0xff]
          %v2381 = vld [vmem:[%s878 + $0x1b0] sm:$0xff]
          %v2382 = vld [vmem:[%s878 + $0x1b8] sm:$0xff]
          %v2383 = vld [vmem:[%s878 + $0x1c0] sm:$0xff]
          %v2384 = vld [vmem:[%s878 + $0x1c8] sm:$0xff]
          %v2385 = vld [vmem:[%s878 + $0x1d0] sm:$0xff]
          %v2386 = vld [vmem:[%s878 + $0x1d8] sm:$0xff]
          %v2387 = vld [vmem:[%s878 + $0x1e0] sm:$0xff]
          %v2388 = vld [vmem:[%s878 + $0x1e8] sm:$0xff]
          %v2389 = vld [vmem:[%s878 + $0x1f0] sm:$0xff]
          %v2390 = vld [vmem:[%s878 + $0x1f8] sm:$0xff]
          %v2391 = vld [vmem:[%s1031] sm:$0xf]
          %v2393 = vlaneseq
          %v2394 = vshrl.u32 %v2393, 7
          %v2395 = vsub.s32 0, %v2394
          %v2396 = vrot.slane %v2391, %v2395
          %v2397 = vlaneseq
          %v2398 = vshrl.u32 %v2397, 7
          %v2399 = vsub.s32 1, %v2398
          %v2400 = vrot.slane %v2391, %v2399
          %v2401 = vlaneseq
          %v2402 = vshrl.u32 %v2401, 7
          %v2403 = vsub.s32 2, %v2402
          %v2404 = vrot.slane %v2391, %v2403
          %v2405 = vlaneseq
          %v2406 = vshrl.u32 %v2405, 7
          %v2407 = vsub.s32 3, %v2406
          %v2408 = vrot.slane %v2391, %v2407
          %v2417 = vunpack.c.l.b16 %v2323
          %v2418 = vunpack.c.h.b16 %v2323
          %v2419 = vunpack.c.l.b16 %v2324
          %v2420 = vunpack.c.h.b16 %v2324
          %v2421 = vunpack.c.l.b16 %v2325
          %v2422 = vunpack.c.h.b16 %v2325
          %v2423 = vunpack.c.l.b16 %v2326
          %v2424 = vunpack.c.h.b16 %v2326
          %v2425 = vpack.c.b16 %v2419, %v2417
          %v2426 = vpack.c.b16 %v2420, %v2418
          %v2427 = vpack.c.b16 %v2423, %v2421
          %v2428 = vpack.c.b16 %v2424, %v2422
          %v2497 = vunpack.c.l.b16 %v2327
          %v2498 = vunpack.c.h.b16 %v2327
          %v2499 = vunpack.c.l.b16 %v2328
          %v2500 = vunpack.c.h.b16 %v2328
          %v2501 = vunpack.c.l.b16 %v2329
          %v2502 = vunpack.c.h.b16 %v2329
          %v2503 = vunpack.c.l.b16 %v2330
          %v2504 = vunpack.c.h.b16 %v2330
          %v2505 = vunpack.c.l.b16 %v2331
          %v2506 = vunpack.c.h.b16 %v2331
          %v2507 = vunpack.c.l.b16 %v2332
          %v2508 = vunpack.c.h.b16 %v2332
          %v2509 = vunpack.c.l.b16 %v2333
          %v2510 = vunpack.c.h.b16 %v2333
          %v2511 = vunpack.c.l.b16 %v2334
          %v2512 = vunpack.c.h.b16 %v2334
          %v2513 = vunpack.c.l.b16 %v2335
          %v2514 = vunpack.c.h.b16 %v2335
          %v2515 = vunpack.c.l.b16 %v2336
          %v2516 = vunpack.c.h.b16 %v2336
          %v2517 = vunpack.c.l.b16 %v2337
          %v2518 = vunpack.c.h.b16 %v2337
          %v2519 = vunpack.c.l.b16 %v2338
          %v2520 = vunpack.c.h.b16 %v2338
          %v2521 = vunpack.c.l.b16 %v2339
          %v2522 = vunpack.c.h.b16 %v2339
          %v2523 = vunpack.c.l.b16 %v2340
          %v2524 = vunpack.c.h.b16 %v2340
          %v2525 = vunpack.c.l.b16 %v2341
          %v2526 = vunpack.c.h.b16 %v2341
          %v2527 = vunpack.c.l.b16 %v2342
          %v2528 = vunpack.c.h.b16 %v2342
          %v2529 = vunpack.c.l.b16 %v2343
          %v2530 = vunpack.c.h.b16 %v2343
          %v2531 = vunpack.c.l.b16 %v2344
          %v2532 = vunpack.c.h.b16 %v2344
          %v2533 = vunpack.c.l.b16 %v2345
          %v2534 = vunpack.c.h.b16 %v2345
          %v2535 = vunpack.c.l.b16 %v2346
          %v2536 = vunpack.c.h.b16 %v2346
          %v2537 = vunpack.c.l.b16 %v2347
          %v2538 = vunpack.c.h.b16 %v2347
          %v2539 = vunpack.c.l.b16 %v2348
          %v2540 = vunpack.c.h.b16 %v2348
          %v2541 = vunpack.c.l.b16 %v2349
          %v2542 = vunpack.c.h.b16 %v2349
          %v2543 = vunpack.c.l.b16 %v2350
          %v2544 = vunpack.c.h.b16 %v2350
          %v2545 = vunpack.c.l.b16 %v2351
          %v2546 = vunpack.c.h.b16 %v2351
          %v2547 = vunpack.c.l.b16 %v2352
          %v2548 = vunpack.c.h.b16 %v2352
          %v2549 = vunpack.c.l.b16 %v2353
          %v2550 = vunpack.c.h.b16 %v2353
          %v2551 = vunpack.c.l.b16 %v2354
          %v2552 = vunpack.c.h.b16 %v2354
          %v2553 = vunpack.c.l.b16 %v2355
          %v2554 = vunpack.c.h.b16 %v2355
          %v2555 = vunpack.c.l.b16 %v2356
          %v2556 = vunpack.c.h.b16 %v2356
          %v2557 = vunpack.c.l.b16 %v2357
          %v2558 = vunpack.c.h.b16 %v2357
          %v2559 = vunpack.c.l.b16 %v2358
          %v2560 = vunpack.c.h.b16 %v2358
          %v2561 = vunpack.c.l.b16 %v2359
          %v2562 = vunpack.c.h.b16 %v2359
          %v2563 = vunpack.c.l.b16 %v2360
          %v2564 = vunpack.c.h.b16 %v2360
          %v2565 = vunpack.c.l.b16 %v2361
          %v2566 = vunpack.c.h.b16 %v2361
          %v2567 = vunpack.c.l.b16 %v2362
          %v2568 = vunpack.c.h.b16 %v2362
          %v2569 = vunpack.c.l.b16 %v2363
          %v2570 = vunpack.c.h.b16 %v2363
          %v2571 = vunpack.c.l.b16 %v2364
          %v2572 = vunpack.c.h.b16 %v2364
          %v2573 = vunpack.c.l.b16 %v2365
          %v2574 = vunpack.c.h.b16 %v2365
          %v2575 = vunpack.c.l.b16 %v2366
          %v2576 = vunpack.c.h.b16 %v2366
          %v2577 = vunpack.c.l.b16 %v2367
          %v2578 = vunpack.c.h.b16 %v2367
          %v2579 = vunpack.c.l.b16 %v2368
          %v2580 = vunpack.c.h.b16 %v2368
          %v2581 = vunpack.c.l.b16 %v2369
          %v2582 = vunpack.c.h.b16 %v2369
          %v2583 = vunpack.c.l.b16 %v2370
          %v2584 = vunpack.c.h.b16 %v2370
          %v2585 = vunpack.c.l.b16 %v2371
          %v2586 = vunpack.c.h.b16 %v2371
          %v2587 = vunpack.c.l.b16 %v2372
          %v2588 = vunpack.c.h.b16 %v2372
          %v2589 = vunpack.c.l.b16 %v2373
          %v2590 = vunpack.c.h.b16 %v2373
          %v2591 = vunpack.c.l.b16 %v2374
          %v2592 = vunpack.c.h.b16 %v2374
          %v2593 = vunpack.c.l.b16 %v2375
          %v2594 = vunpack.c.h.b16 %v2375
          %v2595 = vunpack.c.l.b16 %v2376
          %v2596 = vunpack.c.h.b16 %v2376
          %v2597 = vunpack.c.l.b16 %v2377
          %v2598 = vunpack.c.h.b16 %v2377
          %v2599 = vunpack.c.l.b16 %v2378
          %v2600 = vunpack.c.h.b16 %v2378
          %v2601 = vunpack.c.l.b16 %v2379
          %v2602 = vunpack.c.h.b16 %v2379
          %v2603 = vunpack.c.l.b16 %v2380
          %v2604 = vunpack.c.h.b16 %v2380
          %v2605 = vunpack.c.l.b16 %v2381
          %v2606 = vunpack.c.h.b16 %v2381
          %v2607 = vunpack.c.l.b16 %v2382
          %v2608 = vunpack.c.h.b16 %v2382
          %v2609 = vunpack.c.l.b16 %v2383
          %v2610 = vunpack.c.h.b16 %v2383
          %v2611 = vunpack.c.l.b16 %v2384
          %v2612 = vunpack.c.h.b16 %v2384
          %v2613 = vunpack.c.l.b16 %v2385
          %v2614 = vunpack.c.h.b16 %v2385
          %v2615 = vunpack.c.l.b16 %v2386
          %v2616 = vunpack.c.h.b16 %v2386
          %v2617 = vunpack.c.l.b16 %v2387
          %v2618 = vunpack.c.h.b16 %v2387
          %v2619 = vunpack.c.l.b16 %v2388
          %v2620 = vunpack.c.h.b16 %v2388
          %v2621 = vunpack.c.l.b16 %v2389
          %v2622 = vunpack.c.h.b16 %v2389
          %v2623 = vunpack.c.l.b16 %v2390
          %v2624 = vunpack.c.h.b16 %v2390
          %v2625 = vpack.c.b16 %v2501, %v2497
          %v2626 = vpack.c.b16 %v2502, %v2498
          %v2627 = vpack.c.b16 %v2503, %v2499
          %v2628 = vpack.c.b16 %v2504, %v2500
          %v2629 = vpack.c.b16 %v2509, %v2505
          %v2630 = vpack.c.b16 %v2510, %v2506
          %v2631 = vpack.c.b16 %v2511, %v2507
          %v2632 = vpack.c.b16 %v2512, %v2508
          %v2633 = vpack.c.b16 %v2517, %v2513
          %v2634 = vpack.c.b16 %v2518, %v2514
          %v2635 = vpack.c.b16 %v2519, %v2515
          %v2636 = vpack.c.b16 %v2520, %v2516
          %v2637 = vpack.c.b16 %v2525, %v2521
          %v2638 = vpack.c.b16 %v2526, %v2522
          %v2639 = vpack.c.b16 %v2527, %v2523
          %v2640 = vpack.c.b16 %v2528, %v2524
          %v2641 = vpack.c.b16 %v2533, %v2529
          %v2642 = vpack.c.b16 %v2534, %v2530
          %v2643 = vpack.c.b16 %v2535, %v2531
          %v2644 = vpack.c.b16 %v2536, %v2532
          %v2645 = vpack.c.b16 %v2541, %v2537
          %v2646 = vpack.c.b16 %v2542, %v2538
          %v2647 = vpack.c.b16 %v2543, %v2539
          %v2648 = vpack.c.b16 %v2544, %v2540
          %v2649 = vpack.c.b16 %v2549, %v2545
          %v2650 = vpack.c.b16 %v2550, %v2546
          %v2651 = vpack.c.b16 %v2551, %v2547
          %v2652 = vpack.c.b16 %v2552, %v2548
          %v2653 = vpack.c.b16 %v2557, %v2553
          %v2654 = vpack.c.b16 %v2558, %v2554
          %v2655 = vpack.c.b16 %v2559, %v2555
          %v2656 = vpack.c.b16 %v2560, %v2556
          %v2657 = vpack.c.b16 %v2565, %v2561
          %v2658 = vpack.c.b16 %v2566, %v2562
          %v2659 = vpack.c.b16 %v2567, %v2563
          %v2660 = vpack.c.b16 %v2568, %v2564
          %v2661 = vpack.c.b16 %v2573, %v2569
          %v2662 = vpack.c.b16 %v2574, %v2570
          %v2663 = vpack.c.b16 %v2575, %v2571
          %v2664 = vpack.c.b16 %v2576, %v2572
          %v2665 = vpack.c.b16 %v2581, %v2577
          %v2666 = vpack.c.b16 %v2582, %v2578
          %v2667 = vpack.c.b16 %v2583, %v2579
          %v2668 = vpack.c.b16 %v2584, %v2580
          %v2669 = vpack.c.b16 %v2589, %v2585
          %v2670 = vpack.c.b16 %v2590, %v2586
          %v2671 = vpack.c.b16 %v2591, %v2587
          %v2672 = vpack.c.b16 %v2592, %v2588
          %v2673 = vpack.c.b16 %v2597, %v2593
          %v2674 = vpack.c.b16 %v2598, %v2594
          %v2675 = vpack.c.b16 %v2599, %v2595
          %v2676 = vpack.c.b16 %v2600, %v2596
          %v2677 = vpack.c.b16 %v2605, %v2601
          %v2678 = vpack.c.b16 %v2606, %v2602
          %v2679 = vpack.c.b16 %v2607, %v2603
          %v2680 = vpack.c.b16 %v2608, %v2604
          %v2681 = vpack.c.b16 %v2613, %v2609
          %v2682 = vpack.c.b16 %v2614, %v2610
          %v2683 = vpack.c.b16 %v2615, %v2611
          %v2684 = vpack.c.b16 %v2616, %v2612
          %v2685 = vpack.c.b16 %v2621, %v2617
          %v2686 = vpack.c.b16 %v2622, %v2618
          %v2687 = vpack.c.b16 %v2623, %v2619
          %v2688 = vpack.c.b16 %v2624, %v2620
          %2753 = vmatprep.subr.bf16.mxu0 %v2654
          %2754 = vmatpush1.bf16.msra.mxu0 %v2653
          %2755 = vmatprep.subr.bf16.mxu0 %v2650
          %2756 = vmatpush1.bf16.msra.mxu0 %v2649
          %2757 = vmatprep.subr.bf16.mxu0 %v2646
          %2758 = vmatpush1.bf16.msra.mxu0 %v2645
          %2759 = vmatprep.subr.bf16.mxu0 %v2642
          %2760 = vmatpush1.bf16.msra.mxu0 %v2641
          %2761 = vmatprep.subr.bf16.mxu0 %v2638
          %2762 = vmatpush1.bf16.msra.mxu0 %v2637
          %2763 = vmatprep.subr.bf16.mxu0 %v2634
          %2764 = vmatpush1.bf16.msra.mxu0 %v2633
          %2765 = vmatprep.subr.bf16.mxu0 %v2630
          %2766 = vmatpush1.bf16.msra.mxu0 %v2629
          %2767 = vmatprep.subr.bf16.mxu0 %v2626
          %2768 = vmatpush1.bf16.msra.mxu0 %v2625
          %2769 = vmatprep.subr.bf16.mxu0 %v2686
          %2770 = vmatpush2.bf16.msra.mxu0 %v2685
          %2771 = vmatprep.subr.bf16.mxu0 %v2682
          %2772 = vmatpush2.bf16.msra.mxu0 %v2681
          %2773 = vmatprep.subr.bf16.mxu0 %v2678
          %2774 = vmatpush2.bf16.msra.mxu0 %v2677
          %2775 = vmatprep.subr.bf16.mxu0 %v2674
          %2776 = vmatpush2.bf16.msra.mxu0 %v2673
          %2777 = vmatprep.subr.bf16.mxu0 %v2670
          %2778 = vmatpush2.bf16.msra.mxu0 %v2669
          %2779 = vmatprep.subr.bf16.mxu0 %v2666
          %2780 = vmatpush2.bf16.msra.mxu0 %v2665
          %2781 = vmatprep.subr.bf16.mxu0 %v2662
          %2782 = vmatpush2.bf16.msra.mxu0 %v2661
          %2783 = vmatprep.subr.bf16.mxu0 %v2658
          %2784 = vmatpush2.bf16.msra.mxu0 %v2657
          %2785 = vmatprep.mubr.bf16.mxu0 %v2426
          %2786 = vmatmul.mubr.bf16.gmra.mxu0 %v2425
          %v2787 = vpop.f32.mrf.mxu0
          %v2788 = vadd.f32 %v2396, %v2787
          %v2789 = vpop.f32.mrf.mxu0
          %v2790 = vadd.f32 %v2400, %v2789
          %v2791 = vpop.f32.mrf.mxu0
          %v2792 = vadd.f32 %v2396, %v2791
          %v2793 = vpop.f32.mrf.mxu0
          %v2794 = vadd.f32 %v2400, %v2793
          %2795 = vmatprep.mubr.bf16.mxu0 %v2428
          %2796 = vmatmul.mubr.bf16.gmra.mxu0 %v2427
          %v2797 = vpop.f32.mrf.mxu0
          %v2798 = vadd.f32 %v2396, %v2797
          %v2799 = vpop.f32.mrf.mxu0
          %v2800 = vadd.f32 %v2400, %v2799
          %v2801 = vpop.f32.mrf.mxu0
          %v2802 = vadd.f32 %v2396, %v2801
          %v2803 = vpop.f32.mrf.mxu0
          %v2804 = vadd.f32 %v2400, %v2803
          %2805 = vdwg.mxu0
          %2806 = vmatprep.subr.bf16.mxu0 %v2656
          %2807 = vmatpush1.bf16.msra.mxu0 %v2655
          %2808 = vmatprep.subr.bf16.mxu0 %v2652
          %2809 = vmatpush1.bf16.msra.mxu0 %v2651
          %2810 = vmatprep.subr.bf16.mxu0 %v2648
          %2811 = vmatpush1.bf16.msra.mxu0 %v2647
          %2812 = vmatprep.subr.bf16.mxu0 %v2644
          %2813 = vmatpush1.bf16.msra.mxu0 %v2643
          %2814 = vmatprep.subr.bf16.mxu0 %v2640
          %2815 = vmatpush1.bf16.msra.mxu0 %v2639
          %2816 = vmatprep.subr.bf16.mxu0 %v2636
          %2817 = vmatpush1.bf16.msra.mxu0 %v2635
          %2818 = vmatprep.subr.bf16.mxu0 %v2632
          %2819 = vmatpush1.bf16.msra.mxu0 %v2631
          %2820 = vmatprep.subr.bf16.mxu0 %v2628
          %2821 = vmatpush1.bf16.msra.mxu0 %v2627
          %2822 = vmatprep.subr.bf16.mxu0 %v2688
          %2823 = vmatpush2.bf16.msra.mxu0 %v2687
          %2824 = vmatprep.subr.bf16.mxu0 %v2684
          %2825 = vmatpush2.bf16.msra.mxu0 %v2683
          %2826 = vmatprep.subr.bf16.mxu0 %v2680
          %2827 = vmatpush2.bf16.msra.mxu0 %v2679
          %2828 = vmatprep.subr.bf16.mxu0 %v2676
          %2829 = vmatpush2.bf16.msra.mxu0 %v2675
          %2830 = vmatprep.subr.bf16.mxu0 %v2672
          %2831 = vmatpush2.bf16.msra.mxu0 %v2671
          %2832 = vmatprep.subr.bf16.mxu0 %v2668
          %2833 = vmatpush2.bf16.msra.mxu0 %v2667
          %2834 = vmatprep.subr.bf16.mxu0 %v2664
          %2835 = vmatpush2.bf16.msra.mxu0 %v2663
          %2836 = vmatprep.subr.bf16.mxu0 %v2660
          %2837 = vmatpush2.bf16.msra.mxu0 %v2659
          %2838 = vmatprep.mubr.bf16.mxu0 %v2426
          %2839 = vmatmul.mubr.bf16.gmra.mxu0 %v2425
          %v2840 = vpop.f32.mrf.mxu0
          %v2841 = vadd.f32 %v2404, %v2840
          %v2842 = vpop.f32.mrf.mxu0
          %v2843 = vadd.f32 %v2408, %v2842
          %v2844 = vpop.f32.mrf.mxu0
          %v2845 = vadd.f32 %v2404, %v2844
          %v2846 = vpop.f32.mrf.mxu0
          %v2847 = vadd.f32 %v2408, %v2846
          %2848 = vmatprep.mubr.bf16.mxu0 %v2428
          %2849 = vmatmul.mubr.bf16.gmra.mxu0 %v2427
          %v2850 = vpop.f32.mrf.mxu0
          %v2851 = vadd.f32 %v2404, %v2850
          %v2852 = vpop.f32.mrf.mxu0
          %v2853 = vadd.f32 %v2408, %v2852
          %v2854 = vpop.f32.mrf.mxu0
          %v2855 = vadd.f32 %v2404, %v2854
          %v2856 = vpop.f32.mrf.mxu0
          %v2857 = vadd.f32 %v2408, %v2856
          %2858 = vdwg.mxu0
          %v2859 = vxor.u32 %v2788, 2147483648
          %v2860 = vxor.u32 %v2790, 2147483648
          %v2861 = vxor.u32 %v2841, 2147483648
          %v2862 = vxor.u32 %v2843, 2147483648
          %v2863 = vxor.u32 %v2792, 2147483648
          %v2864 = vxor.u32 %v2794, 2147483648
          %v2865 = vxor.u32 %v2845, 2147483648
          %v2866 = vxor.u32 %v2847, 2147483648
          %v2867 = vxor.u32 %v2798, 2147483648
          %v2868 = vxor.u32 %v2800, 2147483648
          %v2869 = vxor.u32 %v2851, 2147483648
          %v2870 = vxor.u32 %v2853, 2147483648
          %v2871 = vxor.u32 %v2802, 2147483648
          %v2872 = vxor.u32 %v2804, 2147483648
          %v2873 = vxor.u32 %v2855, 2147483648
          %v2874 = vxor.u32 %v2857, 2147483648
          %v2875 = vmul.f32 %v2859, 1.442695
          %v2876 = vpow.pop %v2875
          %v2877 = vmul.f32 %v2860, 1.442695
          %v2878 = vpow.pop %v2877
          %v2879 = vmul.f32 %v2861, 1.442695
          %v2880 = vpow.pop %v2879
          %v2881 = vmul.f32 %v2862, 1.442695
          %v2882 = vpow.pop %v2881
          %v2883 = vmul.f32 %v2863, 1.442695
          %v2884 = vpow.pop %v2883
          %v2885 = vmul.f32 %v2864, 1.442695
          %v2886 = vpow.pop %v2885
          %v2887 = vmul.f32 %v2865, 1.442695
          %v2888 = vpow.pop %v2887
          %v2889 = vmul.f32 %v2866, 1.442695
          %v2890 = vpow.pop %v2889
          %v2891 = vmul.f32 %v2867, 1.442695
          %v2892 = vpow.pop %v2891
          %v2893 = vmul.f32 %v2868, 1.442695
          %v2894 = vpow.pop %v2893
          %v2895 = vmul.f32 %v2869, 1.442695
          %v2896 = vpow.pop %v2895
          %v2897 = vmul.f32 %v2870, 1.442695
          %v2898 = vpow.pop %v2897
          %v2899 = vmul.f32 %v2871, 1.442695
          %v2900 = vpow.pop %v2899
          %v2901 = vmul.f32 %v2872, 1.442695
          %v2902 = vpow.pop %v2901
          %v2903 = vmul.f32 %v2873, 1.442695
          %v2904 = vpow.pop %v2903
          %v2905 = vmul.f32 %v2874, 1.442695
          %v2906 = vpow.pop %v2905
          %v2907 = vadd.f32 %v2876, 1.0
          %v2908 = vadd.f32 %v2878, 1.0
          %v2909 = vadd.f32 %v2880, 1.0
          %v2910 = vadd.f32 %v2882, 1.0
          %v2911 = vadd.f32 %v2884, 1.0
          %v2912 = vadd.f32 %v2886, 1.0
          %v2913 = vadd.f32 %v2888, 1.0
          %v2914 = vadd.f32 %v2890, 1.0
          %v2915 = vadd.f32 %v2892, 1.0
          %v2916 = vadd.f32 %v2894, 1.0
          %v2917 = vadd.f32 %v2896, 1.0
          %v2918 = vadd.f32 %v2898, 1.0
          %v2919 = vadd.f32 %v2900, 1.0
          %v2920 = vadd.f32 %v2902, 1.0
          %v2921 = vadd.f32 %v2904, 1.0
          %v2922 = vadd.f32 %v2906, 1.0
          %v2923 = vrcp.pop %v2907
          %v2924 = vmul.f32 1.0, %v2923
          %v2925 = vrcp.pop %v2908
          %v2926 = vmul.f32 1.0, %v2925
          %v2927 = vrcp.pop %v2909
          %v2928 = vmul.f32 1.0, %v2927
          %v2929 = vrcp.pop %v2910
          %v2930 = vmul.f32 1.0, %v2929
          %v2931 = vrcp.pop %v2911
          %v2932 = vmul.f32 1.0, %v2931
          %v2933 = vrcp.pop %v2912
          %v2934 = vmul.f32 1.0, %v2933
          %v2935 = vrcp.pop %v2913
          %v2936 = vmul.f32 1.0, %v2935
          %v2937 = vrcp.pop %v2914
          %v2938 = vmul.f32 1.0, %v2937
          %v2939 = vrcp.pop %v2915
          %v2940 = vmul.f32 1.0, %v2939
          %v2941 = vrcp.pop %v2916
          %v2942 = vmul.f32 1.0, %v2941
          %v2943 = vrcp.pop %v2917
          %v2944 = vmul.f32 1.0, %v2943
          %v2945 = vrcp.pop %v2918
          %v2946 = vmul.f32 1.0, %v2945
          %v2947 = vrcp.pop %v2919
          %v2948 = vmul.f32 1.0, %v2947
          %v2949 = vrcp.pop %v2920
          %v2950 = vmul.f32 1.0, %v2949
          %v2951 = vrcp.pop %v2921
          %v2952 = vmul.f32 1.0, %v2951
          %v2953 = vrcp.pop %v2922
          %v2954 = vmul.f32 1.0, %v2953
          %v2955 = vmul.f32 %v2788, %v2924
          %v2956 = vmul.f32 %v2790, %v2926
          %v2957 = vmul.f32 %v2841, %v2928
          %v2958 = vmul.f32 %v2843, %v2930
          %v2959 = vmul.f32 %v2792, %v2932
          %v2960 = vmul.f32 %v2794, %v2934
          %v2961 = vmul.f32 %v2845, %v2936
          %v2962 = vmul.f32 %v2847, %v2938
          %v2963 = vmul.f32 %v2798, %v2940
          %v2964 = vmul.f32 %v2800, %v2942
          %v2965 = vmul.f32 %v2851, %v2944
          %v2966 = vmul.f32 %v2853, %v2946
          %v2967 = vmul.f32 %v2802, %v2948
          %v2968 = vmul.f32 %v2804, %v2950
          %v2969 = vmul.f32 %v2855, %v2952
          %v2970 = vmul.f32 %v2857, %v2954
          %v2971 = vpack.c.bf16 %v2959, %v2955
          %v2972 = vpack.c.bf16 %v2960, %v2956
          %v2973 = vpack.c.bf16 %v2961, %v2957
          %v2974 = vpack.c.bf16 %v2962, %v2958
          %v2975 = vpack.c.bf16 %v2967, %v2963
          %v2976 = vpack.c.bf16 %v2968, %v2964
          %v2977 = vpack.c.bf16 %v2969, %v2965
          %v2978 = vpack.c.bf16 %v2970, %v2966
          %v2979 = vld [vmem:[#allocation4] sm:$0xff]
          %v2980 = vld [vmem:[#allocation4 + $0x8] sm:$0xff]
          %v2981 = vld [vmem:[#allocation4 + $0x10] sm:$0xff]
          %v2982 = vld [vmem:[#allocation4 + $0x18] sm:$0xff]
          %v2983 = vld [vmem:[#allocation4 + $0x20] sm:$0xff]
          %v2984 = vld [vmem:[#allocation4 + $0x28] sm:$0xff]
          %v2985 = vld [vmem:[#allocation4 + $0x30] sm:$0xff]
          %v2986 = vld [vmem:[#allocation4 + $0x38] sm:$0xff]
          %v2987 = vld [vmem:[%s887] sm:$0xff]
          %v2988 = vld [vmem:[%s887 + $0x8] sm:$0xff]
          %v2989 = vld [vmem:[%s887 + $0x10] sm:$0xff]
          %v2990 = vld [vmem:[%s887 + $0x18] sm:$0xff]
          %v2991 = vld [vmem:[%s887 + $0x20] sm:$0xff]
          %v2992 = vld [vmem:[%s887 + $0x28] sm:$0xff]
          %v2993 = vld [vmem:[%s887 + $0x30] sm:$0xff]
          %v2994 = vld [vmem:[%s887 + $0x38] sm:$0xff]
          %v2995 = vld [vmem:[%s887 + $0x40] sm:$0xff]
          %v2996 = vld [vmem:[%s887 + $0x48] sm:$0xff]
          %v2997 = vld [vmem:[%s887 + $0x50] sm:$0xff]
          %v2998 = vld [vmem:[%s887 + $0x58] sm:$0xff]
          %v2999 = vld [vmem:[%s887 + $0x60] sm:$0xff]
          %v3000 = vld [vmem:[%s887 + $0x68] sm:$0xff]
          %v3001 = vld [vmem:[%s887 + $0x70] sm:$0xff]
          %v3002 = vld [vmem:[%s887 + $0x78] sm:$0xff]
          %v3003 = vld [vmem:[%s887 + $0x80] sm:$0xff]
          %v3004 = vld [vmem:[%s887 + $0x88] sm:$0xff]
          %v3005 = vld [vmem:[%s887 + $0x90] sm:$0xff]
          %v3006 = vld [vmem:[%s887 + $0x98] sm:$0xff]
          %v3007 = vld [vmem:[%s887 + $0xa0] sm:$0xff]
          %v3008 = vld [vmem:[%s887 + $0xa8] sm:$0xff]
          %v3009 = vld [vmem:[%s887 + $0xb0] sm:$0xff]
          %v3010 = vld [vmem:[%s887 + $0xb8] sm:$0xff]
          %v3011 = vld [vmem:[%s887 + $0xc0] sm:$0xff]
          %v3012 = vld [vmem:[%s887 + $0xc8] sm:$0xff]
          %v3013 = vld [vmem:[%s887 + $0xd0] sm:$0xff]
          %v3014 = vld [vmem:[%s887 + $0xd8] sm:$0xff]
          %v3015 = vld [vmem:[%s887 + $0xe0] sm:$0xff]
          %v3016 = vld [vmem:[%s887 + $0xe8] sm:$0xff]
          %v3017 = vld [vmem:[%s887 + $0xf0] sm:$0xff]
          %v3018 = vld [vmem:[%s887 + $0xf8] sm:$0xff]
          %v3019 = vld [vmem:[%s887 + $0x100] sm:$0xff]
          %v3020 = vld [vmem:[%s887 + $0x108] sm:$0xff]
          %v3021 = vld [vmem:[%s887 + $0x110] sm:$0xff]
          %v3022 = vld [vmem:[%s887 + $0x118] sm:$0xff]
          %v3023 = vld [vmem:[%s887 + $0x120] sm:$0xff]
          %v3024 = vld [vmem:[%s887 + $0x128] sm:$0xff]
          %v3025 = vld [vmem:[%s887 + $0x130] sm:$0xff]
          %v3026 = vld [vmem:[%s887 + $0x138] sm:$0xff]
          %v3027 = vld [vmem:[%s887 + $0x140] sm:$0xff]
          %v3028 = vld [vmem:[%s887 + $0x148] sm:$0xff]
          %v3029 = vld [vmem:[%s887 + $0x150] sm:$0xff]
          %v3030 = vld [vmem:[%s887 + $0x158] sm:$0xff]
          %v3031 = vld [vmem:[%s887 + $0x160] sm:$0xff]
          %v3032 = vld [vmem:[%s887 + $0x168] sm:$0xff]
          %v3033 = vld [vmem:[%s887 + $0x170] sm:$0xff]
          %v3034 = vld [vmem:[%s887 + $0x178] sm:$0xff]
          %v3035 = vld [vmem:[%s887 + $0x180] sm:$0xff]
          %v3036 = vld [vmem:[%s887 + $0x188] sm:$0xff]
          %v3037 = vld [vmem:[%s887 + $0x190] sm:$0xff]
          %v3038 = vld [vmem:[%s887 + $0x198] sm:$0xff]
          %v3039 = vld [vmem:[%s887 + $0x1a0] sm:$0xff]
          %v3040 = vld [vmem:[%s887 + $0x1a8] sm:$0xff]
          %v3041 = vld [vmem:[%s887 + $0x1b0] sm:$0xff]
          %v3042 = vld [vmem:[%s887 + $0x1b8] sm:$0xff]
          %v3043 = vld [vmem:[%s887 + $0x1c0] sm:$0xff]
          %v3044 = vld [vmem:[%s887 + $0x1c8] sm:$0xff]
          %v3045 = vld [vmem:[%s887 + $0x1d0] sm:$0xff]
          %v3046 = vld [vmem:[%s887 + $0x1d8] sm:$0xff]
          %v3047 = vld [vmem:[%s887 + $0x1e0] sm:$0xff]
          %v3048 = vld [vmem:[%s887 + $0x1e8] sm:$0xff]
          %v3049 = vld [vmem:[%s887 + $0x1f0] sm:$0xff]
          %v3050 = vld [vmem:[%s887 + $0x1f8] sm:$0xff]
          %v3115 = vunpack.c.l.b16 %v2987
          %v3116 = vunpack.c.h.b16 %v2987
          %v3117 = vunpack.c.l.b16 %v2988
          %v3118 = vunpack.c.h.b16 %v2988
          %v3119 = vunpack.c.l.b16 %v2989
          %v3120 = vunpack.c.h.b16 %v2989
          %v3121 = vunpack.c.l.b16 %v2990
          %v3122 = vunpack.c.h.b16 %v2990
          %v3123 = vunpack.c.l.b16 %v2991
          %v3124 = vunpack.c.h.b16 %v2991
          %v3125 = vunpack.c.l.b16 %v2992
          %v3126 = vunpack.c.h.b16 %v2992
          %v3127 = vunpack.c.l.b16 %v2993
          %v3128 = vunpack.c.h.b16 %v2993
          %v3129 = vunpack.c.l.b16 %v2994
          %v3130 = vunpack.c.h.b16 %v2994
          %v3131 = vunpack.c.l.b16 %v2995
          %v3132 = vunpack.c.h.b16 %v2995
          %v3133 = vunpack.c.l.b16 %v2996
          %v3134 = vunpack.c.h.b16 %v2996
          %v3135 = vunpack.c.l.b16 %v2997
          %v3136 = vunpack.c.h.b16 %v2997
          %v3137 = vunpack.c.l.b16 %v2998
          %v3138 = vunpack.c.h.b16 %v2998
          %v3139 = vunpack.c.l.b16 %v2999
          %v3140 = vunpack.c.h.b16 %v2999
          %v3141 = vunpack.c.l.b16 %v3000
          %v3142 = vunpack.c.h.b16 %v3000
          %v3143 = vunpack.c.l.b16 %v3001
          %v3144 = vunpack.c.h.b16 %v3001
          %v3145 = vunpack.c.l.b16 %v3002
          %v3146 = vunpack.c.h.b16 %v3002
          %v3147 = vunpack.c.l.b16 %v3003
          %v3148 = vunpack.c.h.b16 %v3003
          %v3149 = vunpack.c.l.b16 %v3004
          %v3150 = vunpack.c.h.b16 %v3004
          %v3151 = vunpack.c.l.b16 %v3005
          %v3152 = vunpack.c.h.b16 %v3005
          %v3153 = vunpack.c.l.b16 %v3006
          %v3154 = vunpack.c.h.b16 %v3006
          %v3155 = vunpack.c.l.b16 %v3007
          %v3156 = vunpack.c.h.b16 %v3007
          %v3157 = vunpack.c.l.b16 %v3008
          %v3158 = vunpack.c.h.b16 %v3008
          %v3159 = vunpack.c.l.b16 %v3009
          %v3160 = vunpack.c.h.b16 %v3009
          %v3161 = vunpack.c.l.b16 %v3010
          %v3162 = vunpack.c.h.b16 %v3010
          %v3163 = vunpack.c.l.b16 %v3011
          %v3164 = vunpack.c.h.b16 %v3011
          %v3165 = vunpack.c.l.b16 %v3012
          %v3166 = vunpack.c.h.b16 %v3012
          %v3167 = vunpack.c.l.b16 %v3013
          %v3168 = vunpack.c.h.b16 %v3013
          %v3169 = vunpack.c.l.b16 %v3014
          %v3170 = vunpack.c.h.b16 %v3014
          %v3171 = vunpack.c.l.b16 %v3015
          %v3172 = vunpack.c.h.b16 %v3015
          %v3173 = vunpack.c.l.b16 %v3016
          %v3174 = vunpack.c.h.b16 %v3016
          %v3175 = vunpack.c.l.b16 %v3017
          %v3176 = vunpack.c.h.b16 %v3017
          %v3177 = vunpack.c.l.b16 %v3018
          %v3178 = vunpack.c.h.b16 %v3018
          %v3179 = vunpack.c.l.b16 %v3019
          %v3180 = vunpack.c.h.b16 %v3019
          %v3181 = vunpack.c.l.b16 %v3020
          %v3182 = vunpack.c.h.b16 %v3020
          %v3183 = vunpack.c.l.b16 %v3021
          %v3184 = vunpack.c.h.b16 %v3021
          %v3185 = vunpack.c.l.b16 %v3022
          %v3186 = vunpack.c.h.b16 %v3022
          %v3187 = vunpack.c.l.b16 %v3023
          %v3188 = vunpack.c.h.b16 %v3023
          %v3189 = vunpack.c.l.b16 %v3024
          %v3190 = vunpack.c.h.b16 %v3024
          %v3191 = vunpack.c.l.b16 %v3025
          %v3192 = vunpack.c.h.b16 %v3025
          %v3193 = vunpack.c.l.b16 %v3026
          %v3194 = vunpack.c.h.b16 %v3026
          %v3195 = vunpack.c.l.b16 %v3027
          %v3196 = vunpack.c.h.b16 %v3027
          %v3197 = vunpack.c.l.b16 %v3028
          %v3198 = vunpack.c.h.b16 %v3028
          %v3199 = vunpack.c.l.b16 %v3029
          %v3200 = vunpack.c.h.b16 %v3029
          %v3201 = vunpack.c.l.b16 %v3030
          %v3202 = vunpack.c.h.b16 %v3030
          %v3203 = vunpack.c.l.b16 %v3031
          %v3204 = vunpack.c.h.b16 %v3031
          %v3205 = vunpack.c.l.b16 %v3032
          %v3206 = vunpack.c.h.b16 %v3032
          %v3207 = vunpack.c.l.b16 %v3033
          %v3208 = vunpack.c.h.b16 %v3033
          %v3209 = vunpack.c.l.b16 %v3034
          %v3210 = vunpack.c.h.b16 %v3034
          %v3211 = vunpack.c.l.b16 %v3035
          %v3212 = vunpack.c.h.b16 %v3035
          %v3213 = vunpack.c.l.b16 %v3036
          %v3214 = vunpack.c.h.b16 %v3036
          %v3215 = vunpack.c.l.b16 %v3037
          %v3216 = vunpack.c.h.b16 %v3037
          %v3217 = vunpack.c.l.b16 %v3038
          %v3218 = vunpack.c.h.b16 %v3038
          %v3219 = vunpack.c.l.b16 %v3039
          %v3220 = vunpack.c.h.b16 %v3039
          %v3221 = vunpack.c.l.b16 %v3040
          %v3222 = vunpack.c.h.b16 %v3040
          %v3223 = vunpack.c.l.b16 %v3041
          %v3224 = vunpack.c.h.b16 %v3041
          %v3225 = vunpack.c.l.b16 %v3042
          %v3226 = vunpack.c.h.b16 %v3042
          %v3227 = vunpack.c.l.b16 %v3043
          %v3228 = vunpack.c.h.b16 %v3043
          %v3229 = vunpack.c.l.b16 %v3044
          %v3230 = vunpack.c.h.b16 %v3044
          %v3231 = vunpack.c.l.b16 %v3045
          %v3232 = vunpack.c.h.b16 %v3045
          %v3233 = vunpack.c.l.b16 %v3046
          %v3234 = vunpack.c.h.b16 %v3046
          %v3235 = vunpack.c.l.b16 %v3047
          %v3236 = vunpack.c.h.b16 %v3047
          %v3237 = vunpack.c.l.b16 %v3048
          %v3238 = vunpack.c.h.b16 %v3048
          %v3239 = vunpack.c.l.b16 %v3049
          %v3240 = vunpack.c.h.b16 %v3049
          %v3241 = vunpack.c.l.b16 %v3050
          %v3242 = vunpack.c.h.b16 %v3050
          %v3243 = vpack.c.b16 %v3117, %v3115
          %v3244 = vpack.c.b16 %v3118, %v3116
          %v3245 = vpack.c.b16 %v3121, %v3119
          %v3246 = vpack.c.b16 %v3122, %v3120
          %v3247 = vpack.c.b16 %v3125, %v3123
          %v3248 = vpack.c.b16 %v3126, %v3124
          %v3249 = vpack.c.b16 %v3129, %v3127
          %v3250 = vpack.c.b16 %v3130, %v3128
          %v3251 = vpack.c.b16 %v3133, %v3131
          %v3252 = vpack.c.b16 %v3134, %v3132
          %v3253 = vpack.c.b16 %v3137, %v3135
          %v3254 = vpack.c.b16 %v3138, %v3136
          %v3255 = vpack.c.b16 %v3141, %v3139
          %v3256 = vpack.c.b16 %v3142, %v3140
          %v3257 = vpack.c.b16 %v3145, %v3143
          %v3258 = vpack.c.b16 %v3146, %v3144
          %v3259 = vpack.c.b16 %v3149, %v3147
          %v3260 = vpack.c.b16 %v3150, %v3148
          %v3261 = vpack.c.b16 %v3153, %v3151
          %v3262 = vpack.c.b16 %v3154, %v3152
          %v3263 = vpack.c.b16 %v3157, %v3155
          %v3264 = vpack.c.b16 %v3158, %v3156
          %v3265 = vpack.c.b16 %v3161, %v3159
          %v3266 = vpack.c.b16 %v3162, %v3160
          %v3267 = vpack.c.b16 %v3165, %v3163
          %v3268 = vpack.c.b16 %v3166, %v3164
          %v3269 = vpack.c.b16 %v3169, %v3167
          %v3270 = vpack.c.b16 %v3170, %v3168
          %v3271 = vpack.c.b16 %v3173, %v3171
          %v3272 = vpack.c.b16 %v3174, %v3172
          %v3273 = vpack.c.b16 %v3177, %v3175
          %v3274 = vpack.c.b16 %v3178, %v3176
          %v3275 = vpack.c.b16 %v3181, %v3179
          %v3276 = vpack.c.b16 %v3182, %v3180
          %v3277 = vpack.c.b16 %v3185, %v3183
          %v3278 = vpack.c.b16 %v3186, %v3184
          %v3279 = vpack.c.b16 %v3189, %v3187
          %v3280 = vpack.c.b16 %v3190, %v3188
          %v3281 = vpack.c.b16 %v3193, %v3191
          %v3282 = vpack.c.b16 %v3194, %v3192
          %v3283 = vpack.c.b16 %v3197, %v3195
          %v3284 = vpack.c.b16 %v3198, %v3196
          %v3285 = vpack.c.b16 %v3201, %v3199
          %v3286 = vpack.c.b16 %v3202, %v3200
          %v3287 = vpack.c.b16 %v3205, %v3203
          %v3288 = vpack.c.b16 %v3206, %v3204
          %v3289 = vpack.c.b16 %v3209, %v3207
          %v3290 = vpack.c.b16 %v3210, %v3208
          %v3291 = vpack.c.b16 %v3213, %v3211
          %v3292 = vpack.c.b16 %v3214, %v3212
          %v3293 = vpack.c.b16 %v3217, %v3215
          %v3294 = vpack.c.b16 %v3218, %v3216
          %v3295 = vpack.c.b16 %v3221, %v3219
          %v3296 = vpack.c.b16 %v3222, %v3220
          %v3297 = vpack.c.b16 %v3225, %v3223
          %v3298 = vpack.c.b16 %v3226, %v3224
          %v3299 = vpack.c.b16 %v3229, %v3227
          %v3300 = vpack.c.b16 %v3230, %v3228
          %v3301 = vpack.c.b16 %v3233, %v3231
          %v3302 = vpack.c.b16 %v3234, %v3232
          %v3303 = vpack.c.b16 %v3237, %v3235
          %v3304 = vpack.c.b16 %v3238, %v3236
          %v3305 = vpack.c.b16 %v3241, %v3239
          %v3306 = vpack.c.b16 %v3242, %v3240
          %3371 = vmatprep.subr.bf16.mxu0 %v3258
          %3372 = vmatpush1.bf16.msra.mxu0 %v3257
          %3373 = vmatprep.subr.bf16.mxu0 %v3256
          %3374 = vmatpush1.bf16.msra.mxu0 %v3255
          %3375 = vmatprep.subr.bf16.mxu0 %v3254
          %3376 = vmatpush1.bf16.msra.mxu0 %v3253
          %3377 = vmatprep.subr.bf16.mxu0 %v3252
          %3378 = vmatpush1.bf16.msra.mxu0 %v3251
          %3379 = vmatprep.subr.bf16.mxu0 %v3250
          %3380 = vmatpush1.bf16.msra.mxu0 %v3249
          %3381 = vmatprep.subr.bf16.mxu0 %v3248
          %3382 = vmatpush1.bf16.msra.mxu0 %v3247
          %3383 = vmatprep.subr.bf16.mxu0 %v3246
          %3384 = vmatpush1.bf16.msra.mxu0 %v3245
          %3385 = vmatprep.subr.bf16.mxu0 %v3244
          %3386 = vmatpush1.bf16.msra.mxu0 %v3243
          %3387 = vmatprep.subr.bf16.mxu0 %v3274
          %3388 = vmatpush2.bf16.msra.mxu0 %v3273
          %3389 = vmatprep.subr.bf16.mxu0 %v3272
          %3390 = vmatpush2.bf16.msra.mxu0 %v3271
          %3391 = vmatprep.subr.bf16.mxu0 %v3270
          %3392 = vmatpush2.bf16.msra.mxu0 %v3269
          %3393 = vmatprep.subr.bf16.mxu0 %v3268
          %3394 = vmatpush2.bf16.msra.mxu0 %v3267
          %3395 = vmatprep.subr.bf16.mxu0 %v3266
          %3396 = vmatpush2.bf16.msra.mxu0 %v3265
          %3397 = vmatprep.subr.bf16.mxu0 %v3264
          %3398 = vmatpush2.bf16.msra.mxu0 %v3263
          %3399 = vmatprep.subr.bf16.mxu0 %v3262
          %3400 = vmatpush2.bf16.msra.mxu0 %v3261
          %3401 = vmatprep.subr.bf16.mxu0 %v3260
          %3402 = vmatpush2.bf16.msra.mxu0 %v3259
          %3403 = vmatprep.mubr.bf16.mxu0 %v2972
          %3404 = vmatmul.mubr.bf16.gmra.mxu0 %v2971
          %v3405 = vpop.f32.mrf.mxu0
          %v3406 = vadd.f32 0.0, %v3405
          %v3407 = vpop.f32.mrf.mxu0
          %v3408 = vadd.f32 0.0, %v3407
          %v3409 = vpop.f32.mrf.mxu0
          %v3410 = vadd.f32 0.0, %v3409
          %v3411 = vpop.f32.mrf.mxu0
          %v3412 = vadd.f32 0.0, %v3411
          %3413 = vmatprep.mubr.bf16.mxu0 %v2976
          %3414 = vmatmul.mubr.bf16.gmra.mxu0 %v2975
          %v3415 = vpop.f32.mrf.mxu0
          %v3416 = vadd.f32 0.0, %v3415
          %v3417 = vpop.f32.mrf.mxu0
          %v3418 = vadd.f32 0.0, %v3417
          %v3419 = vpop.f32.mrf.mxu0
          %v3420 = vadd.f32 0.0, %v3419
          %v3421 = vpop.f32.mrf.mxu0
          %v3422 = vadd.f32 0.0, %v3421
          %3423 = vdwg.mxu0
          %3424 = vmatprep.subr.bf16.mxu0 %v3290
          %3425 = vmatpush1.bf16.msra.mxu0 %v3289
          %3426 = vmatprep.subr.bf16.mxu0 %v3288
          %3427 = vmatpush1.bf16.msra.mxu0 %v3287
          %3428 = vmatprep.subr.bf16.mxu0 %v3286
          %3429 = vmatpush1.bf16.msra.mxu0 %v3285
          %3430 = vmatprep.subr.bf16.mxu0 %v3284
          %3431 = vmatpush1.bf16.msra.mxu0 %v3283
          %3432 = vmatprep.subr.bf16.mxu0 %v3282
          %3433 = vmatpush1.bf16.msra.mxu0 %v3281
          %3434 = vmatprep.subr.bf16.mxu0 %v3280
          %3435 = vmatpush1.bf16.msra.mxu0 %v3279
          %3436 = vmatprep.subr.bf16.mxu0 %v3278
          %3437 = vmatpush1.bf16.msra.mxu0 %v3277
          %3438 = vmatprep.subr.bf16.mxu0 %v3276
          %3439 = vmatpush1.bf16.msra.mxu0 %v3275
          %3440 = vmatprep.subr.bf16.mxu0 %v3306
          %3441 = vmatpush2.bf16.msra.mxu0 %v3305
          %3442 = vmatprep.subr.bf16.mxu0 %v3304
          %3443 = vmatpush2.bf16.msra.mxu0 %v3303
          %3444 = vmatprep.subr.bf16.mxu0 %v3302
          %3445 = vmatpush2.bf16.msra.mxu0 %v3301
          %3446 = vmatprep.subr.bf16.mxu0 %v3300
          %3447 = vmatpush2.bf16.msra.mxu0 %v3299
          %3448 = vmatprep.subr.bf16.mxu0 %v3298
          %3449 = vmatpush2.bf16.msra.mxu0 %v3297
          %3450 = vmatprep.subr.bf16.mxu0 %v3296
          %3451 = vmatpush2.bf16.msra.mxu0 %v3295
          %3452 = vmatprep.subr.bf16.mxu0 %v3294
          %3453 = vmatpush2.bf16.msra.mxu0 %v3293
          %3454 = vmatprep.subr.bf16.mxu0 %v3292
          %3455 = vmatpush2.bf16.msra.mxu0 %v3291
          %3456 = vmatprep.mubr.bf16.mxu0 %v2974
          %3457 = vmatmul.mubr.bf16.gmra.mxu0 %v2973
          %v3458 = vpop.f32.mrf.mxu0
          %v3459 = vadd.f32 %v3406, %v3458
          %v3460 = vpop.f32.mrf.mxu0
          %v3461 = vadd.f32 %v3408, %v3460
          %v3462 = vpop.f32.mrf.mxu0
          %v3463 = vadd.f32 %v3410, %v3462
          %v3464 = vpop.f32.mrf.mxu0
          %v3465 = vadd.f32 %v3412, %v3464
          %3466 = vmatprep.mubr.bf16.mxu0 %v2978
          %3467 = vmatmul.mubr.bf16.gmra.mxu0 %v2977
          %v3468 = vpop.f32.mrf.mxu0
          %v3469 = vadd.f32 %v3416, %v3468
          %v3470 = vpop.f32.mrf.mxu0
          %v3471 = vadd.f32 %v3418, %v3470
          %v3472 = vpop.f32.mrf.mxu0
          %v3473 = vadd.f32 %v3420, %v3472
          %v3474 = vpop.f32.mrf.mxu0
          %v3475 = vadd.f32 %v3422, %v3474
          %3476 = vdwg.mxu0
          %v3477 = vadd.f32 %v2979, %v3459
          %v3478 = vadd.f32 %v2980, %v3461
          %v3479 = vadd.f32 %v2981, %v3463
          %v3480 = vadd.f32 %v2982, %v3465
          %v3481 = vadd.f32 %v2983, %v3469
          %v3482 = vadd.f32 %v2984, %v3471
          %v3483 = vadd.f32 %v2985, %v3473
          %v3484 = vadd.f32 %v2986, %v3475
          %3485 = vst [vmem:[#allocation4] sm:$0xff] %v3477
          %3486 = vst [vmem:[#allocation4 + $0x8] sm:$0xff] %v3478
          %3487 = vst [vmem:[#allocation4 + $0x10] sm:$0xff] %v3479
          %3488 = vst [vmem:[#allocation4 + $0x18] sm:$0xff] %v3480
          %3489 = vst [vmem:[#allocation4 + $0x20] sm:$0xff] %v3481
          %3490 = vst [vmem:[#allocation4 + $0x28] sm:$0xff] %v3482
          %3491 = vst [vmem:[#allocation4 + $0x30] sm:$0xff] %v3483
          %3492 = vst [vmem:[#allocation4 + $0x38] sm:$0xff] %v3484
        $region144: #{tpu_custom_call.1} parent=75 // pred_fallthru
          _
        %p3493 = scmp.eq.s32.totalorder %s50, 3
        // Predicated region
        $region145: #{tpu_custom_call.1} parent=75 // pred_check
          %p3494 = pneg %p3493
        $region146: #{tpu_custom_call.1} parent=75 // pred_check_branch
          %3496 = sbr.rel (%p3494) target = $region148
        $region147: #{tpu_custom_call.1} parent=75 // pred_region
          %v3497 = vld [vmem:[%s806] sm:$0xff]
          %v3500 = vunpack.c.l.s4 1966171168
          %v3501 = vunpack.c.0.s8 %v3500
          %v3502 = vlaneseq
          %v3503 = vshrl.u32 %v3502, 7
          %v3504 = vsub.s32 %v3501, %v3503
          %v3505 = vrot.slane %v3497, %v3504
          %v3506 = vcombine.high %v3505, %v3505
          %v3507 = vrot.slane %v3505, 2
          %v3508 = vrot.slane %v3506, 2
          %v3509 = vld [vmem:[#allocation2] sm:$0xff]
          %v3510 = vld [vmem:[#allocation2 + $0x8] sm:$0xff]
          %v3511 = vld [vmem:[#allocation2 + $0x10] sm:$0xff]
          %v3512 = vld [vmem:[#allocation2 + $0x18] sm:$0xff]
          %v3513 = vld [vmem:[#allocation2 + $0x20] sm:$0xff]
          %v3514 = vld [vmem:[#allocation2 + $0x28] sm:$0xff]
          %v3515 = vld [vmem:[#allocation2 + $0x30] sm:$0xff]
          %v3516 = vld [vmem:[#allocation2 + $0x38] sm:$0xff]
          %v3517 = vld [vmem:[#allocation4] sm:$0xff]
          %v3518 = vld [vmem:[#allocation4 + $0x8] sm:$0xff]
          %v3519 = vld [vmem:[#allocation4 + $0x10] sm:$0xff]
          %v3520 = vld [vmem:[#allocation4 + $0x18] sm:$0xff]
          %v3521 = vld [vmem:[#allocation4 + $0x20] sm:$0xff]
          %v3522 = vld [vmem:[#allocation4 + $0x28] sm:$0xff]
          %v3523 = vld [vmem:[#allocation4 + $0x30] sm:$0xff]
          %v3524 = vld [vmem:[#allocation4 + $0x38] sm:$0xff]
          %v3525 = vld [vmem:[%s896] sm:$0x3]
          %v3527 = vlaneseq
          %v3528 = vshrl.u32 %v3527, 7
          %v3529 = vsub.s32 0, %v3528
          %v3530 = vrot.slane %v3525, %v3529
          %v3531 = vlaneseq
          %v3532 = vshrl.u32 %v3531, 7
          %v3533 = vsub.s32 1, %v3532
          %v3534 = vrot.slane %v3525, %v3533
          %v3537 = vadd.f32 %v3517, %v3530
          %v3538 = vadd.f32 %v3518, %v3534
          %v3539 = vadd.f32 %v3519, %v3530
          %v3540 = vadd.f32 %v3520, %v3534
          %v3541 = vadd.f32 %v3521, %v3530
          %v3542 = vadd.f32 %v3522, %v3534
          %v3543 = vadd.f32 %v3523, %v3530
          %v3544 = vadd.f32 %v3524, %v3534
          %v3545 = vlaneseq
          %v3546 = vshrl.u32 %v3545, 7
          %v3547 = vsub.s32 0, %v3546
          %v3548 = vrot.slane %v3507, %v3547
          %v3549 = vlaneseq
          %v3550 = vshrl.u32 %v3549, 7
          %v3551 = vsub.s32 1, %v3550
          %v3552 = vrot.slane %v3507, %v3551
          %v3553 = vlaneseq
          %v3554 = vshrl.u32 %v3553, 7
          %v3555 = vsub.s32 0, %v3554
          %v3556 = vrot.slane %v3508, %v3555
          %v3557 = vlaneseq
          %v3558 = vshrl.u32 %v3557, 7
          %v3559 = vsub.s32 1, %v3558
          %v3560 = vrot.slane %v3508, %v3559
          %v3565 = vmul.f32 %v3537, %v3548
          %v3566 = vmul.f32 %v3538, %v3552
          %v3567 = vmul.f32 %v3539, %v3548
          %v3568 = vmul.f32 %v3540, %v3552
          %v3569 = vmul.f32 %v3541, %v3556
          %v3570 = vmul.f32 %v3542, %v3560
          %v3571 = vmul.f32 %v3543, %v3556
          %v3572 = vmul.f32 %v3544, %v3560
          %v3573 = vadd.f32 %v3509, %v3565
          %v3574 = vadd.f32 %v3510, %v3566
          %v3575 = vadd.f32 %v3511, %v3567
          %v3576 = vadd.f32 %v3512, %v3568
          %v3577 = vadd.f32 %v3513, %v3569
          %v3578 = vadd.f32 %v3514, %v3570
          %v3579 = vadd.f32 %v3515, %v3571
          %v3580 = vadd.f32 %v3516, %v3572
          %3581 = vst [vmem:[#allocation2] sm:$0xff] %v3573
          %3582 = vst [vmem:[#allocation2 + $0x8] sm:$0xff] %v3574
          %3583 = vst [vmem:[#allocation2 + $0x10] sm:$0xff] %v3575
          %3584 = vst [vmem:[#allocation2 + $0x18] sm:$0xff] %v3576
          %3585 = vst [vmem:[#allocation2 + $0x20] sm:$0xff] %v3577
          %3586 = vst [vmem:[#allocation2 + $0x28] sm:$0xff] %v3578
          %3587 = vst [vmem:[#allocation2 + $0x30] sm:$0xff] %v3579
          %3588 = vst [vmem:[#allocation2 + $0x38] sm:$0xff] %v3580
        $region148: #{tpu_custom_call.1} parent=75 // pred_fallthru
          _
        %p3589 = scmp.eq.s32.totalorder %s49, 1
        %p3590 = pnand %p3493, %p3589
        %p3591 = pneg %p3590
        // Predicated region
        $region149: #{tpu_custom_call.1} parent=75 // pred_check
          _
        $region150: #{tpu_custom_call.1} parent=75 // pred_check_branch
          %3593 = sbr.rel (%p3590) target = $region152
        $region151: #{tpu_custom_call.1} parent=75 // pred_region
          %v3594 = vld [vmem:[#allocation2] sm:$0xff]
          %v3595 = vld [vmem:[#allocation2 + $0x8] sm:$0xff]
          %v3596 = vld [vmem:[#allocation2 + $0x10] sm:$0xff]
          %v3597 = vld [vmem:[#allocation2 + $0x18] sm:$0xff]
          %v3598 = vld [vmem:[#allocation2 + $0x20] sm:$0xff]
          %v3599 = vld [vmem:[#allocation2 + $0x28] sm:$0xff]
          %v3600 = vld [vmem:[#allocation2 + $0x30] sm:$0xff]
          %v3601 = vld [vmem:[#allocation2 + $0x38] sm:$0xff]
          %3602 = vst [vmem:[#allocation25] sm:$0xff] %v3594
          %3603 = vst [vmem:[#allocation25 + $0x8] sm:$0xff] %v3595
          %3604 = vst [vmem:[#allocation25 + $0x10] sm:$0xff] %v3596
          %3605 = vst [vmem:[#allocation25 + $0x18] sm:$0xff] %v3597
          %3606 = vst [vmem:[#allocation25 + $0x20] sm:$0xff] %v3598
          %3607 = vst [vmem:[#allocation25 + $0x28] sm:$0xff] %v3599
          %3608 = vst [vmem:[#allocation25 + $0x30] sm:$0xff] %v3600
          %3609 = vst [vmem:[#allocation25 + $0x38] sm:$0xff] %v3601
        $region152: #{tpu_custom_call.1} parent=75 // pred_fallthru
          _
        // Predicated region
        $region153: #{tpu_custom_call.1} parent=75 // pred_check
          %p3610 = pneg %p483
        $region154: #{tpu_custom_call.1} parent=75 // pred_check_branch
          %3612 = sbr.rel (%p3610) target = $region156
        $region155: #{tpu_custom_call.1} parent=75 // pred_region
          %s3614 = ssub.s32 1024, 1024
          %3615 = vsyncadd [#allocation7], %s3614
          %s3616 = sshll.u32 [#allocation25], 4
          %s3617 = int_to_ptr.vmem [resolvable:$true] %s3616
          %3622 = dma.vmem_to_hbm [thread:$0]  %s3617, 1024, %s14, [#allocation7], 256, 256, 16
        $region156: #{tpu_custom_call.1} parent=75 // pred_fallthru
          _
        // Predicated region
        $region157: #{tpu_custom_call.1} parent=75 // pred_check
          %p3623 = pneg %p483
        $region158: #{tpu_custom_call.1} parent=75 // pred_check_branch
          %3625 = sbr.rel (%p3623) target = $region160
        $region159: #{tpu_custom_call.1} parent=75 // pred_region
          %3626 = dma.done [#allocation7], 1024
        $region160: #{tpu_custom_call.1} parent=75 // pred_fallthru
          _
      $region76: #{tpu_custom_call.1} parent=5 // pred_fallthru
        _
      %p3627 = scmp.le.s32.totalorder 2, %s40
      // Predicated region
      $region161: #{tpu_custom_call.1} parent=5 // pred_check
        %p3628 = pneg %p3627
      $region162: #{tpu_custom_call.1} parent=5 // pred_check_branch
        %3630 = sbr.rel (%p3628) target = $region164
      $region163: #{tpu_custom_call.1} parent=5 // pred_region
        %s3631 = ssub.s32 %s40, 2
      $region164: #{tpu_custom_call.1} parent=5 // pred_fallthru
        _
    $region6: #{tpu_custom_call.1} parent=1 // loop_footer
      %s44 = sadd.s32 1, %s40
    $region7: #{tpu_custom_call.1} parent=1 // loop_footer_branch
      %39 = sbr.rel target = $region3
    $region8: #{tpu_custom_call.1} parent=1 // loop_exit
      _
    %3632 = vsyncpa [#allocation6], 1
    %s3633 = scalar_lea.sflag [#allocation6], 1
    %3634 = vsyncpa %s3633, 1
    %3635 = vsyncpa [#allocation9], 1
    %s3636 = scalar_lea.sflag [#allocation9], 1
    %3637 = vsyncpa %s3636, 1
    %3638 = vsyncpa [#allocation12], 1
    %s3639 = scalar_lea.sflag [#allocation12], 1
    %3640 = vsyncpa %s3639, 1
    %3641 = vsyncpa [#allocation15], 1
    %s3642 = scalar_lea.sflag [#allocation15], 1
    %3643 = vsyncpa %s3642, 1
    %3644 = vsyncpa [#allocation18], 1
    %s3645 = scalar_lea.sflag [#allocation18], 1
    %3646 = vsyncpa %s3645, 1
    %3647 = vsyncpa [#allocation21], 1
    %s3648 = scalar_lea.sflag [#allocation21], 1
    %3649 = vsyncpa %s3648, 1
    %3650 = vsyncpa [#allocation24], 1
    %s3651 = scalar_lea.sflag [#allocation24], 1
    %3652 = vsyncpa %s3651, 1
    %3653 = vsyncpa [#allocation7], 1
    %s3654 = scalar_lea.sflag [#allocation7], 1
    %3655 = vsyncpa %s3654, 1

</llo_original>
